<compile_context>
chip_gen: v7x
topology: tpu7x:2x2x1
jax: 0.10.0
libtpu: 0.0.40
codegen_flags: <defaults>
</compile_context>

<pallas_src>
import functools
import numpy as np
import jax
import jax.numpy as jnp
from jax.experimental import pallas as pl
from jax.experimental.pallas import tpu as pltpu

# ---- cfg ----
INPUT_DIM = 8          # cfg.INPUT.DIM
HIDDEN_SIZE = 32       # cfg.MODEL.CONTROLLER.HIDDEN_SIZE
OUTPUT_DIM = 8         # cfg.OUTPUT.DIM
MAX_ITER = 5           # cfg.MODEL.MAX_ITER
EPSILON = 0.01         # cfg.ACT.BASELINE.EPSILON
MIN_PENALTY = 0.01     # cfg.ACT.MIN_PENALTY
BATCH = 2              # cfg.DATALOADER.BATCH_SIZE
SEQ = 8                # sequence length (input.size(0))


def base_act_kernel(x_ref, state0_ref, w_in_ref, w2_ref, y_out_ref, state_out_ref,
                    *, seq_len, batch, din, hidden, out_dim, max_iter, epsilon):
    # ---- unpack packed weights (static slices of VMEM-resident tiles) ----
    w_in = w_in_ref[...]                       # (Din+2, H): [Wx^T ; b_ih+b_hh ; flag col]
    wx = w_in[:din, :]                         # (Din, H)
    bias = w_in[din:din + 1, :]                # (1, H)
    wflag = w_in[din + 1:din + 2, :]           # (1, H)

    w2 = w2_ref[...]                           # (H+1, H+1+OUT)
    w_full = w2[:hidden, :]                    # (H, H+1+OUT) = [W_hh^T | W_halt^T | W_ans^T]
    bha = w2[hidden:hidden + 1, hidden:]       # (1, 1+OUT)   = [b_halt | b_ans]

    # ---- hoisted input projection for ALL timesteps (bias added on VPU) ----
    xw_all = jnp.dot(x_ref[...], wx, preferred_element_type=jnp.float32) + bias  # (T*B, H)

    state0 = state0_ref[...]                   # (B, H+2) = [hidden | ponder | steps]
    s_carry = state0[:, :hidden]
    pond = state0[:, hidden:hidden + 1]
    steps = state0[:, hidden + 1:hidden + 2]

    # ---- loop-invariant constants hoisted (JAX does not CSE broadcast_in_dim) ----
    zeros_b1 = jnp.zeros((batch, 1), jnp.float32)
    ones_b1 = jnp.ones((batch, 1), jnp.float32)
    zeros_by = jnp.zeros((batch, out_dim), jnp.float32)
    zeros_bh = jnp.zeros((batch, hidden), jnp.float32)
    thresh = 1.0 - epsilon

    # Initial recurrent pre-activation from the carried hidden state.
    # For t > 0 it is carried as rec_acc (= s_acc @ W_hh^T), saving one serial
    # matmul per timestep on the cross-timestep critical path.
    rec_h = jnp.dot(s_carry, w_full, preferred_element_type=jnp.float32)[:, :hidden]

    ys = []
    for t in range(seq_len):                   # static unroll (T is small)
        xw = xw_all[t * batch:(t + 1) * batch, :]   # (B, H) static slice
        xw_flag = xw + wflag                        # first-ponder-step variant

        y = zeros_by
        h = zeros_b1
        s_acc = zeros_bh
        rec_acc = zeros_bh
        r_n = ones_b1
        R = ones_b1
        N = zeros_b1
        steps = steps + 1.0

        for n in range(1, max_iter + 1):
            s_n = jnp.tanh((xw_flag if n == 1 else xw) + rec_h)
            # Single fused matmul: [next recurrent pre-act | halt logit | answer].
            full = jnp.dot(s_n, w_full, preferred_element_type=jnp.float32)  # (B, H+1+OUT)
            rec_h = full[:, :hidden]
            hy = full[:, hidden:] + bha
            y_n = hy[:, 1:]
            if n < max_iter:
                h_n = jax.nn.sigmoid(hy[:, :1])
                h = h + h_n
                isN = h >= thresh
                p_n = jnp.where(isN, r_n, h_n)
                y = y + p_n * y_n
                s_acc = s_acc + p_n * s_n
                rec_acc = rec_acc + p_n * rec_h
                steps = jnp.where(isN, steps, steps + 1.0)
                r_n = jnp.where(isN, zeros_b1, 1.0 - h)
                R = jnp.where(isN, R, r_n)
                N = jnp.where(isN, N, float(n + 1))
            else:
                # Final (remainder) step: p_n = r_n, no halting update.
                y = y + r_n * y_n
                s_acc = s_acc + r_n * s_n
                rec_acc = rec_acc + r_n * rec_h

        pond = pond + R + N
        ys.append(y)
        s_carry = s_acc
        rec_h = rec_acc            # == s_acc @ W_hh^T (distributivity)

    # One dense writeback of all timesteps (major-dim stack; no per-t masked RMW stores).
    y_out_ref[...] = jnp.stack(ys, axis=0)                 # (T, B, OUT)
    state_out_ref[:, :hidden] = s_carry
    state_out_ref[:, hidden:hidden + 1] = pond
    state_out_ref[:, hidden + 1:hidden + 2] = steps


def base_act_pallas(x, h0, pond0, steps0, params, *, max_iter=MAX_ITER, epsilon=EPSILON):
    T, B, Din = x.shape
    H = params["w_hh"].shape[0]
    OUT = params["w_ans"].shape[0]

    # ---- packed weights (plain-JAX glue, pre-transposed to (in, out)) ----
    # W_in = [Wx^T ; (b_ih + b_hh) ; flag column of W_ih]           -> (Din+2, H)
    w_in = jnp.concatenate([
        params["w_ih"][:, :Din].T,
        (params["b_ih"] + params["b_hh"]).reshape(1, H),
        params["w_ih"][:, Din:].T,
    ], axis=0)

    # W2: rows 0..H-1 = [W_hh^T | W_halt^T | W_ans^T], row H = [0 | b_halt | b_ans]
    top = jnp.concatenate(
        [params["w_hh"].T, params["w_halt"].T, params["w_ans"].T], axis=1)   # (H, H+1+OUT)
    bottom = jnp.concatenate(
        [jnp.zeros((1, H), jnp.float32),
         params["b_halt"].reshape(1, 1),
         params["b_ans"].reshape(1, OUT)], axis=1)                           # (1, H+1+OUT)
    w2 = jnp.concatenate([top, bottom], axis=0)                              # (H+1, H+1+OUT)

    x_flat = x.reshape(T * B, Din)
    state0 = jnp.concatenate([h0, pond0, steps0], axis=1)                    # (B, H+2)

    kernel = functools.partial(
        base_act_kernel, seq_len=T, batch=B, din=Din, hidden=H, out_dim=OUT,
        max_iter=max_iter, epsilon=epsilon)

    vmem = pl.BlockSpec(memory_space=pltpu.MemorySpace.VMEM)
    flops = 2 * (T * B * Din * H + B * H * (H + 1 + OUT) * (T * max_iter + 1))
    transcendentals = T * B * (max_iter * H + (max_iter - 1))
    bytes_accessed = 4 * (x_flat.size + state0.size + w_in.size + w2.size
                          + T * B * OUT + B * (H + 2))

    # Single invocation: the whole (<100 KiB) working set lives in VMEM for the
    # duration of the kernel; no grid, no per-step pipeline overhead.
    y_out, state_out = pl.pallas_call(
        kernel,
        out_shape=(
            jax.ShapeDtypeStruct((T, B, OUT), jnp.float32),
            jax.ShapeDtypeStruct((B, H + 2), jnp.float32),
        ),
        in_specs=[vmem, vmem, vmem, vmem],
        out_specs=(vmem, vmem),
        cost_estimate=pl.CostEstimate(flops=flops, transcendentals=transcendentals,
                                      bytes_accessed=bytes_accessed),
    )(x_flat, state0, w_in, w2)

    h_out = state_out[:, :H]
    pond_out = state_out[:, H:H + 1]
    steps_out = state_out[:, H + 1:H + 2]
    return y_out, h_out, pond_out, steps_out


# ---------------- literal NumPy port of the PyTorch module (reference) ----------------
def _sigmoid(z):
    return 1.0 / (1.0 + np.exp(-z))


def _act_cell_ref(x, prev_hidden, prev_pond, prev_steps, p, max_iter, eps):
    B = x.shape[0]
    OUT = p["w_ans"].shape[0]
    s = np.zeros_like(prev_hidden)
    y = np.zeros((B, OUT), np.float32)
    h = np.zeros((B, 1), np.float32)
    s_n = prev_hidden
    r_n = np.ones((B, 1), np.float32)
    R = np.ones((B, 1), np.float32)
    N = np.zeros((B, 1), np.float32)
    steps = prev_steps + 1.0

    def controller(x_n, s_prev):
        return np.tanh(x_n @ p["w_ih"].T + p["b_ih"] + s_prev @ p["w_hh"].T + p["b_hh"])

    for n in range(1, max_iter):
        b_flag = np.ones((B, 1), np.float32) if n == 1 else np.zeros((B, 1), np.float32)
        x_n = np.concatenate((x, b_flag), 1)
        s_n = controller(x_n, s_n)
        h_n = _sigmoid(s_n @ p["w_halt"].T + p["b_halt"])
        y_n = s_n @ p["w_ans"].T + p["b_ans"]
        h = h + h_n
        isN = h >= 1.0 - eps
        p_n = np.where(isN, r_n, h_n)
        y = y + p_n * y_n
        s = s + p_n * s_n
        if isN.all():
            return y, s, prev_pond + R + N, steps
        steps = np.where(isN, steps, steps + 1.0)
        r_n = np.where(isN, 0.0, 1.0 - h)
        R = np.where(isN, R, r_n)
        N = np.where(isN, N, float(n + 1))

    b_flag = np.ones((B, 1), np.float32) if max_iter == 1 else np.zeros((B, 1), np.float32)
    x_n = np.concatenate((x, b_flag), 1)
    s_n = controller(x_n, s_n)
    y_n = s_n @ p["w_ans"].T + p["b_ans"]
    p_n = r_n
    y = y + p_n * y_n
    s = s + p_n * s_n
    return y, s, prev_pond + R + N, steps


def _base_act_ref(x, h0, pond0, steps0, p, max_iter, eps):
    T = x.shape[0]
    hidden, pond, steps = h0.copy(), pond0.copy(), steps0.copy()
    outs = []
    for t in range(T):
        y, hidden, pond, steps = _act_cell_ref(x[t], hidden, pond, steps, p, max_iter, eps)
        outs.append(y)
    return np.stack(outs, 0), hidden, pond, steps


# ---------------- main ----------------
if __name__ == "__main__":
    key = jax.random.PRNGKey(0)
    ks = jax.random.split(key, 10)

    k_rnn = 1.0 / np.sqrt(HIDDEN_SIZE)
    k_lin = 1.0 / np.sqrt(HIDDEN_SIZE)
    params = {
        "w_ih": jax.random.uniform(ks[0], (HIDDEN_SIZE, INPUT_DIM + 1),
                                   minval=-k_rnn, maxval=k_rnn, dtype=jnp.float32),
        "b_ih": jax.random.uniform(ks[1], (HIDDEN_SIZE,), minval=-k_rnn, maxval=k_rnn,
                                   dtype=jnp.float32),
        "w_hh": jax.random.uniform(ks[2], (HIDDEN_SIZE, HIDDEN_SIZE),
                                   minval=-k_rnn, maxval=k_rnn, dtype=jnp.float32),
        "b_hh": jax.random.uniform(ks[3], (HIDDEN_SIZE,), minval=-k_rnn, maxval=k_rnn,
                                   dtype=jnp.float32),
        "w_halt": jax.random.uniform(ks[4], (1, HIDDEN_SIZE), minval=-k_lin, maxval=k_lin,
                                     dtype=jnp.float32),
        "b_halt": jax.random.uniform(ks[5], (1,), minval=-k_lin, maxval=k_lin,
                                     dtype=jnp.float32),
        "w_ans": jax.random.uniform(ks[6], (OUTPUT_DIM, HIDDEN_SIZE), minval=-k_lin,
                                    maxval=k_lin, dtype=jnp.float32),
        "b_ans": jax.random.uniform(ks[7], (OUTPUT_DIM,), minval=-k_lin, maxval=k_lin,
                                    dtype=jnp.float32),
    }

    x = jax.random.normal(ks[8], (SEQ, BATCH, INPUT_DIM), dtype=jnp.float32)

    # init_hidden()
    h0 = jnp.zeros((BATCH, HIDDEN_SIZE), jnp.float32)
    pond0 = jnp.full((BATCH, 1), MIN_PENALTY, jnp.float32)
    steps0 = jnp.zeros((BATCH, 1), jnp.float32)

    y_out, h_out, pond_out, steps_out = base_act_pallas(x, h0, pond0, steps0, params)
    jax.block_until_ready((y_out, h_out, pond_out, steps_out))

    # Reference check against the literal PyTorch semantics.
    np_params = {k: np.asarray(v) for k, v in params.items()}
    y_ref, h_ref, pond_ref, steps_ref = _base_act_ref(
        np.asarray(x), np.asarray(h0), np.asarray(pond0), np.asarray(steps0),
        np_params, MAX_ITER, EPSILON)

    np.testing.assert_allclose(np.asarray(y_out), y_ref, rtol=5e-3, atol=5e-3)
    np.testing.assert_allclose(np.asarray(h_out), h_ref, rtol=5e-3, atol=5e-3)
    np.testing.assert_allclose(np.asarray(pond_out), pond_ref, rtol=5e-3, atol=5e-3)
    np.testing.assert_allclose(np.asarray(steps_out), steps_ref, rtol=5e-3, atol=5e-3)

    print("KERNEL_OK")
</pallas_src>

<mosaic_0001>
module attributes {stable_mosaic.version = 11 : i64} {
  func.func @base_act_kernel(%arg0: memref<16x8xf32, #tpu.memory_space<vmem>>, %arg1: memref<2x34xf32, #tpu.memory_space<vmem>>, %arg2: memref<10x32xf32, #tpu.memory_space<vmem>>, %arg3: memref<33x41xf32, #tpu.memory_space<vmem>>, %arg4: memref<8x2x8xf32, #tpu.memory_space<vmem>>, %arg5: memref<2x34xf32, #tpu.memory_space<vmem>>) attributes {dimension_semantics = [], scalar_prefetch = 0 : i64, scratch_operands = 0 : i64, tpu.core_type = #tpu.core_type<tc>} {
    %c0 = arith.constant 0 : index
    %c0_0 = arith.constant 0 : index
    %0 = vector.load %arg2[%c0, %c0_0] : memref<10x32xf32, #tpu.memory_space<vmem>>, vector<10x32xf32>
    %1 = vector.extract_strided_slice %0 {offsets = [0, 0], sizes = [8, 32], strides = [1, 1]} : vector<10x32xf32> to vector<8x32xf32>
    %2 = vector.extract_strided_slice %0 {offsets = [8, 0], sizes = [1, 32], strides = [1, 1]} : vector<10x32xf32> to vector<1x32xf32>
    %3 = vector.extract_strided_slice %0 {offsets = [9, 0], sizes = [1, 32], strides = [1, 1]} : vector<10x32xf32> to vector<1x32xf32>
    %c0_1 = arith.constant 0 : index
    %c0_2 = arith.constant 0 : index
    %4 = vector.load %arg3[%c0_1, %c0_2] : memref<33x41xf32, #tpu.memory_space<vmem>>, vector<33x41xf32>
    %5 = vector.extract_strided_slice %4 {offsets = [0, 0], sizes = [32, 41], strides = [1, 1]} : vector<33x41xf32> to vector<32x41xf32>
    %6 = vector.extract_strided_slice %4 {offsets = [32, 32], sizes = [1, 9], strides = [1, 1]} : vector<33x41xf32> to vector<1x9xf32>
    %c0_3 = arith.constant 0 : index
    %c0_4 = arith.constant 0 : index
    %7 = vector.load %arg0[%c0_3, %c0_4] : memref<16x8xf32, #tpu.memory_space<vmem>>, vector<16x8xf32>
    %cst = arith.constant dense<0.000000e+00> : vector<16x32xf32>
    %8 = tpu.matmul %7, %1, %cst {dimension_numbers = #tpu.dot_dimension_numbers<[1], [0], [0], [1], [0, 0, 1, 1], [], []>} : vector<16x8xf32>, vector<8x32xf32>, vector<16x32xf32> -> vector<16x32xf32>
    %9 = vector.broadcast %2 : vector<1x32xf32> to vector<16x32xf32>
    %10 = arith.addf %8, %9 : vector<16x32xf32>
    %c0_5 = arith.constant 0 : index
    %c0_6 = arith.constant 0 : index
    %11 = vector.load %arg1[%c0_5, %c0_6] : memref<2x34xf32, #tpu.memory_space<vmem>>, vector<2x34xf32>
    %12 = vector.extract_strided_slice %11 {offsets = [0, 0], sizes = [2, 32], strides = [1, 1]} : vector<2x34xf32> to vector<2x32xf32>
    %13 = vector.extract_strided_slice %11 {offsets = [0, 32], sizes = [2, 1], strides = [1, 1]} : vector<2x34xf32> to vector<2x1xf32>
    %14 = vector.extract_strided_slice %11 {offsets = [0, 33], sizes = [2, 1], strides = [1, 1]} : vector<2x34xf32> to vector<2x1xf32>
    %cst_7 = arith.constant 0.000000e+00 : f32
    %15 = vector.broadcast %cst_7 : f32 to vector<2x1xf32>
    %cst_8 = arith.constant 1.000000e+00 : f32
    %16 = vector.broadcast %cst_8 : f32 to vector<2x1xf32>
    %cst_9 = arith.constant 0.000000e+00 : f32
    %17 = vector.broadcast %cst_9 : f32 to vector<2x8xf32>
    %cst_10 = arith.constant 0.000000e+00 : f32
    %18 = vector.broadcast %cst_10 : f32 to vector<2x32xf32>
    %cst_11 = arith.constant dense<0.000000e+00> : vector<2x41xf32>
    %19 = tpu.matmul %12, %5, %cst_11 {dimension_numbers = #tpu.dot_dimension_numbers<[1], [0], [0], [1], [0, 0, 1, 1], [], []>} : vector<2x32xf32>, vector<32x41xf32>, vector<2x41xf32> -> vector<2x41xf32>
    %20 = vector.extract_strided_slice %19 {offsets = [0, 0], sizes = [2, 32], strides = [1, 1]} : vector<2x41xf32> to vector<2x32xf32>
    %21 = vector.extract_strided_slice %10 {offsets = [0, 0], sizes = [2, 32], strides = [1, 1]} : vector<16x32xf32> to vector<2x32xf32>
    %22 = vector.broadcast %3 : vector<1x32xf32> to vector<2x32xf32>
    %23 = arith.addf %21, %22 : vector<2x32xf32>
    %cst_12 = arith.constant 1.000000e+00 : f32
    %24 = vector.broadcast %cst_12 : f32 to vector<2x1xf32>
    %25 = arith.addf %14, %24 : vector<2x1xf32>
    %26 = arith.addf %23, %20 : vector<2x32xf32>
    %27 = math.tanh %26 : vector<2x32xf32>
    %cst_13 = arith.constant dense<0.000000e+00> : vector<2x41xf32>
    %28 = tpu.matmul %27, %5, %cst_13 {dimension_numbers = #tpu.dot_dimension_numbers<[1], [0], [0], [1], [0, 0, 1, 1], [], []>} : vector<2x32xf32>, vector<32x41xf32>, vector<2x41xf32> -> vector<2x41xf32>
    %29 = vector.extract_strided_slice %28 {offsets = [0, 0], sizes = [2, 32], strides = [1, 1]} : vector<2x41xf32> to vector<2x32xf32>
    %30 = vector.extract_strided_slice %28 {offsets = [0, 32], sizes = [2, 9], strides = [1, 1]} : vector<2x41xf32> to vector<2x9xf32>
    %31 = vector.broadcast %6 : vector<1x9xf32> to vector<2x9xf32>
    %32 = arith.addf %30, %31 : vector<2x9xf32>
    %33 = vector.extract_strided_slice %32 {offsets = [0, 1], sizes = [2, 8], strides = [1, 1]} : vector<2x9xf32> to vector<2x8xf32>
    %34 = vector.extract_strided_slice %32 {offsets = [0, 0], sizes = [2, 1], strides = [1, 1]} : vector<2x9xf32> to vector<2x1xf32>
    %35 = arith.negf %34 : vector<2x1xf32>
    %36 = math.exp %35 : vector<2x1xf32>
    %cst_14 = arith.constant 1.000000e+00 : f32
    %37 = vector.broadcast %cst_14 : f32 to vector<2x1xf32>
    %38 = arith.addf %37, %36 : vector<2x1xf32>
    %39 = arith.divf %37, %38 : vector<2x1xf32>
    %40 = arith.addf %15, %39 : vector<2x1xf32>
    %cst_15 = arith.constant 9.900000e-01 : f32
    %41 = vector.broadcast %cst_15 : f32 to vector<2x1xf32>
    %42 = arith.cmpf oge, %40, %41 : vector<2x1xf32>
    %43 = arith.select %42, %16, %39 : vector<2x1xi1>, vector<2x1xf32>
    %44 = vector.broadcast %43 : vector<2x1xf32> to vector<2x8xf32>
    %45 = arith.mulf %44, %33 : vector<2x8xf32>
    %46 = arith.addf %17, %45 : vector<2x8xf32>
    %47 = vector.broadcast %43 : vector<2x1xf32> to vector<2x32xf32>
    %48 = arith.mulf %47, %29 : vector<2x32xf32>
    %49 = arith.addf %18, %48 : vector<2x32xf32>
    %cst_16 = arith.constant 1.000000e+00 : f32
    %50 = vector.broadcast %cst_16 : f32 to vector<2x1xf32>
    %51 = arith.addf %25, %50 : vector<2x1xf32>
    %52 = arith.select %42, %25, %51 : vector<2x1xi1>, vector<2x1xf32>
    %cst_17 = arith.constant 1.000000e+00 : f32
    %53 = vector.broadcast %cst_17 : f32 to vector<2x1xf32>
    %54 = arith.subf %53, %40 : vector<2x1xf32>
    %55 = arith.select %42, %15, %54 : vector<2x1xi1>, vector<2x1xf32>
    %56 = arith.select %42, %16, %55 : vector<2x1xi1>, vector<2x1xf32>
    %cst_18 = arith.constant 2.000000e+00 : f32
    %57 = vector.broadcast %cst_18 : f32 to vector<2x1xf32>
    %58 = arith.select %42, %15, %57 : vector<2x1xi1>, vector<2x1xf32>
    %59 = arith.addf %21, %29 : vector<2x32xf32>
    %60 = math.tanh %59 : vector<2x32xf32>
    %cst_19 = arith.constant dense<0.000000e+00> : vector<2x41xf32>
    %61 = tpu.matmul %60, %5, %cst_19 {dimension_numbers = #tpu.dot_dimension_numbers<[1], [0], [0], [1], [0, 0, 1, 1], [], []>} : vector<2x32xf32>, vector<32x41xf32>, vector<2x41xf32> -> vector<2x41xf32>
    %62 = vector.extract_strided_slice %61 {offsets = [0, 0], sizes = [2, 32], strides = [1, 1]} : vector<2x41xf32> to vector<2x32xf32>
    %63 = vector.extract_strided_slice %61 {offsets = [0, 32], sizes = [2, 9], strides = [1, 1]} : vector<2x41xf32> to vector<2x9xf32>
    %64 = vector.broadcast %6 : vector<1x9xf32> to vector<2x9xf32>
    %65 = arith.addf %63, %64 : vector<2x9xf32>
    %66 = vector.extract_strided_slice %65 {offsets = [0, 1], sizes = [2, 8], strides = [1, 1]} : vector<2x9xf32> to vector<2x8xf32>
    %67 = vector.extract_strided_slice %65 {offsets = [0, 0], sizes = [2, 1], strides = [1, 1]} : vector<2x9xf32> to vector<2x1xf32>
    %68 = arith.negf %67 : vector<2x1xf32>
    %69 = math.exp %68 : vector<2x1xf32>
    %cst_20 = arith.constant 1.000000e+00 : f32
    %70 = vector.broadcast %cst_20 : f32 to vector<2x1xf32>
    %71 = arith.addf %70, %69 : vector<2x1xf32>
    %72 = arith.divf %70, %71 : vector<2x1xf32>
    %73 = arith.addf %40, %72 : vector<2x1xf32>
    %cst_21 = arith.constant 9.900000e-01 : f32
    %74 = vector.broadcast %cst_21 : f32 to vector<2x1xf32>
    %75 = arith.cmpf oge, %73, %74 : vector<2x1xf32>
    %76 = arith.select %75, %55, %72 : vector<2x1xi1>, vector<2x1xf32>
    %77 = vector.broadcast %76 : vector<2x1xf32> to vector<2x8xf32>
    %78 = arith.mulf %77, %66 : vector<2x8xf32>
    %79 = arith.addf %46, %78 : vector<2x8xf32>
    %80 = vector.broadcast %76 : vector<2x1xf32> to vector<2x32xf32>
    %81 = arith.mulf %80, %62 : vector<2x32xf32>
    %82 = arith.addf %49, %81 : vector<2x32xf32>
    %cst_22 = arith.constant 1.000000e+00 : f32
    %83 = vector.broadcast %cst_22 : f32 to vector<2x1xf32>
    %84 = arith.addf %52, %83 : vector<2x1xf32>
    %85 = arith.select %75, %52, %84 : vector<2x1xi1>, vector<2x1xf32>
    %cst_23 = arith.constant 1.000000e+00 : f32
    %86 = vector.broadcast %cst_23 : f32 to vector<2x1xf32>
    %87 = arith.subf %86, %73 : vector<2x1xf32>
    %88 = arith.select %75, %15, %87 : vector<2x1xi1>, vector<2x1xf32>
    %89 = arith.select %75, %56, %88 : vector<2x1xi1>, vector<2x1xf32>
    %cst_24 = arith.constant 3.000000e+00 : f32
    %90 = vector.broadcast %cst_24 : f32 to vector<2x1xf32>
    %91 = arith.select %75, %58, %90 : vector<2x1xi1>, vector<2x1xf32>
    %92 = arith.addf %21, %62 : vector<2x32xf32>
    %93 = math.tanh %92 : vector<2x32xf32>
    %cst_25 = arith.constant dense<0.000000e+00> : vector<2x41xf32>
    %94 = tpu.matmul %93, %5, %cst_25 {dimension_numbers = #tpu.dot_dimension_numbers<[1], [0], [0], [1], [0, 0, 1, 1], [], []>} : vector<2x32xf32>, vector<32x41xf32>, vector<2x41xf32> -> vector<2x41xf32>
    %95 = vector.extract_strided_slice %94 {offsets = [0, 0], sizes = [2, 32], strides = [1, 1]} : vector<2x41xf32> to vector<2x32xf32>
    %96 = vector.extract_strided_slice %94 {offsets = [0, 32], sizes = [2, 9], strides = [1, 1]} : vector<2x41xf32> to vector<2x9xf32>
    %97 = vector.broadcast %6 : vector<1x9xf32> to vector<2x9xf32>
    %98 = arith.addf %96, %97 : vector<2x9xf32>
    %99 = vector.extract_strided_slice %98 {offsets = [0, 1], sizes = [2, 8], strides = [1, 1]} : vector<2x9xf32> to vector<2x8xf32>
    %100 = vector.extract_strided_slice %98 {offsets = [0, 0], sizes = [2, 1], strides = [1, 1]} : vector<2x9xf32> to vector<2x1xf32>
    %101 = arith.negf %100 : vector<2x1xf32>
    %102 = math.exp %101 : vector<2x1xf32>
    %cst_26 = arith.constant 1.000000e+00 : f32
    %103 = vector.broadcast %cst_26 : f32 to vector<2x1xf32>
    %104 = arith.addf %103, %102 : vector<2x1xf32>
    %105 = arith.divf %103, %104 : vector<2x1xf32>
    %106 = arith.addf %73, %105 : vector<2x1xf32>
    %cst_27 = arith.constant 9.900000e-01 : f32
    %107 = vector.broadcast %cst_27 : f32 to vector<2x1xf32>
    %108 = arith.cmpf oge, %106, %107 : vector<2x1xf32>
    %109 = arith.select %108, %88, %105 : vector<2x1xi1>, vector<2x1xf32>
    %110 = vector.broadcast %109 : vector<2x1xf32> to vector<2x8xf32>
    %111 = arith.mulf %110, %99 : vector<2x8xf32>
    %112 = arith.addf %79, %111 : vector<2x8xf32>
    %113 = vector.broadcast %109 : vector<2x1xf32> to vector<2x32xf32>
    %114 = arith.mulf %113, %95 : vector<2x32xf32>
    %115 = arith.addf %82, %114 : vector<2x32xf32>
    %cst_28 = arith.constant 1.000000e+00 : f32
    %116 = vector.broadcast %cst_28 : f32 to vector<2x1xf32>
    %117 = arith.addf %85, %116 : vector<2x1xf32>
    %118 = arith.select %108, %85, %117 : vector<2x1xi1>, vector<2x1xf32>
    %cst_29 = arith.constant 1.000000e+00 : f32
    %119 = vector.broadcast %cst_29 : f32 to vector<2x1xf32>
    %120 = arith.subf %119, %106 : vector<2x1xf32>
    %121 = arith.select %108, %15, %120 : vector<2x1xi1>, vector<2x1xf32>
    %122 = arith.select %108, %89, %121 : vector<2x1xi1>, vector<2x1xf32>
    %cst_30 = arith.constant 4.000000e+00 : f32
    %123 = vector.broadcast %cst_30 : f32 to vector<2x1xf32>
    %124 = arith.select %108, %91, %123 : vector<2x1xi1>, vector<2x1xf32>
    %125 = arith.addf %21, %95 : vector<2x32xf32>
    %126 = math.tanh %125 : vector<2x32xf32>
    %cst_31 = arith.constant dense<0.000000e+00> : vector<2x41xf32>
    %127 = tpu.matmul %126, %5, %cst_31 {dimension_numbers = #tpu.dot_dimension_numbers<[1], [0], [0], [1], [0, 0, 1, 1], [], []>} : vector<2x32xf32>, vector<32x41xf32>, vector<2x41xf32> -> vector<2x41xf32>
    %128 = vector.extract_strided_slice %127 {offsets = [0, 0], sizes = [2, 32], strides = [1, 1]} : vector<2x41xf32> to vector<2x32xf32>
    %129 = vector.extract_strided_slice %127 {offsets = [0, 32], sizes = [2, 9], strides = [1, 1]} : vector<2x41xf32> to vector<2x9xf32>
    %130 = vector.broadcast %6 : vector<1x9xf32> to vector<2x9xf32>
    %131 = arith.addf %129, %130 : vector<2x9xf32>
    %132 = vector.extract_strided_slice %131 {offsets = [0, 1], sizes = [2, 8], strides = [1, 1]} : vector<2x9xf32> to vector<2x8xf32>
    %133 = vector.extract_strided_slice %131 {offsets = [0, 0], sizes = [2, 1], strides = [1, 1]} : vector<2x9xf32> to vector<2x1xf32>
    %134 = arith.negf %133 : vector<2x1xf32>
    %135 = math.exp %134 : vector<2x1xf32>
    %cst_32 = arith.constant 1.000000e+00 : f32
    %136 = vector.broadcast %cst_32 : f32 to vector<2x1xf32>
    %137 = arith.addf %136, %135 : vector<2x1xf32>
    %138 = arith.divf %136, %137 : vector<2x1xf32>
    %139 = arith.addf %106, %138 : vector<2x1xf32>
    %cst_33 = arith.constant 9.900000e-01 : f32
    %140 = vector.broadcast %cst_33 : f32 to vector<2x1xf32>
    %141 = arith.cmpf oge, %139, %140 : vector<2x1xf32>
    %142 = arith.select %141, %121, %138 : vector<2x1xi1>, vector<2x1xf32>
    %143 = vector.broadcast %142 : vector<2x1xf32> to vector<2x8xf32>
    %144 = arith.mulf %143, %132 : vector<2x8xf32>
    %145 = arith.addf %112, %144 : vector<2x8xf32>
    %146 = vector.broadcast %142 : vector<2x1xf32> to vector<2x32xf32>
    %147 = arith.mulf %146, %128 : vector<2x32xf32>
    %148 = arith.addf %115, %147 : vector<2x32xf32>
    %cst_34 = arith.constant 1.000000e+00 : f32
    %149 = vector.broadcast %cst_34 : f32 to vector<2x1xf32>
    %150 = arith.addf %118, %149 : vector<2x1xf32>
    %151 = arith.select %141, %118, %150 : vector<2x1xi1>, vector<2x1xf32>
    %cst_35 = arith.constant 1.000000e+00 : f32
    %152 = vector.broadcast %cst_35 : f32 to vector<2x1xf32>
    %153 = arith.subf %152, %139 : vector<2x1xf32>
    %154 = arith.select %141, %15, %153 : vector<2x1xi1>, vector<2x1xf32>
    %155 = arith.select %141, %122, %154 : vector<2x1xi1>, vector<2x1xf32>
    %cst_36 = arith.constant 5.000000e+00 : f32
    %156 = vector.broadcast %cst_36 : f32 to vector<2x1xf32>
    %157 = arith.select %141, %124, %156 : vector<2x1xi1>, vector<2x1xf32>
    %158 = arith.addf %21, %128 : vector<2x32xf32>
    %159 = math.tanh %158 : vector<2x32xf32>
    %cst_37 = arith.constant dense<0.000000e+00> : vector<2x41xf32>
    %160 = tpu.matmul %159, %5, %cst_37 {dimension_numbers = #tpu.dot_dimension_numbers<[1], [0], [0], [1], [0, 0, 1, 1], [], []>} : vector<2x32xf32>, vector<32x41xf32>, vector<2x41xf32> -> vector<2x41xf32>
    %161 = vector.extract_strided_slice %160 {offsets = [0, 0], sizes = [2, 32], strides = [1, 1]} : vector<2x41xf32> to vector<2x32xf32>
    %162 = vector.extract_strided_slice %160 {offsets = [0, 32], sizes = [2, 9], strides = [1, 1]} : vector<2x41xf32> to vector<2x9xf32>
    %163 = vector.broadcast %6 : vector<1x9xf32> to vector<2x9xf32>
    %164 = arith.addf %162, %163 : vector<2x9xf32>
    %165 = vector.extract_strided_slice %164 {offsets = [0, 1], sizes = [2, 8], strides = [1, 1]} : vector<2x9xf32> to vector<2x8xf32>
    %166 = vector.broadcast %154 : vector<2x1xf32> to vector<2x8xf32>
    %167 = arith.mulf %166, %165 : vector<2x8xf32>
    %168 = arith.addf %145, %167 : vector<2x8xf32>
    %169 = vector.broadcast %154 : vector<2x1xf32> to vector<2x32xf32>
    %170 = arith.mulf %169, %161 : vector<2x32xf32>
    %171 = arith.addf %148, %170 : vector<2x32xf32>
    %172 = arith.addf %13, %155 : vector<2x1xf32>
    %173 = arith.addf %172, %157 : vector<2x1xf32>
    %174 = vector.extract_strided_slice %10 {offsets = [2, 0], sizes = [2, 32], strides = [1, 1]} : vector<16x32xf32> to vector<2x32xf32>
    %175 = vector.broadcast %3 : vector<1x32xf32> to vector<2x32xf32>
    %176 = arith.addf %174, %175 : vector<2x32xf32>
    %cst_38 = arith.constant 1.000000e+00 : f32
    %177 = vector.broadcast %cst_38 : f32 to vector<2x1xf32>
    %178 = arith.addf %151, %177 : vector<2x1xf32>
    %179 = arith.addf %176, %171 : vector<2x32xf32>
    %180 = math.tanh %179 : vector<2x32xf32>
    %cst_39 = arith.constant dense<0.000000e+00> : vector<2x41xf32>
    %181 = tpu.matmul %180, %5, %cst_39 {dimension_numbers = #tpu.dot_dimension_numbers<[1], [0], [0], [1], [0, 0, 1, 1], [], []>} : vector<2x32xf32>, vector<32x41xf32>, vector<2x41xf32> -> vector<2x41xf32>
    %182 = vector.extract_strided_slice %181 {offsets = [0, 0], sizes = [2, 32], strides = [1, 1]} : vector<2x41xf32> to vector<2x32xf32>
    %183 = vector.extract_strided_slice %181 {offsets = [0, 32], sizes = [2, 9], strides = [1, 1]} : vector<2x41xf32> to vector<2x9xf32>
    %184 = vector.broadcast %6 : vector<1x9xf32> to vector<2x9xf32>
    %185 = arith.addf %183, %184 : vector<2x9xf32>
    %186 = vector.extract_strided_slice %185 {offsets = [0, 1], sizes = [2, 8], strides = [1, 1]} : vector<2x9xf32> to vector<2x8xf32>
    %187 = vector.extract_strided_slice %185 {offsets = [0, 0], sizes = [2, 1], strides = [1, 1]} : vector<2x9xf32> to vector<2x1xf32>
    %188 = arith.negf %187 : vector<2x1xf32>
    %189 = math.exp %188 : vector<2x1xf32>
    %cst_40 = arith.constant 1.000000e+00 : f32
    %190 = vector.broadcast %cst_40 : f32 to vector<2x1xf32>
    %191 = arith.addf %190, %189 : vector<2x1xf32>
    %192 = arith.divf %190, %191 : vector<2x1xf32>
    %193 = arith.addf %15, %192 : vector<2x1xf32>
    %cst_41 = arith.constant 9.900000e-01 : f32
    %194 = vector.broadcast %cst_41 : f32 to vector<2x1xf32>
    %195 = arith.cmpf oge, %193, %194 : vector<2x1xf32>
    %196 = arith.select %195, %16, %192 : vector<2x1xi1>, vector<2x1xf32>
    %197 = vector.broadcast %196 : vector<2x1xf32> to vector<2x8xf32>
    %198 = arith.mulf %197, %186 : vector<2x8xf32>
    %199 = arith.addf %17, %198 : vector<2x8xf32>
    %200 = vector.broadcast %196 : vector<2x1xf32> to vector<2x32xf32>
    %201 = arith.mulf %200, %182 : vector<2x32xf32>
    %202 = arith.addf %18, %201 : vector<2x32xf32>
    %cst_42 = arith.constant 1.000000e+00 : f32
    %203 = vector.broadcast %cst_42 : f32 to vector<2x1xf32>
    %204 = arith.addf %178, %203 : vector<2x1xf32>
    %205 = arith.select %195, %178, %204 : vector<2x1xi1>, vector<2x1xf32>
    %cst_43 = arith.constant 1.000000e+00 : f32
    %206 = vector.broadcast %cst_43 : f32 to vector<2x1xf32>
    %207 = arith.subf %206, %193 : vector<2x1xf32>
    %208 = arith.select %195, %15, %207 : vector<2x1xi1>, vector<2x1xf32>
    %209 = arith.select %195, %16, %208 : vector<2x1xi1>, vector<2x1xf32>
    %cst_44 = arith.constant 2.000000e+00 : f32
    %210 = vector.broadcast %cst_44 : f32 to vector<2x1xf32>
    %211 = arith.select %195, %15, %210 : vector<2x1xi1>, vector<2x1xf32>
    %212 = arith.addf %174, %182 : vector<2x32xf32>
    %213 = math.tanh %212 : vector<2x32xf32>
    %cst_45 = arith.constant dense<0.000000e+00> : vector<2x41xf32>
    %214 = tpu.matmul %213, %5, %cst_45 {dimension_numbers = #tpu.dot_dimension_numbers<[1], [0], [0], [1], [0, 0, 1, 1], [], []>} : vector<2x32xf32>, vector<32x41xf32>, vector<2x41xf32> -> vector<2x41xf32>
    %215 = vector.extract_strided_slice %214 {offsets = [0, 0], sizes = [2, 32], strides = [1, 1]} : vector<2x41xf32> to vector<2x32xf32>
    %216 = vector.extract_strided_slice %214 {offsets = [0, 32], sizes = [2, 9], strides = [1, 1]} : vector<2x41xf32> to vector<2x9xf32>
    %217 = vector.broadcast %6 : vector<1x9xf32> to vector<2x9xf32>
    %218 = arith.addf %216, %217 : vector<2x9xf32>
    %219 = vector.extract_strided_slice %218 {offsets = [0, 1], sizes = [2, 8], strides = [1, 1]} : vector<2x9xf32> to vector<2x8xf32>
    %220 = vector.extract_strided_slice %218 {offsets = [0, 0], sizes = [2, 1], strides = [1, 1]} : vector<2x9xf32> to vector<2x1xf32>
    %221 = arith.negf %220 : vector<2x1xf32>
    %222 = math.exp %221 : vector<2x1xf32>
    %cst_46 = arith.constant 1.000000e+00 : f32
    %223 = vector.broadcast %cst_46 : f32 to vector<2x1xf32>
    %224 = arith.addf %223, %222 : vector<2x1xf32>
    %225 = arith.divf %223, %224 : vector<2x1xf32>
    %226 = arith.addf %193, %225 : vector<2x1xf32>
    %cst_47 = arith.constant 9.900000e-01 : f32
    %227 = vector.broadcast %cst_47 : f32 to vector<2x1xf32>
    %228 = arith.cmpf oge, %226, %227 : vector<2x1xf32>
    %229 = arith.select %228, %208, %225 : vector<2x1xi1>, vector<2x1xf32>
    %230 = vector.broadcast %229 : vector<2x1xf32> to vector<2x8xf32>
    %231 = arith.mulf %230, %219 : vector<2x8xf32>
    %232 = arith.addf %199, %231 : vector<2x8xf32>
    %233 = vector.broadcast %229 : vector<2x1xf32> to vector<2x32xf32>
    %234 = arith.mulf %233, %215 : vector<2x32xf32>
    %235 = arith.addf %202, %234 : vector<2x32xf32>
    %cst_48 = arith.constant 1.000000e+00 : f32
    %236 = vector.broadcast %cst_48 : f32 to vector<2x1xf32>
    %237 = arith.addf %205, %236 : vector<2x1xf32>
    %238 = arith.select %228, %205, %237 : vector<2x1xi1>, vector<2x1xf32>
    %cst_49 = arith.constant 1.000000e+00 : f32
    %239 = vector.broadcast %cst_49 : f32 to vector<2x1xf32>
    %240 = arith.subf %239, %226 : vector<2x1xf32>
    %241 = arith.select %228, %15, %240 : vector<2x1xi1>, vector<2x1xf32>
    %242 = arith.select %228, %209, %241 : vector<2x1xi1>, vector<2x1xf32>
    %cst_50 = arith.constant 3.000000e+00 : f32
    %243 = vector.broadcast %cst_50 : f32 to vector<2x1xf32>
    %244 = arith.select %228, %211, %243 : vector<2x1xi1>, vector<2x1xf32>
    %245 = arith.addf %174, %215 : vector<2x32xf32>
    %246 = math.tanh %245 : vector<2x32xf32>
    %cst_51 = arith.constant dense<0.000000e+00> : vector<2x41xf32>
    %247 = tpu.matmul %246, %5, %cst_51 {dimension_numbers = #tpu.dot_dimension_numbers<[1], [0], [0], [1], [0, 0, 1, 1], [], []>} : vector<2x32xf32>, vector<32x41xf32>, vector<2x41xf32> -> vector<2x41xf32>
    %248 = vector.extract_strided_slice %247 {offsets = [0, 0], sizes = [2, 32], strides = [1, 1]} : vector<2x41xf32> to vector<2x32xf32>
    %249 = vector.extract_strided_slice %247 {offsets = [0, 32], sizes = [2, 9], strides = [1, 1]} : vector<2x41xf32> to vector<2x9xf32>
    %250 = vector.broadcast %6 : vector<1x9xf32> to vector<2x9xf32>
    %251 = arith.addf %249, %250 : vector<2x9xf32>
    %252 = vector.extract_strided_slice %251 {offsets = [0, 1], sizes = [2, 8], strides = [1, 1]} : vector<2x9xf32> to vector<2x8xf32>
    %253 = vector.extract_strided_slice %251 {offsets = [0, 0], sizes = [2, 1], strides = [1, 1]} : vector<2x9xf32> to vector<2x1xf32>
    %254 = arith.negf %253 : vector<2x1xf32>
    %255 = math.exp %254 : vector<2x1xf32>
    %cst_52 = arith.constant 1.000000e+00 : f32
    %256 = vector.broadcast %cst_52 : f32 to vector<2x1xf32>
    %257 = arith.addf %256, %255 : vector<2x1xf32>
    %258 = arith.divf %256, %257 : vector<2x1xf32>
    %259 = arith.addf %226, %258 : vector<2x1xf32>
    %cst_53 = arith.constant 9.900000e-01 : f32
    %260 = vector.broadcast %cst_53 : f32 to vector<2x1xf32>
    %261 = arith.cmpf oge, %259, %260 : vector<2x1xf32>
    %262 = arith.select %261, %241, %258 : vector<2x1xi1>, vector<2x1xf32>
    %263 = vector.broadcast %262 : vector<2x1xf32> to vector<2x8xf32>
    %264 = arith.mulf %263, %252 : vector<2x8xf32>
    %265 = arith.addf %232, %264 : vector<2x8xf32>
    %266 = vector.broadcast %262 : vector<2x1xf32> to vector<2x32xf32>
    %267 = arith.mulf %266, %248 : vector<2x32xf32>
    %268 = arith.addf %235, %267 : vector<2x32xf32>
    %cst_54 = arith.constant 1.000000e+00 : f32
    %269 = vector.broadcast %cst_54 : f32 to vector<2x1xf32>
    %270 = arith.addf %238, %269 : vector<2x1xf32>
    %271 = arith.select %261, %238, %270 : vector<2x1xi1>, vector<2x1xf32>
    %cst_55 = arith.constant 1.000000e+00 : f32
    %272 = vector.broadcast %cst_55 : f32 to vector<2x1xf32>
    %273 = arith.subf %272, %259 : vector<2x1xf32>
    %274 = arith.select %261, %15, %273 : vector<2x1xi1>, vector<2x1xf32>
    %275 = arith.select %261, %242, %274 : vector<2x1xi1>, vector<2x1xf32>
    %cst_56 = arith.constant 4.000000e+00 : f32
    %276 = vector.broadcast %cst_56 : f32 to vector<2x1xf32>
    %277 = arith.select %261, %244, %276 : vector<2x1xi1>, vector<2x1xf32>
    %278 = arith.addf %174, %248 : vector<2x32xf32>
    %279 = math.tanh %278 : vector<2x32xf32>
    %cst_57 = arith.constant dense<0.000000e+00> : vector<2x41xf32>
    %280 = tpu.matmul %279, %5, %cst_57 {dimension_numbers = #tpu.dot_dimension_numbers<[1], [0], [0], [1], [0, 0, 1, 1], [], []>} : vector<2x32xf32>, vector<32x41xf32>, vector<2x41xf32> -> vector<2x41xf32>
    %281 = vector.extract_strided_slice %280 {offsets = [0, 0], sizes = [2, 32], strides = [1, 1]} : vector<2x41xf32> to vector<2x32xf32>
    %282 = vector.extract_strided_slice %280 {offsets = [0, 32], sizes = [2, 9], strides = [1, 1]} : vector<2x41xf32> to vector<2x9xf32>
    %283 = vector.broadcast %6 : vector<1x9xf32> to vector<2x9xf32>
    %284 = arith.addf %282, %283 : vector<2x9xf32>
    %285 = vector.extract_strided_slice %284 {offsets = [0, 1], sizes = [2, 8], strides = [1, 1]} : vector<2x9xf32> to vector<2x8xf32>
    %286 = vector.extract_strided_slice %284 {offsets = [0, 0], sizes = [2, 1], strides = [1, 1]} : vector<2x9xf32> to vector<2x1xf32>
    %287 = arith.negf %286 : vector<2x1xf32>
    %288 = math.exp %287 : vector<2x1xf32>
    %cst_58 = arith.constant 1.000000e+00 : f32
    %289 = vector.broadcast %cst_58 : f32 to vector<2x1xf32>
    %290 = arith.addf %289, %288 : vector<2x1xf32>
    %291 = arith.divf %289, %290 : vector<2x1xf32>
    %292 = arith.addf %259, %291 : vector<2x1xf32>
    %cst_59 = arith.constant 9.900000e-01 : f32
    %293 = vector.broadcast %cst_59 : f32 to vector<2x1xf32>
    %294 = arith.cmpf oge, %292, %293 : vector<2x1xf32>
    %295 = arith.select %294, %274, %291 : vector<2x1xi1>, vector<2x1xf32>
    %296 = vector.broadcast %295 : vector<2x1xf32> to vector<2x8xf32>
    %297 = arith.mulf %296, %285 : vector<2x8xf32>
    %298 = arith.addf %265, %297 : vector<2x8xf32>
    %299 = vector.broadcast %295 : vector<2x1xf32> to vector<2x32xf32>
    %300 = arith.mulf %299, %281 : vector<2x32xf32>
    %301 = arith.addf %268, %300 : vector<2x32xf32>
    %cst_60 = arith.constant 1.000000e+00 : f32
    %302 = vector.broadcast %cst_60 : f32 to vector<2x1xf32>
    %303 = arith.addf %271, %302 : vector<2x1xf32>
    %304 = arith.select %294, %271, %303 : vector<2x1xi1>, vector<2x1xf32>
    %cst_61 = arith.constant 1.000000e+00 : f32
    %305 = vector.broadcast %cst_61 : f32 to vector<2x1xf32>
    %306 = arith.subf %305, %292 : vector<2x1xf32>
    %307 = arith.select %294, %15, %306 : vector<2x1xi1>, vector<2x1xf32>
    %308 = arith.select %294, %275, %307 : vector<2x1xi1>, vector<2x1xf32>
    %cst_62 = arith.constant 5.000000e+00 : f32
    %309 = vector.broadcast %cst_62 : f32 to vector<2x1xf32>
    %310 = arith.select %294, %277, %309 : vector<2x1xi1>, vector<2x1xf32>
    %311 = arith.addf %174, %281 : vector<2x32xf32>
    %312 = math.tanh %311 : vector<2x32xf32>
    %cst_63 = arith.constant dense<0.000000e+00> : vector<2x41xf32>
    %313 = tpu.matmul %312, %5, %cst_63 {dimension_numbers = #tpu.dot_dimension_numbers<[1], [0], [0], [1], [0, 0, 1, 1], [], []>} : vector<2x32xf32>, vector<32x41xf32>, vector<2x41xf32> -> vector<2x41xf32>
    %314 = vector.extract_strided_slice %313 {offsets = [0, 0], sizes = [2, 32], strides = [1, 1]} : vector<2x41xf32> to vector<2x32xf32>
    %315 = vector.extract_strided_slice %313 {offsets = [0, 32], sizes = [2, 9], strides = [1, 1]} : vector<2x41xf32> to vector<2x9xf32>
    %316 = vector.broadcast %6 : vector<1x9xf32> to vector<2x9xf32>
    %317 = arith.addf %315, %316 : vector<2x9xf32>
    %318 = vector.extract_strided_slice %317 {offsets = [0, 1], sizes = [2, 8], strides = [1, 1]} : vector<2x9xf32> to vector<2x8xf32>
    %319 = vector.broadcast %307 : vector<2x1xf32> to vector<2x8xf32>
    %320 = arith.mulf %319, %318 : vector<2x8xf32>
    %321 = arith.addf %298, %320 : vector<2x8xf32>
    %322 = vector.broadcast %307 : vector<2x1xf32> to vector<2x32xf32>
    %323 = arith.mulf %322, %314 : vector<2x32xf32>
    %324 = arith.addf %301, %323 : vector<2x32xf32>
    %325 = arith.addf %173, %308 : vector<2x1xf32>
    %326 = arith.addf %325, %310 : vector<2x1xf32>
    %327 = vector.extract_strided_slice %10 {offsets = [4, 0], sizes = [2, 32], strides = [1, 1]} : vector<16x32xf32> to vector<2x32xf32>
    %328 = vector.broadcast %3 : vector<1x32xf32> to vector<2x32xf32>
    %329 = arith.addf %327, %328 : vector<2x32xf32>
    %cst_64 = arith.constant 1.000000e+00 : f32
    %330 = vector.broadcast %cst_64 : f32 to vector<2x1xf32>
    %331 = arith.addf %304, %330 : vector<2x1xf32>
    %332 = arith.addf %329, %324 : vector<2x32xf32>
    %333 = math.tanh %332 : vector<2x32xf32>
    %cst_65 = arith.constant dense<0.000000e+00> : vector<2x41xf32>
    %334 = tpu.matmul %333, %5, %cst_65 {dimension_numbers = #tpu.dot_dimension_numbers<[1], [0], [0], [1], [0, 0, 1, 1], [], []>} : vector<2x32xf32>, vector<32x41xf32>, vector<2x41xf32> -> vector<2x41xf32>
    %335 = vector.extract_strided_slice %334 {offsets = [0, 0], sizes = [2, 32], strides = [1, 1]} : vector<2x41xf32> to vector<2x32xf32>
    %336 = vector.extract_strided_slice %334 {offsets = [0, 32], sizes = [2, 9], strides = [1, 1]} : vector<2x41xf32> to vector<2x9xf32>
    %337 = vector.broadcast %6 : vector<1x9xf32> to vector<2x9xf32>
    %338 = arith.addf %336, %337 : vector<2x9xf32>
    %339 = vector.extract_strided_slice %338 {offsets = [0, 1], sizes = [2, 8], strides = [1, 1]} : vector<2x9xf32> to vector<2x8xf32>
    %340 = vector.extract_strided_slice %338 {offsets = [0, 0], sizes = [2, 1], strides = [1, 1]} : vector<2x9xf32> to vector<2x1xf32>
    %341 = arith.negf %340 : vector<2x1xf32>
    %342 = math.exp %341 : vector<2x1xf32>
    %cst_66 = arith.constant 1.000000e+00 : f32
    %343 = vector.broadcast %cst_66 : f32 to vector<2x1xf32>
    %344 = arith.addf %343, %342 : vector<2x1xf32>
    %345 = arith.divf %343, %344 : vector<2x1xf32>
    %346 = arith.addf %15, %345 : vector<2x1xf32>
    %cst_67 = arith.constant 9.900000e-01 : f32
    %347 = vector.broadcast %cst_67 : f32 to vector<2x1xf32>
    %348 = arith.cmpf oge, %346, %347 : vector<2x1xf32>
    %349 = arith.select %348, %16, %345 : vector<2x1xi1>, vector<2x1xf32>
    %350 = vector.broadcast %349 : vector<2x1xf32> to vector<2x8xf32>
    %351 = arith.mulf %350, %339 : vector<2x8xf32>
    %352 = arith.addf %17, %351 : vector<2x8xf32>
    %353 = vector.broadcast %349 : vector<2x1xf32> to vector<2x32xf32>
    %354 = arith.mulf %353, %335 : vector<2x32xf32>
    %355 = arith.addf %18, %354 : vector<2x32xf32>
    %cst_68 = arith.constant 1.000000e+00 : f32
    %356 = vector.broadcast %cst_68 : f32 to vector<2x1xf32>
    %357 = arith.addf %331, %356 : vector<2x1xf32>
    %358 = arith.select %348, %331, %357 : vector<2x1xi1>, vector<2x1xf32>
    %cst_69 = arith.constant 1.000000e+00 : f32
    %359 = vector.broadcast %cst_69 : f32 to vector<2x1xf32>
    %360 = arith.subf %359, %346 : vector<2x1xf32>
    %361 = arith.select %348, %15, %360 : vector<2x1xi1>, vector<2x1xf32>
    %362 = arith.select %348, %16, %361 : vector<2x1xi1>, vector<2x1xf32>
    %cst_70 = arith.constant 2.000000e+00 : f32
    %363 = vector.broadcast %cst_70 : f32 to vector<2x1xf32>
    %364 = arith.select %348, %15, %363 : vector<2x1xi1>, vector<2x1xf32>
    %365 = arith.addf %327, %335 : vector<2x32xf32>
    %366 = math.tanh %365 : vector<2x32xf32>
    %cst_71 = arith.constant dense<0.000000e+00> : vector<2x41xf32>
    %367 = tpu.matmul %366, %5, %cst_71 {dimension_numbers = #tpu.dot_dimension_numbers<[1], [0], [0], [1], [0, 0, 1, 1], [], []>} : vector<2x32xf32>, vector<32x41xf32>, vector<2x41xf32> -> vector<2x41xf32>
    %368 = vector.extract_strided_slice %367 {offsets = [0, 0], sizes = [2, 32], strides = [1, 1]} : vector<2x41xf32> to vector<2x32xf32>
    %369 = vector.extract_strided_slice %367 {offsets = [0, 32], sizes = [2, 9], strides = [1, 1]} : vector<2x41xf32> to vector<2x9xf32>
    %370 = vector.broadcast %6 : vector<1x9xf32> to vector<2x9xf32>
    %371 = arith.addf %369, %370 : vector<2x9xf32>
    %372 = vector.extract_strided_slice %371 {offsets = [0, 1], sizes = [2, 8], strides = [1, 1]} : vector<2x9xf32> to vector<2x8xf32>
    %373 = vector.extract_strided_slice %371 {offsets = [0, 0], sizes = [2, 1], strides = [1, 1]} : vector<2x9xf32> to vector<2x1xf32>
    %374 = arith.negf %373 : vector<2x1xf32>
    %375 = math.exp %374 : vector<2x1xf32>
    %cst_72 = arith.constant 1.000000e+00 : f32
    %376 = vector.broadcast %cst_72 : f32 to vector<2x1xf32>
    %377 = arith.addf %376, %375 : vector<2x1xf32>
    %378 = arith.divf %376, %377 : vector<2x1xf32>
    %379 = arith.addf %346, %378 : vector<2x1xf32>
    %cst_73 = arith.constant 9.900000e-01 : f32
    %380 = vector.broadcast %cst_73 : f32 to vector<2x1xf32>
    %381 = arith.cmpf oge, %379, %380 : vector<2x1xf32>
    %382 = arith.select %381, %361, %378 : vector<2x1xi1>, vector<2x1xf32>
    %383 = vector.broadcast %382 : vector<2x1xf32> to vector<2x8xf32>
    %384 = arith.mulf %383, %372 : vector<2x8xf32>
    %385 = arith.addf %352, %384 : vector<2x8xf32>
    %386 = vector.broadcast %382 : vector<2x1xf32> to vector<2x32xf32>
    %387 = arith.mulf %386, %368 : vector<2x32xf32>
    %388 = arith.addf %355, %387 : vector<2x32xf32>
    %cst_74 = arith.constant 1.000000e+00 : f32
    %389 = vector.broadcast %cst_74 : f32 to vector<2x1xf32>
    %390 = arith.addf %358, %389 : vector<2x1xf32>
    %391 = arith.select %381, %358, %390 : vector<2x1xi1>, vector<2x1xf32>
    %cst_75 = arith.constant 1.000000e+00 : f32
    %392 = vector.broadcast %cst_75 : f32 to vector<2x1xf32>
    %393 = arith.subf %392, %379 : vector<2x1xf32>
    %394 = arith.select %381, %15, %393 : vector<2x1xi1>, vector<2x1xf32>
    %395 = arith.select %381, %362, %394 : vector<2x1xi1>, vector<2x1xf32>
    %cst_76 = arith.constant 3.000000e+00 : f32
    %396 = vector.broadcast %cst_76 : f32 to vector<2x1xf32>
    %397 = arith.select %381, %364, %396 : vector<2x1xi1>, vector<2x1xf32>
    %398 = arith.addf %327, %368 : vector<2x32xf32>
    %399 = math.tanh %398 : vector<2x32xf32>
    %cst_77 = arith.constant dense<0.000000e+00> : vector<2x41xf32>
    %400 = tpu.matmul %399, %5, %cst_77 {dimension_numbers = #tpu.dot_dimension_numbers<[1], [0], [0], [1], [0, 0, 1, 1], [], []>} : vector<2x32xf32>, vector<32x41xf32>, vector<2x41xf32> -> vector<2x41xf32>
    %401 = vector.extract_strided_slice %400 {offsets = [0, 0], sizes = [2, 32], strides = [1, 1]} : vector<2x41xf32> to vector<2x32xf32>
    %402 = vector.extract_strided_slice %400 {offsets = [0, 32], sizes = [2, 9], strides = [1, 1]} : vector<2x41xf32> to vector<2x9xf32>
    %403 = vector.broadcast %6 : vector<1x9xf32> to vector<2x9xf32>
    %404 = arith.addf %402, %403 : vector<2x9xf32>
    %405 = vector.extract_strided_slice %404 {offsets = [0, 1], sizes = [2, 8], strides = [1, 1]} : vector<2x9xf32> to vector<2x8xf32>
    %406 = vector.extract_strided_slice %404 {offsets = [0, 0], sizes = [2, 1], strides = [1, 1]} : vector<2x9xf32> to vector<2x1xf32>
    %407 = arith.negf %406 : vector<2x1xf32>
    %408 = math.exp %407 : vector<2x1xf32>
    %cst_78 = arith.constant 1.000000e+00 : f32
    %409 = vector.broadcast %cst_78 : f32 to vector<2x1xf32>
    %410 = arith.addf %409, %408 : vector<2x1xf32>
    %411 = arith.divf %409, %410 : vector<2x1xf32>
    %412 = arith.addf %379, %411 : vector<2x1xf32>
    %cst_79 = arith.constant 9.900000e-01 : f32
    %413 = vector.broadcast %cst_79 : f32 to vector<2x1xf32>
    %414 = arith.cmpf oge, %412, %413 : vector<2x1xf32>
    %415 = arith.select %414, %394, %411 : vector<2x1xi1>, vector<2x1xf32>
    %416 = vector.broadcast %415 : vector<2x1xf32> to vector<2x8xf32>
    %417 = arith.mulf %416, %405 : vector<2x8xf32>
    %418 = arith.addf %385, %417 : vector<2x8xf32>
    %419 = vector.broadcast %415 : vector<2x1xf32> to vector<2x32xf32>
    %420 = arith.mulf %419, %401 : vector<2x32xf32>
    %421 = arith.addf %388, %420 : vector<2x32xf32>
    %cst_80 = arith.constant 1.000000e+00 : f32
    %422 = vector.broadcast %cst_80 : f32 to vector<2x1xf32>
    %423 = arith.addf %391, %422 : vector<2x1xf32>
    %424 = arith.select %414, %391, %423 : vector<2x1xi1>, vector<2x1xf32>
    %cst_81 = arith.constant 1.000000e+00 : f32
    %425 = vector.broadcast %cst_81 : f32 to vector<2x1xf32>
    %426 = arith.subf %425, %412 : vector<2x1xf32>
    %427 = arith.select %414, %15, %426 : vector<2x1xi1>, vector<2x1xf32>
    %428 = arith.select %414, %395, %427 : vector<2x1xi1>, vector<2x1xf32>
    %cst_82 = arith.constant 4.000000e+00 : f32
    %429 = vector.broadcast %cst_82 : f32 to vector<2x1xf32>
    %430 = arith.select %414, %397, %429 : vector<2x1xi1>, vector<2x1xf32>
    %431 = arith.addf %327, %401 : vector<2x32xf32>
    %432 = math.tanh %431 : vector<2x32xf32>
    %cst_83 = arith.constant dense<0.000000e+00> : vector<2x41xf32>
    %433 = tpu.matmul %432, %5, %cst_83 {dimension_numbers = #tpu.dot_dimension_numbers<[1], [0], [0], [1], [0, 0, 1, 1], [], []>} : vector<2x32xf32>, vector<32x41xf32>, vector<2x41xf32> -> vector<2x41xf32>
    %434 = vector.extract_strided_slice %433 {offsets = [0, 0], sizes = [2, 32], strides = [1, 1]} : vector<2x41xf32> to vector<2x32xf32>
    %435 = vector.extract_strided_slice %433 {offsets = [0, 32], sizes = [2, 9], strides = [1, 1]} : vector<2x41xf32> to vector<2x9xf32>
    %436 = vector.broadcast %6 : vector<1x9xf32> to vector<2x9xf32>
    %437 = arith.addf %435, %436 : vector<2x9xf32>
    %438 = vector.extract_strided_slice %437 {offsets = [0, 1], sizes = [2, 8], strides = [1, 1]} : vector<2x9xf32> to vector<2x8xf32>
    %439 = vector.extract_strided_slice %437 {offsets = [0, 0], sizes = [2, 1], strides = [1, 1]} : vector<2x9xf32> to vector<2x1xf32>
    %440 = arith.negf %439 : vector<2x1xf32>
    %441 = math.exp %440 : vector<2x1xf32>
    %cst_84 = arith.constant 1.000000e+00 : f32
    %442 = vector.broadcast %cst_84 : f32 to vector<2x1xf32>
    %443 = arith.addf %442, %441 : vector<2x1xf32>
    %444 = arith.divf %442, %443 : vector<2x1xf32>
    %445 = arith.addf %412, %444 : vector<2x1xf32>
    %cst_85 = arith.constant 9.900000e-01 : f32
    %446 = vector.broadcast %cst_85 : f32 to vector<2x1xf32>
    %447 = arith.cmpf oge, %445, %446 : vector<2x1xf32>
    %448 = arith.select %447, %427, %444 : vector<2x1xi1>, vector<2x1xf32>
    %449 = vector.broadcast %448 : vector<2x1xf32> to vector<2x8xf32>
    %450 = arith.mulf %449, %438 : vector<2x8xf32>
    %451 = arith.addf %418, %450 : vector<2x8xf32>
    %452 = vector.broadcast %448 : vector<2x1xf32> to vector<2x32xf32>
    %453 = arith.mulf %452, %434 : vector<2x32xf32>
    %454 = arith.addf %421, %453 : vector<2x32xf32>
    %cst_86 = arith.constant 1.000000e+00 : f32
    %455 = vector.broadcast %cst_86 : f32 to vector<2x1xf32>
    %456 = arith.addf %424, %455 : vector<2x1xf32>
    %457 = arith.select %447, %424, %456 : vector<2x1xi1>, vector<2x1xf32>
    %cst_87 = arith.constant 1.000000e+00 : f32
    %458 = vector.broadcast %cst_87 : f32 to vector<2x1xf32>
    %459 = arith.subf %458, %445 : vector<2x1xf32>
    %460 = arith.select %447, %15, %459 : vector<2x1xi1>, vector<2x1xf32>
    %461 = arith.select %447, %428, %460 : vector<2x1xi1>, vector<2x1xf32>
    %cst_88 = arith.constant 5.000000e+00 : f32
    %462 = vector.broadcast %cst_88 : f32 to vector<2x1xf32>
    %463 = arith.select %447, %430, %462 : vector<2x1xi1>, vector<2x1xf32>
    %464 = arith.addf %327, %434 : vector<2x32xf32>
    %465 = math.tanh %464 : vector<2x32xf32>
    %cst_89 = arith.constant dense<0.000000e+00> : vector<2x41xf32>
    %466 = tpu.matmul %465, %5, %cst_89 {dimension_numbers = #tpu.dot_dimension_numbers<[1], [0], [0], [1], [0, 0, 1, 1], [], []>} : vector<2x32xf32>, vector<32x41xf32>, vector<2x41xf32> -> vector<2x41xf32>
    %467 = vector.extract_strided_slice %466 {offsets = [0, 0], sizes = [2, 32], strides = [1, 1]} : vector<2x41xf32> to vector<2x32xf32>
    %468 = vector.extract_strided_slice %466 {offsets = [0, 32], sizes = [2, 9], strides = [1, 1]} : vector<2x41xf32> to vector<2x9xf32>
    %469 = vector.broadcast %6 : vector<1x9xf32> to vector<2x9xf32>
    %470 = arith.addf %468, %469 : vector<2x9xf32>
    %471 = vector.extract_strided_slice %470 {offsets = [0, 1], sizes = [2, 8], strides = [1, 1]} : vector<2x9xf32> to vector<2x8xf32>
    %472 = vector.broadcast %460 : vector<2x1xf32> to vector<2x8xf32>
    %473 = arith.mulf %472, %471 : vector<2x8xf32>
    %474 = arith.addf %451, %473 : vector<2x8xf32>
    %475 = vector.broadcast %460 : vector<2x1xf32> to vector<2x32xf32>
    %476 = arith.mulf %475, %467 : vector<2x32xf32>
    %477 = arith.addf %454, %476 : vector<2x32xf32>
    %478 = arith.addf %326, %461 : vector<2x1xf32>
    %479 = arith.addf %478, %463 : vector<2x1xf32>
    %480 = vector.extract_strided_slice %10 {offsets = [6, 0], sizes = [2, 32], strides = [1, 1]} : vector<16x32xf32> to vector<2x32xf32>
    %481 = vector.broadcast %3 : vector<1x32xf32> to vector<2x32xf32>
    %482 = arith.addf %480, %481 : vector<2x32xf32>
    %cst_90 = arith.constant 1.000000e+00 : f32
    %483 = vector.broadcast %cst_90 : f32 to vector<2x1xf32>
    %484 = arith.addf %457, %483 : vector<2x1xf32>
    %485 = arith.addf %482, %477 : vector<2x32xf32>
    %486 = math.tanh %485 : vector<2x32xf32>
    %cst_91 = arith.constant dense<0.000000e+00> : vector<2x41xf32>
    %487 = tpu.matmul %486, %5, %cst_91 {dimension_numbers = #tpu.dot_dimension_numbers<[1], [0], [0], [1], [0, 0, 1, 1], [], []>} : vector<2x32xf32>, vector<32x41xf32>, vector<2x41xf32> -> vector<2x41xf32>
    %488 = vector.extract_strided_slice %487 {offsets = [0, 0], sizes = [2, 32], strides = [1, 1]} : vector<2x41xf32> to vector<2x32xf32>
    %489 = vector.extract_strided_slice %487 {offsets = [0, 32], sizes = [2, 9], strides = [1, 1]} : vector<2x41xf32> to vector<2x9xf32>
    %490 = vector.broadcast %6 : vector<1x9xf32> to vector<2x9xf32>
    %491 = arith.addf %489, %490 : vector<2x9xf32>
    %492 = vector.extract_strided_slice %491 {offsets = [0, 1], sizes = [2, 8], strides = [1, 1]} : vector<2x9xf32> to vector<2x8xf32>
    %493 = vector.extract_strided_slice %491 {offsets = [0, 0], sizes = [2, 1], strides = [1, 1]} : vector<2x9xf32> to vector<2x1xf32>
    %494 = arith.negf %493 : vector<2x1xf32>
    %495 = math.exp %494 : vector<2x1xf32>
    %cst_92 = arith.constant 1.000000e+00 : f32
    %496 = vector.broadcast %cst_92 : f32 to vector<2x1xf32>
    %497 = arith.addf %496, %495 : vector<2x1xf32>
    %498 = arith.divf %496, %497 : vector<2x1xf32>
    %499 = arith.addf %15, %498 : vector<2x1xf32>
    %cst_93 = arith.constant 9.900000e-01 : f32
    %500 = vector.broadcast %cst_93 : f32 to vector<2x1xf32>
    %501 = arith.cmpf oge, %499, %500 : vector<2x1xf32>
    %502 = arith.select %501, %16, %498 : vector<2x1xi1>, vector<2x1xf32>
    %503 = vector.broadcast %502 : vector<2x1xf32> to vector<2x8xf32>
    %504 = arith.mulf %503, %492 : vector<2x8xf32>
    %505 = arith.addf %17, %504 : vector<2x8xf32>
    %506 = vector.broadcast %502 : vector<2x1xf32> to vector<2x32xf32>
    %507 = arith.mulf %506, %488 : vector<2x32xf32>
    %508 = arith.addf %18, %507 : vector<2x32xf32>
    %cst_94 = arith.constant 1.000000e+00 : f32
    %509 = vector.broadcast %cst_94 : f32 to vector<2x1xf32>
    %510 = arith.addf %484, %509 : vector<2x1xf32>
    %511 = arith.select %501, %484, %510 : vector<2x1xi1>, vector<2x1xf32>
    %cst_95 = arith.constant 1.000000e+00 : f32
    %512 = vector.broadcast %cst_95 : f32 to vector<2x1xf32>
    %513 = arith.subf %512, %499 : vector<2x1xf32>
    %514 = arith.select %501, %15, %513 : vector<2x1xi1>, vector<2x1xf32>
    %515 = arith.select %501, %16, %514 : vector<2x1xi1>, vector<2x1xf32>
    %cst_96 = arith.constant 2.000000e+00 : f32
    %516 = vector.broadcast %cst_96 : f32 to vector<2x1xf32>
    %517 = arith.select %501, %15, %516 : vector<2x1xi1>, vector<2x1xf32>
    %518 = arith.addf %480, %488 : vector<2x32xf32>
    %519 = math.tanh %518 : vector<2x32xf32>
    %cst_97 = arith.constant dense<0.000000e+00> : vector<2x41xf32>
    %520 = tpu.matmul %519, %5, %cst_97 {dimension_numbers = #tpu.dot_dimension_numbers<[1], [0], [0], [1], [0, 0, 1, 1], [], []>} : vector<2x32xf32>, vector<32x41xf32>, vector<2x41xf32> -> vector<2x41xf32>
    %521 = vector.extract_strided_slice %520 {offsets = [0, 0], sizes = [2, 32], strides = [1, 1]} : vector<2x41xf32> to vector<2x32xf32>
    %522 = vector.extract_strided_slice %520 {offsets = [0, 32], sizes = [2, 9], strides = [1, 1]} : vector<2x41xf32> to vector<2x9xf32>
    %523 = vector.broadcast %6 : vector<1x9xf32> to vector<2x9xf32>
    %524 = arith.addf %522, %523 : vector<2x9xf32>
    %525 = vector.extract_strided_slice %524 {offsets = [0, 1], sizes = [2, 8], strides = [1, 1]} : vector<2x9xf32> to vector<2x8xf32>
    %526 = vector.extract_strided_slice %524 {offsets = [0, 0], sizes = [2, 1], strides = [1, 1]} : vector<2x9xf32> to vector<2x1xf32>
    %527 = arith.negf %526 : vector<2x1xf32>
    %528 = math.exp %527 : vector<2x1xf32>
    %cst_98 = arith.constant 1.000000e+00 : f32
    %529 = vector.broadcast %cst_98 : f32 to vector<2x1xf32>
    %530 = arith.addf %529, %528 : vector<2x1xf32>
    %531 = arith.divf %529, %530 : vector<2x1xf32>
    %532 = arith.addf %499, %531 : vector<2x1xf32>
    %cst_99 = arith.constant 9.900000e-01 : f32
    %533 = vector.broadcast %cst_99 : f32 to vector<2x1xf32>
    %534 = arith.cmpf oge, %532, %533 : vector<2x1xf32>
    %535 = arith.select %534, %514, %531 : vector<2x1xi1>, vector<2x1xf32>
    %536 = vector.broadcast %535 : vector<2x1xf32> to vector<2x8xf32>
    %537 = arith.mulf %536, %525 : vector<2x8xf32>
    %538 = arith.addf %505, %537 : vector<2x8xf32>
    %539 = vector.broadcast %535 : vector<2x1xf32> to vector<2x32xf32>
    %540 = arith.mulf %539, %521 : vector<2x32xf32>
    %541 = arith.addf %508, %540 : vector<2x32xf32>
    %cst_100 = arith.constant 1.000000e+00 : f32
    %542 = vector.broadcast %cst_100 : f32 to vector<2x1xf32>
    %543 = arith.addf %511, %542 : vector<2x1xf32>
    %544 = arith.select %534, %511, %543 : vector<2x1xi1>, vector<2x1xf32>
    %cst_101 = arith.constant 1.000000e+00 : f32
    %545 = vector.broadcast %cst_101 : f32 to vector<2x1xf32>
    %546 = arith.subf %545, %532 : vector<2x1xf32>
    %547 = arith.select %534, %15, %546 : vector<2x1xi1>, vector<2x1xf32>
    %548 = arith.select %534, %515, %547 : vector<2x1xi1>, vector<2x1xf32>
    %cst_102 = arith.constant 3.000000e+00 : f32
    %549 = vector.broadcast %cst_102 : f32 to vector<2x1xf32>
    %550 = arith.select %534, %517, %549 : vector<2x1xi1>, vector<2x1xf32>
    %551 = arith.addf %480, %521 : vector<2x32xf32>
    %552 = math.tanh %551 : vector<2x32xf32>
    %cst_103 = arith.constant dense<0.000000e+00> : vector<2x41xf32>
    %553 = tpu.matmul %552, %5, %cst_103 {dimension_numbers = #tpu.dot_dimension_numbers<[1], [0], [0], [1], [0, 0, 1, 1], [], []>} : vector<2x32xf32>, vector<32x41xf32>, vector<2x41xf32> -> vector<2x41xf32>
    %554 = vector.extract_strided_slice %553 {offsets = [0, 0], sizes = [2, 32], strides = [1, 1]} : vector<2x41xf32> to vector<2x32xf32>
    %555 = vector.extract_strided_slice %553 {offsets = [0, 32], sizes = [2, 9], strides = [1, 1]} : vector<2x41xf32> to vector<2x9xf32>
    %556 = vector.broadcast %6 : vector<1x9xf32> to vector<2x9xf32>
    %557 = arith.addf %555, %556 : vector<2x9xf32>
    %558 = vector.extract_strided_slice %557 {offsets = [0, 1], sizes = [2, 8], strides = [1, 1]} : vector<2x9xf32> to vector<2x8xf32>
    %559 = vector.extract_strided_slice %557 {offsets = [0, 0], sizes = [2, 1], strides = [1, 1]} : vector<2x9xf32> to vector<2x1xf32>
    %560 = arith.negf %559 : vector<2x1xf32>
    %561 = math.exp %560 : vector<2x1xf32>
    %cst_104 = arith.constant 1.000000e+00 : f32
    %562 = vector.broadcast %cst_104 : f32 to vector<2x1xf32>
    %563 = arith.addf %562, %561 : vector<2x1xf32>
    %564 = arith.divf %562, %563 : vector<2x1xf32>
    %565 = arith.addf %532, %564 : vector<2x1xf32>
    %cst_105 = arith.constant 9.900000e-01 : f32
    %566 = vector.broadcast %cst_105 : f32 to vector<2x1xf32>
    %567 = arith.cmpf oge, %565, %566 : vector<2x1xf32>
    %568 = arith.select %567, %547, %564 : vector<2x1xi1>, vector<2x1xf32>
    %569 = vector.broadcast %568 : vector<2x1xf32> to vector<2x8xf32>
    %570 = arith.mulf %569, %558 : vector<2x8xf32>
    %571 = arith.addf %538, %570 : vector<2x8xf32>
    %572 = vector.broadcast %568 : vector<2x1xf32> to vector<2x32xf32>
    %573 = arith.mulf %572, %554 : vector<2x32xf32>
    %574 = arith.addf %541, %573 : vector<2x32xf32>
    %cst_106 = arith.constant 1.000000e+00 : f32
    %575 = vector.broadcast %cst_106 : f32 to vector<2x1xf32>
    %576 = arith.addf %544, %575 : vector<2x1xf32>
    %577 = arith.select %567, %544, %576 : vector<2x1xi1>, vector<2x1xf32>
    %cst_107 = arith.constant 1.000000e+00 : f32
    %578 = vector.broadcast %cst_107 : f32 to vector<2x1xf32>
    %579 = arith.subf %578, %565 : vector<2x1xf32>
    %580 = arith.select %567, %15, %579 : vector<2x1xi1>, vector<2x1xf32>
    %581 = arith.select %567, %548, %580 : vector<2x1xi1>, vector<2x1xf32>
    %cst_108 = arith.constant 4.000000e+00 : f32
    %582 = vector.broadcast %cst_108 : f32 to vector<2x1xf32>
    %583 = arith.select %567, %550, %582 : vector<2x1xi1>, vector<2x1xf32>
    %584 = arith.addf %480, %554 : vector<2x32xf32>
    %585 = math.tanh %584 : vector<2x32xf32>
    %cst_109 = arith.constant dense<0.000000e+00> : vector<2x41xf32>
    %586 = tpu.matmul %585, %5, %cst_109 {dimension_numbers = #tpu.dot_dimension_numbers<[1], [0], [0], [1], [0, 0, 1, 1], [], []>} : vector<2x32xf32>, vector<32x41xf32>, vector<2x41xf32> -> vector<2x41xf32>
    %587 = vector.extract_strided_slice %586 {offsets = [0, 0], sizes = [2, 32], strides = [1, 1]} : vector<2x41xf32> to vector<2x32xf32>
    %588 = vector.extract_strided_slice %586 {offsets = [0, 32], sizes = [2, 9], strides = [1, 1]} : vector<2x41xf32> to vector<2x9xf32>
    %589 = vector.broadcast %6 : vector<1x9xf32> to vector<2x9xf32>
    %590 = arith.addf %588, %589 : vector<2x9xf32>
    %591 = vector.extract_strided_slice %590 {offsets = [0, 1], sizes = [2, 8], strides = [1, 1]} : vector<2x9xf32> to vector<2x8xf32>
    %592 = vector.extract_strided_slice %590 {offsets = [0, 0], sizes = [2, 1], strides = [1, 1]} : vector<2x9xf32> to vector<2x1xf32>
    %593 = arith.negf %592 : vector<2x1xf32>
    %594 = math.exp %593 : vector<2x1xf32>
    %cst_110 = arith.constant 1.000000e+00 : f32
    %595 = vector.broadcast %cst_110 : f32 to vector<2x1xf32>
    %596 = arith.addf %595, %594 : vector<2x1xf32>
    %597 = arith.divf %595, %596 : vector<2x1xf32>
    %598 = arith.addf %565, %597 : vector<2x1xf32>
    %cst_111 = arith.constant 9.900000e-01 : f32
    %599 = vector.broadcast %cst_111 : f32 to vector<2x1xf32>
    %600 = arith.cmpf oge, %598, %599 : vector<2x1xf32>
    %601 = arith.select %600, %580, %597 : vector<2x1xi1>, vector<2x1xf32>
    %602 = vector.broadcast %601 : vector<2x1xf32> to vector<2x8xf32>
    %603 = arith.mulf %602, %591 : vector<2x8xf32>
    %604 = arith.addf %571, %603 : vector<2x8xf32>
    %605 = vector.broadcast %601 : vector<2x1xf32> to vector<2x32xf32>
    %606 = arith.mulf %605, %587 : vector<2x32xf32>
    %607 = arith.addf %574, %606 : vector<2x32xf32>
    %cst_112 = arith.constant 1.000000e+00 : f32
    %608 = vector.broadcast %cst_112 : f32 to vector<2x1xf32>
    %609 = arith.addf %577, %608 : vector<2x1xf32>
    %610 = arith.select %600, %577, %609 : vector<2x1xi1>, vector<2x1xf32>
    %cst_113 = arith.constant 1.000000e+00 : f32
    %611 = vector.broadcast %cst_113 : f32 to vector<2x1xf32>
    %612 = arith.subf %611, %598 : vector<2x1xf32>
    %613 = arith.select %600, %15, %612 : vector<2x1xi1>, vector<2x1xf32>
    %614 = arith.select %600, %581, %613 : vector<2x1xi1>, vector<2x1xf32>
    %cst_114 = arith.constant 5.000000e+00 : f32
    %615 = vector.broadcast %cst_114 : f32 to vector<2x1xf32>
    %616 = arith.select %600, %583, %615 : vector<2x1xi1>, vector<2x1xf32>
    %617 = arith.addf %480, %587 : vector<2x32xf32>
    %618 = math.tanh %617 : vector<2x32xf32>
    %cst_115 = arith.constant dense<0.000000e+00> : vector<2x41xf32>
    %619 = tpu.matmul %618, %5, %cst_115 {dimension_numbers = #tpu.dot_dimension_numbers<[1], [0], [0], [1], [0, 0, 1, 1], [], []>} : vector<2x32xf32>, vector<32x41xf32>, vector<2x41xf32> -> vector<2x41xf32>
    %620 = vector.extract_strided_slice %619 {offsets = [0, 0], sizes = [2, 32], strides = [1, 1]} : vector<2x41xf32> to vector<2x32xf32>
    %621 = vector.extract_strided_slice %619 {offsets = [0, 32], sizes = [2, 9], strides = [1, 1]} : vector<2x41xf32> to vector<2x9xf32>
    %622 = vector.broadcast %6 : vector<1x9xf32> to vector<2x9xf32>
    %623 = arith.addf %621, %622 : vector<2x9xf32>
    %624 = vector.extract_strided_slice %623 {offsets = [0, 1], sizes = [2, 8], strides = [1, 1]} : vector<2x9xf32> to vector<2x8xf32>
    %625 = vector.broadcast %613 : vector<2x1xf32> to vector<2x8xf32>
    %626 = arith.mulf %625, %624 : vector<2x8xf32>
    %627 = arith.addf %604, %626 : vector<2x8xf32>
    %628 = vector.broadcast %613 : vector<2x1xf32> to vector<2x32xf32>
    %629 = arith.mulf %628, %620 : vector<2x32xf32>
    %630 = arith.addf %607, %629 : vector<2x32xf32>
    %631 = arith.addf %479, %614 : vector<2x1xf32>
    %632 = arith.addf %631, %616 : vector<2x1xf32>
    %633 = vector.extract_strided_slice %10 {offsets = [8, 0], sizes = [2, 32], strides = [1, 1]} : vector<16x32xf32> to vector<2x32xf32>
    %634 = vector.broadcast %3 : vector<1x32xf32> to vector<2x32xf32>
    %635 = arith.addf %633, %634 : vector<2x32xf32>
    %cst_116 = arith.constant 1.000000e+00 : f32
    %636 = vector.broadcast %cst_116 : f32 to vector<2x1xf32>
    %637 = arith.addf %610, %636 : vector<2x1xf32>
    %638 = arith.addf %635, %630 : vector<2x32xf32>
    %639 = math.tanh %638 : vector<2x32xf32>
    %cst_117 = arith.constant dense<0.000000e+00> : vector<2x41xf32>
    %640 = tpu.matmul %639, %5, %cst_117 {dimension_numbers = #tpu.dot_dimension_numbers<[1], [0], [0], [1], [0, 0, 1, 1], [], []>} : vector<2x32xf32>, vector<32x41xf32>, vector<2x41xf32> -> vector<2x41xf32>
    %641 = vector.extract_strided_slice %640 {offsets = [0, 0], sizes = [2, 32], strides = [1, 1]} : vector<2x41xf32> to vector<2x32xf32>
    %642 = vector.extract_strided_slice %640 {offsets = [0, 32], sizes = [2, 9], strides = [1, 1]} : vector<2x41xf32> to vector<2x9xf32>
    %643 = vector.broadcast %6 : vector<1x9xf32> to vector<2x9xf32>
    %644 = arith.addf %642, %643 : vector<2x9xf32>
    %645 = vector.extract_strided_slice %644 {offsets = [0, 1], sizes = [2, 8], strides = [1, 1]} : vector<2x9xf32> to vector<2x8xf32>
    %646 = vector.extract_strided_slice %644 {offsets = [0, 0], sizes = [2, 1], strides = [1, 1]} : vector<2x9xf32> to vector<2x1xf32>
    %647 = arith.negf %646 : vector<2x1xf32>
    %648 = math.exp %647 : vector<2x1xf32>
    %cst_118 = arith.constant 1.000000e+00 : f32
    %649 = vector.broadcast %cst_118 : f32 to vector<2x1xf32>
    %650 = arith.addf %649, %648 : vector<2x1xf32>
    %651 = arith.divf %649, %650 : vector<2x1xf32>
    %652 = arith.addf %15, %651 : vector<2x1xf32>
    %cst_119 = arith.constant 9.900000e-01 : f32
    %653 = vector.broadcast %cst_119 : f32 to vector<2x1xf32>
    %654 = arith.cmpf oge, %652, %653 : vector<2x1xf32>
    %655 = arith.select %654, %16, %651 : vector<2x1xi1>, vector<2x1xf32>
    %656 = vector.broadcast %655 : vector<2x1xf32> to vector<2x8xf32>
    %657 = arith.mulf %656, %645 : vector<2x8xf32>
    %658 = arith.addf %17, %657 : vector<2x8xf32>
    %659 = vector.broadcast %655 : vector<2x1xf32> to vector<2x32xf32>
    %660 = arith.mulf %659, %641 : vector<2x32xf32>
    %661 = arith.addf %18, %660 : vector<2x32xf32>
    %cst_120 = arith.constant 1.000000e+00 : f32
    %662 = vector.broadcast %cst_120 : f32 to vector<2x1xf32>
    %663 = arith.addf %637, %662 : vector<2x1xf32>
    %664 = arith.select %654, %637, %663 : vector<2x1xi1>, vector<2x1xf32>
    %cst_121 = arith.constant 1.000000e+00 : f32
    %665 = vector.broadcast %cst_121 : f32 to vector<2x1xf32>
    %666 = arith.subf %665, %652 : vector<2x1xf32>
    %667 = arith.select %654, %15, %666 : vector<2x1xi1>, vector<2x1xf32>
    %668 = arith.select %654, %16, %667 : vector<2x1xi1>, vector<2x1xf32>
    %cst_122 = arith.constant 2.000000e+00 : f32
    %669 = vector.broadcast %cst_122 : f32 to vector<2x1xf32>
    %670 = arith.select %654, %15, %669 : vector<2x1xi1>, vector<2x1xf32>
    %671 = arith.addf %633, %641 : vector<2x32xf32>
    %672 = math.tanh %671 : vector<2x32xf32>
    %cst_123 = arith.constant dense<0.000000e+00> : vector<2x41xf32>
    %673 = tpu.matmul %672, %5, %cst_123 {dimension_numbers = #tpu.dot_dimension_numbers<[1], [0], [0], [1], [0, 0, 1, 1], [], []>} : vector<2x32xf32>, vector<32x41xf32>, vector<2x41xf32> -> vector<2x41xf32>
    %674 = vector.extract_strided_slice %673 {offsets = [0, 0], sizes = [2, 32], strides = [1, 1]} : vector<2x41xf32> to vector<2x32xf32>
    %675 = vector.extract_strided_slice %673 {offsets = [0, 32], sizes = [2, 9], strides = [1, 1]} : vector<2x41xf32> to vector<2x9xf32>
    %676 = vector.broadcast %6 : vector<1x9xf32> to vector<2x9xf32>
    %677 = arith.addf %675, %676 : vector<2x9xf32>
    %678 = vector.extract_strided_slice %677 {offsets = [0, 1], sizes = [2, 8], strides = [1, 1]} : vector<2x9xf32> to vector<2x8xf32>
    %679 = vector.extract_strided_slice %677 {offsets = [0, 0], sizes = [2, 1], strides = [1, 1]} : vector<2x9xf32> to vector<2x1xf32>
    %680 = arith.negf %679 : vector<2x1xf32>
    %681 = math.exp %680 : vector<2x1xf32>
    %cst_124 = arith.constant 1.000000e+00 : f32
    %682 = vector.broadcast %cst_124 : f32 to vector<2x1xf32>
    %683 = arith.addf %682, %681 : vector<2x1xf32>
    %684 = arith.divf %682, %683 : vector<2x1xf32>
    %685 = arith.addf %652, %684 : vector<2x1xf32>
    %cst_125 = arith.constant 9.900000e-01 : f32
    %686 = vector.broadcast %cst_125 : f32 to vector<2x1xf32>
    %687 = arith.cmpf oge, %685, %686 : vector<2x1xf32>
    %688 = arith.select %687, %667, %684 : vector<2x1xi1>, vector<2x1xf32>
    %689 = vector.broadcast %688 : vector<2x1xf32> to vector<2x8xf32>
    %690 = arith.mulf %689, %678 : vector<2x8xf32>
    %691 = arith.addf %658, %690 : vector<2x8xf32>
    %692 = vector.broadcast %688 : vector<2x1xf32> to vector<2x32xf32>
    %693 = arith.mulf %692, %674 : vector<2x32xf32>
    %694 = arith.addf %661, %693 : vector<2x32xf32>
    %cst_126 = arith.constant 1.000000e+00 : f32
    %695 = vector.broadcast %cst_126 : f32 to vector<2x1xf32>
    %696 = arith.addf %664, %695 : vector<2x1xf32>
    %697 = arith.select %687, %664, %696 : vector<2x1xi1>, vector<2x1xf32>
    %cst_127 = arith.constant 1.000000e+00 : f32
    %698 = vector.broadcast %cst_127 : f32 to vector<2x1xf32>
    %699 = arith.subf %698, %685 : vector<2x1xf32>
    %700 = arith.select %687, %15, %699 : vector<2x1xi1>, vector<2x1xf32>
    %701 = arith.select %687, %668, %700 : vector<2x1xi1>, vector<2x1xf32>
    %cst_128 = arith.constant 3.000000e+00 : f32
    %702 = vector.broadcast %cst_128 : f32 to vector<2x1xf32>
    %703 = arith.select %687, %670, %702 : vector<2x1xi1>, vector<2x1xf32>
    %704 = arith.addf %633, %674 : vector<2x32xf32>
    %705 = math.tanh %704 : vector<2x32xf32>
    %cst_129 = arith.constant dense<0.000000e+00> : vector<2x41xf32>
    %706 = tpu.matmul %705, %5, %cst_129 {dimension_numbers = #tpu.dot_dimension_numbers<[1], [0], [0], [1], [0, 0, 1, 1], [], []>} : vector<2x32xf32>, vector<32x41xf32>, vector<2x41xf32> -> vector<2x41xf32>
    %707 = vector.extract_strided_slice %706 {offsets = [0, 0], sizes = [2, 32], strides = [1, 1]} : vector<2x41xf32> to vector<2x32xf32>
    %708 = vector.extract_strided_slice %706 {offsets = [0, 32], sizes = [2, 9], strides = [1, 1]} : vector<2x41xf32> to vector<2x9xf32>
    %709 = vector.broadcast %6 : vector<1x9xf32> to vector<2x9xf32>
    %710 = arith.addf %708, %709 : vector<2x9xf32>
    %711 = vector.extract_strided_slice %710 {offsets = [0, 1], sizes = [2, 8], strides = [1, 1]} : vector<2x9xf32> to vector<2x8xf32>
    %712 = vector.extract_strided_slice %710 {offsets = [0, 0], sizes = [2, 1], strides = [1, 1]} : vector<2x9xf32> to vector<2x1xf32>
    %713 = arith.negf %712 : vector<2x1xf32>
    %714 = math.exp %713 : vector<2x1xf32>
    %cst_130 = arith.constant 1.000000e+00 : f32
    %715 = vector.broadcast %cst_130 : f32 to vector<2x1xf32>
    %716 = arith.addf %715, %714 : vector<2x1xf32>
    %717 = arith.divf %715, %716 : vector<2x1xf32>
    %718 = arith.addf %685, %717 : vector<2x1xf32>
    %cst_131 = arith.constant 9.900000e-01 : f32
    %719 = vector.broadcast %cst_131 : f32 to vector<2x1xf32>
    %720 = arith.cmpf oge, %718, %719 : vector<2x1xf32>
    %721 = arith.select %720, %700, %717 : vector<2x1xi1>, vector<2x1xf32>
    %722 = vector.broadcast %721 : vector<2x1xf32> to vector<2x8xf32>
    %723 = arith.mulf %722, %711 : vector<2x8xf32>
    %724 = arith.addf %691, %723 : vector<2x8xf32>
    %725 = vector.broadcast %721 : vector<2x1xf32> to vector<2x32xf32>
    %726 = arith.mulf %725, %707 : vector<2x32xf32>
    %727 = arith.addf %694, %726 : vector<2x32xf32>
    %cst_132 = arith.constant 1.000000e+00 : f32
    %728 = vector.broadcast %cst_132 : f32 to vector<2x1xf32>
    %729 = arith.addf %697, %728 : vector<2x1xf32>
    %730 = arith.select %720, %697, %729 : vector<2x1xi1>, vector<2x1xf32>
    %cst_133 = arith.constant 1.000000e+00 : f32
    %731 = vector.broadcast %cst_133 : f32 to vector<2x1xf32>
    %732 = arith.subf %731, %718 : vector<2x1xf32>
    %733 = arith.select %720, %15, %732 : vector<2x1xi1>, vector<2x1xf32>
    %734 = arith.select %720, %701, %733 : vector<2x1xi1>, vector<2x1xf32>
    %cst_134 = arith.constant 4.000000e+00 : f32
    %735 = vector.broadcast %cst_134 : f32 to vector<2x1xf32>
    %736 = arith.select %720, %703, %735 : vector<2x1xi1>, vector<2x1xf32>
    %737 = arith.addf %633, %707 : vector<2x32xf32>
    %738 = math.tanh %737 : vector<2x32xf32>
    %cst_135 = arith.constant dense<0.000000e+00> : vector<2x41xf32>
    %739 = tpu.matmul %738, %5, %cst_135 {dimension_numbers = #tpu.dot_dimension_numbers<[1], [0], [0], [1], [0, 0, 1, 1], [], []>} : vector<2x32xf32>, vector<32x41xf32>, vector<2x41xf32> -> vector<2x41xf32>
    %740 = vector.extract_strided_slice %739 {offsets = [0, 0], sizes = [2, 32], strides = [1, 1]} : vector<2x41xf32> to vector<2x32xf32>
    %741 = vector.extract_strided_slice %739 {offsets = [0, 32], sizes = [2, 9], strides = [1, 1]} : vector<2x41xf32> to vector<2x9xf32>
    %742 = vector.broadcast %6 : vector<1x9xf32> to vector<2x9xf32>
    %743 = arith.addf %741, %742 : vector<2x9xf32>
    %744 = vector.extract_strided_slice %743 {offsets = [0, 1], sizes = [2, 8], strides = [1, 1]} : vector<2x9xf32> to vector<2x8xf32>
    %745 = vector.extract_strided_slice %743 {offsets = [0, 0], sizes = [2, 1], strides = [1, 1]} : vector<2x9xf32> to vector<2x1xf32>
    %746 = arith.negf %745 : vector<2x1xf32>
    %747 = math.exp %746 : vector<2x1xf32>
    %cst_136 = arith.constant 1.000000e+00 : f32
    %748 = vector.broadcast %cst_136 : f32 to vector<2x1xf32>
    %749 = arith.addf %748, %747 : vector<2x1xf32>
    %750 = arith.divf %748, %749 : vector<2x1xf32>
    %751 = arith.addf %718, %750 : vector<2x1xf32>
    %cst_137 = arith.constant 9.900000e-01 : f32
    %752 = vector.broadcast %cst_137 : f32 to vector<2x1xf32>
    %753 = arith.cmpf oge, %751, %752 : vector<2x1xf32>
    %754 = arith.select %753, %733, %750 : vector<2x1xi1>, vector<2x1xf32>
    %755 = vector.broadcast %754 : vector<2x1xf32> to vector<2x8xf32>
    %756 = arith.mulf %755, %744 : vector<2x8xf32>
    %757 = arith.addf %724, %756 : vector<2x8xf32>
    %758 = vector.broadcast %754 : vector<2x1xf32> to vector<2x32xf32>
    %759 = arith.mulf %758, %740 : vector<2x32xf32>
    %760 = arith.addf %727, %759 : vector<2x32xf32>
    %cst_138 = arith.constant 1.000000e+00 : f32
    %761 = vector.broadcast %cst_138 : f32 to vector<2x1xf32>
    %762 = arith.addf %730, %761 : vector<2x1xf32>
    %763 = arith.select %753, %730, %762 : vector<2x1xi1>, vector<2x1xf32>
    %cst_139 = arith.constant 1.000000e+00 : f32
    %764 = vector.broadcast %cst_139 : f32 to vector<2x1xf32>
    %765 = arith.subf %764, %751 : vector<2x1xf32>
    %766 = arith.select %753, %15, %765 : vector<2x1xi1>, vector<2x1xf32>
    %767 = arith.select %753, %734, %766 : vector<2x1xi1>, vector<2x1xf32>
    %cst_140 = arith.constant 5.000000e+00 : f32
    %768 = vector.broadcast %cst_140 : f32 to vector<2x1xf32>
    %769 = arith.select %753, %736, %768 : vector<2x1xi1>, vector<2x1xf32>
    %770 = arith.addf %633, %740 : vector<2x32xf32>
    %771 = math.tanh %770 : vector<2x32xf32>
    %cst_141 = arith.constant dense<0.000000e+00> : vector<2x41xf32>
    %772 = tpu.matmul %771, %5, %cst_141 {dimension_numbers = #tpu.dot_dimension_numbers<[1], [0], [0], [1], [0, 0, 1, 1], [], []>} : vector<2x32xf32>, vector<32x41xf32>, vector<2x41xf32> -> vector<2x41xf32>
    %773 = vector.extract_strided_slice %772 {offsets = [0, 0], sizes = [2, 32], strides = [1, 1]} : vector<2x41xf32> to vector<2x32xf32>
    %774 = vector.extract_strided_slice %772 {offsets = [0, 32], sizes = [2, 9], strides = [1, 1]} : vector<2x41xf32> to vector<2x9xf32>
    %775 = vector.broadcast %6 : vector<1x9xf32> to vector<2x9xf32>
    %776 = arith.addf %774, %775 : vector<2x9xf32>
    %777 = vector.extract_strided_slice %776 {offsets = [0, 1], sizes = [2, 8], strides = [1, 1]} : vector<2x9xf32> to vector<2x8xf32>
    %778 = vector.broadcast %766 : vector<2x1xf32> to vector<2x8xf32>
    %779 = arith.mulf %778, %777 : vector<2x8xf32>
    %780 = arith.addf %757, %779 : vector<2x8xf32>
    %781 = vector.broadcast %766 : vector<2x1xf32> to vector<2x32xf32>
    %782 = arith.mulf %781, %773 : vector<2x32xf32>
    %783 = arith.addf %760, %782 : vector<2x32xf32>
    %784 = arith.addf %632, %767 : vector<2x1xf32>
    %785 = arith.addf %784, %769 : vector<2x1xf32>
    %786 = vector.extract_strided_slice %10 {offsets = [10, 0], sizes = [2, 32], strides = [1, 1]} : vector<16x32xf32> to vector<2x32xf32>
    %787 = vector.broadcast %3 : vector<1x32xf32> to vector<2x32xf32>
    %788 = arith.addf %786, %787 : vector<2x32xf32>
    %cst_142 = arith.constant 1.000000e+00 : f32
    %789 = vector.broadcast %cst_142 : f32 to vector<2x1xf32>
    %790 = arith.addf %763, %789 : vector<2x1xf32>
    %791 = arith.addf %788, %783 : vector<2x32xf32>
    %792 = math.tanh %791 : vector<2x32xf32>
    %cst_143 = arith.constant dense<0.000000e+00> : vector<2x41xf32>
    %793 = tpu.matmul %792, %5, %cst_143 {dimension_numbers = #tpu.dot_dimension_numbers<[1], [0], [0], [1], [0, 0, 1, 1], [], []>} : vector<2x32xf32>, vector<32x41xf32>, vector<2x41xf32> -> vector<2x41xf32>
    %794 = vector.extract_strided_slice %793 {offsets = [0, 0], sizes = [2, 32], strides = [1, 1]} : vector<2x41xf32> to vector<2x32xf32>
    %795 = vector.extract_strided_slice %793 {offsets = [0, 32], sizes = [2, 9], strides = [1, 1]} : vector<2x41xf32> to vector<2x9xf32>
    %796 = vector.broadcast %6 : vector<1x9xf32> to vector<2x9xf32>
    %797 = arith.addf %795, %796 : vector<2x9xf32>
    %798 = vector.extract_strided_slice %797 {offsets = [0, 1], sizes = [2, 8], strides = [1, 1]} : vector<2x9xf32> to vector<2x8xf32>
    %799 = vector.extract_strided_slice %797 {offsets = [0, 0], sizes = [2, 1], strides = [1, 1]} : vector<2x9xf32> to vector<2x1xf32>
    %800 = arith.negf %799 : vector<2x1xf32>
    %801 = math.exp %800 : vector<2x1xf32>
    %cst_144 = arith.constant 1.000000e+00 : f32
    %802 = vector.broadcast %cst_144 : f32 to vector<2x1xf32>
    %803 = arith.addf %802, %801 : vector<2x1xf32>
    %804 = arith.divf %802, %803 : vector<2x1xf32>
    %805 = arith.addf %15, %804 : vector<2x1xf32>
    %cst_145 = arith.constant 9.900000e-01 : f32
    %806 = vector.broadcast %cst_145 : f32 to vector<2x1xf32>
    %807 = arith.cmpf oge, %805, %806 : vector<2x1xf32>
    %808 = arith.select %807, %16, %804 : vector<2x1xi1>, vector<2x1xf32>
    %809 = vector.broadcast %808 : vector<2x1xf32> to vector<2x8xf32>
    %810 = arith.mulf %809, %798 : vector<2x8xf32>
    %811 = arith.addf %17, %810 : vector<2x8xf32>
    %812 = vector.broadcast %808 : vector<2x1xf32> to vector<2x32xf32>
    %813 = arith.mulf %812, %794 : vector<2x32xf32>
    %814 = arith.addf %18, %813 : vector<2x32xf32>
    %cst_146 = arith.constant 1.000000e+00 : f32
    %815 = vector.broadcast %cst_146 : f32 to vector<2x1xf32>
    %816 = arith.addf %790, %815 : vector<2x1xf32>
    %817 = arith.select %807, %790, %816 : vector<2x1xi1>, vector<2x1xf32>
    %cst_147 = arith.constant 1.000000e+00 : f32
    %818 = vector.broadcast %cst_147 : f32 to vector<2x1xf32>
    %819 = arith.subf %818, %805 : vector<2x1xf32>
    %820 = arith.select %807, %15, %819 : vector<2x1xi1>, vector<2x1xf32>
    %821 = arith.select %807, %16, %820 : vector<2x1xi1>, vector<2x1xf32>
    %cst_148 = arith.constant 2.000000e+00 : f32
    %822 = vector.broadcast %cst_148 : f32 to vector<2x1xf32>
    %823 = arith.select %807, %15, %822 : vector<2x1xi1>, vector<2x1xf32>
    %824 = arith.addf %786, %794 : vector<2x32xf32>
    %825 = math.tanh %824 : vector<2x32xf32>
    %cst_149 = arith.constant dense<0.000000e+00> : vector<2x41xf32>
    %826 = tpu.matmul %825, %5, %cst_149 {dimension_numbers = #tpu.dot_dimension_numbers<[1], [0], [0], [1], [0, 0, 1, 1], [], []>} : vector<2x32xf32>, vector<32x41xf32>, vector<2x41xf32> -> vector<2x41xf32>
    %827 = vector.extract_strided_slice %826 {offsets = [0, 0], sizes = [2, 32], strides = [1, 1]} : vector<2x41xf32> to vector<2x32xf32>
    %828 = vector.extract_strided_slice %826 {offsets = [0, 32], sizes = [2, 9], strides = [1, 1]} : vector<2x41xf32> to vector<2x9xf32>
    %829 = vector.broadcast %6 : vector<1x9xf32> to vector<2x9xf32>
    %830 = arith.addf %828, %829 : vector<2x9xf32>
    %831 = vector.extract_strided_slice %830 {offsets = [0, 1], sizes = [2, 8], strides = [1, 1]} : vector<2x9xf32> to vector<2x8xf32>
    %832 = vector.extract_strided_slice %830 {offsets = [0, 0], sizes = [2, 1], strides = [1, 1]} : vector<2x9xf32> to vector<2x1xf32>
    %833 = arith.negf %832 : vector<2x1xf32>
    %834 = math.exp %833 : vector<2x1xf32>
    %cst_150 = arith.constant 1.000000e+00 : f32
    %835 = vector.broadcast %cst_150 : f32 to vector<2x1xf32>
    %836 = arith.addf %835, %834 : vector<2x1xf32>
    %837 = arith.divf %835, %836 : vector<2x1xf32>
    %838 = arith.addf %805, %837 : vector<2x1xf32>
    %cst_151 = arith.constant 9.900000e-01 : f32
    %839 = vector.broadcast %cst_151 : f32 to vector<2x1xf32>
    %840 = arith.cmpf oge, %838, %839 : vector<2x1xf32>
    %841 = arith.select %840, %820, %837 : vector<2x1xi1>, vector<2x1xf32>
    %842 = vector.broadcast %841 : vector<2x1xf32> to vector<2x8xf32>
    %843 = arith.mulf %842, %831 : vector<2x8xf32>
    %844 = arith.addf %811, %843 : vector<2x8xf32>
    %845 = vector.broadcast %841 : vector<2x1xf32> to vector<2x32xf32>
    %846 = arith.mulf %845, %827 : vector<2x32xf32>
    %847 = arith.addf %814, %846 : vector<2x32xf32>
    %cst_152 = arith.constant 1.000000e+00 : f32
    %848 = vector.broadcast %cst_152 : f32 to vector<2x1xf32>
    %849 = arith.addf %817, %848 : vector<2x1xf32>
    %850 = arith.select %840, %817, %849 : vector<2x1xi1>, vector<2x1xf32>
    %cst_153 = arith.constant 1.000000e+00 : f32
    %851 = vector.broadcast %cst_153 : f32 to vector<2x1xf32>
    %852 = arith.subf %851, %838 : vector<2x1xf32>
    %853 = arith.select %840, %15, %852 : vector<2x1xi1>, vector<2x1xf32>
    %854 = arith.select %840, %821, %853 : vector<2x1xi1>, vector<2x1xf32>
    %cst_154 = arith.constant 3.000000e+00 : f32
    %855 = vector.broadcast %cst_154 : f32 to vector<2x1xf32>
    %856 = arith.select %840, %823, %855 : vector<2x1xi1>, vector<2x1xf32>
    %857 = arith.addf %786, %827 : vector<2x32xf32>
    %858 = math.tanh %857 : vector<2x32xf32>
    %cst_155 = arith.constant dense<0.000000e+00> : vector<2x41xf32>
    %859 = tpu.matmul %858, %5, %cst_155 {dimension_numbers = #tpu.dot_dimension_numbers<[1], [0], [0], [1], [0, 0, 1, 1], [], []>} : vector<2x32xf32>, vector<32x41xf32>, vector<2x41xf32> -> vector<2x41xf32>
    %860 = vector.extract_strided_slice %859 {offsets = [0, 0], sizes = [2, 32], strides = [1, 1]} : vector<2x41xf32> to vector<2x32xf32>
    %861 = vector.extract_strided_slice %859 {offsets = [0, 32], sizes = [2, 9], strides = [1, 1]} : vector<2x41xf32> to vector<2x9xf32>
    %862 = vector.broadcast %6 : vector<1x9xf32> to vector<2x9xf32>
    %863 = arith.addf %861, %862 : vector<2x9xf32>
    %864 = vector.extract_strided_slice %863 {offsets = [0, 1], sizes = [2, 8], strides = [1, 1]} : vector<2x9xf32> to vector<2x8xf32>
    %865 = vector.extract_strided_slice %863 {offsets = [0, 0], sizes = [2, 1], strides = [1, 1]} : vector<2x9xf32> to vector<2x1xf32>
    %866 = arith.negf %865 : vector<2x1xf32>
    %867 = math.exp %866 : vector<2x1xf32>
    %cst_156 = arith.constant 1.000000e+00 : f32
    %868 = vector.broadcast %cst_156 : f32 to vector<2x1xf32>
    %869 = arith.addf %868, %867 : vector<2x1xf32>
    %870 = arith.divf %868, %869 : vector<2x1xf32>
    %871 = arith.addf %838, %870 : vector<2x1xf32>
    %cst_157 = arith.constant 9.900000e-01 : f32
    %872 = vector.broadcast %cst_157 : f32 to vector<2x1xf32>
    %873 = arith.cmpf oge, %871, %872 : vector<2x1xf32>
    %874 = arith.select %873, %853, %870 : vector<2x1xi1>, vector<2x1xf32>
    %875 = vector.broadcast %874 : vector<2x1xf32> to vector<2x8xf32>
    %876 = arith.mulf %875, %864 : vector<2x8xf32>
    %877 = arith.addf %844, %876 : vector<2x8xf32>
    %878 = vector.broadcast %874 : vector<2x1xf32> to vector<2x32xf32>
    %879 = arith.mulf %878, %860 : vector<2x32xf32>
    %880 = arith.addf %847, %879 : vector<2x32xf32>
    %cst_158 = arith.constant 1.000000e+00 : f32
    %881 = vector.broadcast %cst_158 : f32 to vector<2x1xf32>
    %882 = arith.addf %850, %881 : vector<2x1xf32>
    %883 = arith.select %873, %850, %882 : vector<2x1xi1>, vector<2x1xf32>
    %cst_159 = arith.constant 1.000000e+00 : f32
    %884 = vector.broadcast %cst_159 : f32 to vector<2x1xf32>
    %885 = arith.subf %884, %871 : vector<2x1xf32>
    %886 = arith.select %873, %15, %885 : vector<2x1xi1>, vector<2x1xf32>
    %887 = arith.select %873, %854, %886 : vector<2x1xi1>, vector<2x1xf32>
    %cst_160 = arith.constant 4.000000e+00 : f32
    %888 = vector.broadcast %cst_160 : f32 to vector<2x1xf32>
    %889 = arith.select %873, %856, %888 : vector<2x1xi1>, vector<2x1xf32>
    %890 = arith.addf %786, %860 : vector<2x32xf32>
    %891 = math.tanh %890 : vector<2x32xf32>
    %cst_161 = arith.constant dense<0.000000e+00> : vector<2x41xf32>
    %892 = tpu.matmul %891, %5, %cst_161 {dimension_numbers = #tpu.dot_dimension_numbers<[1], [0], [0], [1], [0, 0, 1, 1], [], []>} : vector<2x32xf32>, vector<32x41xf32>, vector<2x41xf32> -> vector<2x41xf32>
    %893 = vector.extract_strided_slice %892 {offsets = [0, 0], sizes = [2, 32], strides = [1, 1]} : vector<2x41xf32> to vector<2x32xf32>
    %894 = vector.extract_strided_slice %892 {offsets = [0, 32], sizes = [2, 9], strides = [1, 1]} : vector<2x41xf32> to vector<2x9xf32>
    %895 = vector.broadcast %6 : vector<1x9xf32> to vector<2x9xf32>
    %896 = arith.addf %894, %895 : vector<2x9xf32>
    %897 = vector.extract_strided_slice %896 {offsets = [0, 1], sizes = [2, 8], strides = [1, 1]} : vector<2x9xf32> to vector<2x8xf32>
    %898 = vector.extract_strided_slice %896 {offsets = [0, 0], sizes = [2, 1], strides = [1, 1]} : vector<2x9xf32> to vector<2x1xf32>
    %899 = arith.negf %898 : vector<2x1xf32>
    %900 = math.exp %899 : vector<2x1xf32>
    %cst_162 = arith.constant 1.000000e+00 : f32
    %901 = vector.broadcast %cst_162 : f32 to vector<2x1xf32>
    %902 = arith.addf %901, %900 : vector<2x1xf32>
    %903 = arith.divf %901, %902 : vector<2x1xf32>
    %904 = arith.addf %871, %903 : vector<2x1xf32>
    %cst_163 = arith.constant 9.900000e-01 : f32
    %905 = vector.broadcast %cst_163 : f32 to vector<2x1xf32>
    %906 = arith.cmpf oge, %904, %905 : vector<2x1xf32>
    %907 = arith.select %906, %886, %903 : vector<2x1xi1>, vector<2x1xf32>
    %908 = vector.broadcast %907 : vector<2x1xf32> to vector<2x8xf32>
    %909 = arith.mulf %908, %897 : vector<2x8xf32>
    %910 = arith.addf %877, %909 : vector<2x8xf32>
    %911 = vector.broadcast %907 : vector<2x1xf32> to vector<2x32xf32>
    %912 = arith.mulf %911, %893 : vector<2x32xf32>
    %913 = arith.addf %880, %912 : vector<2x32xf32>
    %cst_164 = arith.constant 1.000000e+00 : f32
    %914 = vector.broadcast %cst_164 : f32 to vector<2x1xf32>
    %915 = arith.addf %883, %914 : vector<2x1xf32>
    %916 = arith.select %906, %883, %915 : vector<2x1xi1>, vector<2x1xf32>
    %cst_165 = arith.constant 1.000000e+00 : f32
    %917 = vector.broadcast %cst_165 : f32 to vector<2x1xf32>
    %918 = arith.subf %917, %904 : vector<2x1xf32>
    %919 = arith.select %906, %15, %918 : vector<2x1xi1>, vector<2x1xf32>
    %920 = arith.select %906, %887, %919 : vector<2x1xi1>, vector<2x1xf32>
    %cst_166 = arith.constant 5.000000e+00 : f32
    %921 = vector.broadcast %cst_166 : f32 to vector<2x1xf32>
    %922 = arith.select %906, %889, %921 : vector<2x1xi1>, vector<2x1xf32>
    %923 = arith.addf %786, %893 : vector<2x32xf32>
    %924 = math.tanh %923 : vector<2x32xf32>
    %cst_167 = arith.constant dense<0.000000e+00> : vector<2x41xf32>
    %925 = tpu.matmul %924, %5, %cst_167 {dimension_numbers = #tpu.dot_dimension_numbers<[1], [0], [0], [1], [0, 0, 1, 1], [], []>} : vector<2x32xf32>, vector<32x41xf32>, vector<2x41xf32> -> vector<2x41xf32>
    %926 = vector.extract_strided_slice %925 {offsets = [0, 0], sizes = [2, 32], strides = [1, 1]} : vector<2x41xf32> to vector<2x32xf32>
    %927 = vector.extract_strided_slice %925 {offsets = [0, 32], sizes = [2, 9], strides = [1, 1]} : vector<2x41xf32> to vector<2x9xf32>
    %928 = vector.broadcast %6 : vector<1x9xf32> to vector<2x9xf32>
    %929 = arith.addf %927, %928 : vector<2x9xf32>
    %930 = vector.extract_strided_slice %929 {offsets = [0, 1], sizes = [2, 8], strides = [1, 1]} : vector<2x9xf32> to vector<2x8xf32>
    %931 = vector.broadcast %919 : vector<2x1xf32> to vector<2x8xf32>
    %932 = arith.mulf %931, %930 : vector<2x8xf32>
    %933 = arith.addf %910, %932 : vector<2x8xf32>
    %934 = vector.broadcast %919 : vector<2x1xf32> to vector<2x32xf32>
    %935 = arith.mulf %934, %926 : vector<2x32xf32>
    %936 = arith.addf %913, %935 : vector<2x32xf32>
    %937 = arith.addf %785, %920 : vector<2x1xf32>
    %938 = arith.addf %937, %922 : vector<2x1xf32>
    %939 = vector.extract_strided_slice %10 {offsets = [12, 0], sizes = [2, 32], strides = [1, 1]} : vector<16x32xf32> to vector<2x32xf32>
    %940 = vector.broadcast %3 : vector<1x32xf32> to vector<2x32xf32>
    %941 = arith.addf %939, %940 : vector<2x32xf32>
    %cst_168 = arith.constant 1.000000e+00 : f32
    %942 = vector.broadcast %cst_168 : f32 to vector<2x1xf32>
    %943 = arith.addf %916, %942 : vector<2x1xf32>
    %944 = arith.addf %941, %936 : vector<2x32xf32>
    %945 = math.tanh %944 : vector<2x32xf32>
    %cst_169 = arith.constant dense<0.000000e+00> : vector<2x41xf32>
    %946 = tpu.matmul %945, %5, %cst_169 {dimension_numbers = #tpu.dot_dimension_numbers<[1], [0], [0], [1], [0, 0, 1, 1], [], []>} : vector<2x32xf32>, vector<32x41xf32>, vector<2x41xf32> -> vector<2x41xf32>
    %947 = vector.extract_strided_slice %946 {offsets = [0, 0], sizes = [2, 32], strides = [1, 1]} : vector<2x41xf32> to vector<2x32xf32>
    %948 = vector.extract_strided_slice %946 {offsets = [0, 32], sizes = [2, 9], strides = [1, 1]} : vector<2x41xf32> to vector<2x9xf32>
    %949 = vector.broadcast %6 : vector<1x9xf32> to vector<2x9xf32>
    %950 = arith.addf %948, %949 : vector<2x9xf32>
    %951 = vector.extract_strided_slice %950 {offsets = [0, 1], sizes = [2, 8], strides = [1, 1]} : vector<2x9xf32> to vector<2x8xf32>
    %952 = vector.extract_strided_slice %950 {offsets = [0, 0], sizes = [2, 1], strides = [1, 1]} : vector<2x9xf32> to vector<2x1xf32>
    %953 = arith.negf %952 : vector<2x1xf32>
    %954 = math.exp %953 : vector<2x1xf32>
    %cst_170 = arith.constant 1.000000e+00 : f32
    %955 = vector.broadcast %cst_170 : f32 to vector<2x1xf32>
    %956 = arith.addf %955, %954 : vector<2x1xf32>
    %957 = arith.divf %955, %956 : vector<2x1xf32>
    %958 = arith.addf %15, %957 : vector<2x1xf32>
    %cst_171 = arith.constant 9.900000e-01 : f32
    %959 = vector.broadcast %cst_171 : f32 to vector<2x1xf32>
    %960 = arith.cmpf oge, %958, %959 : vector<2x1xf32>
    %961 = arith.select %960, %16, %957 : vector<2x1xi1>, vector<2x1xf32>
    %962 = vector.broadcast %961 : vector<2x1xf32> to vector<2x8xf32>
    %963 = arith.mulf %962, %951 : vector<2x8xf32>
    %964 = arith.addf %17, %963 : vector<2x8xf32>
    %965 = vector.broadcast %961 : vector<2x1xf32> to vector<2x32xf32>
    %966 = arith.mulf %965, %947 : vector<2x32xf32>
    %967 = arith.addf %18, %966 : vector<2x32xf32>
    %cst_172 = arith.constant 1.000000e+00 : f32
    %968 = vector.broadcast %cst_172 : f32 to vector<2x1xf32>
    %969 = arith.addf %943, %968 : vector<2x1xf32>
    %970 = arith.select %960, %943, %969 : vector<2x1xi1>, vector<2x1xf32>
    %cst_173 = arith.constant 1.000000e+00 : f32
    %971 = vector.broadcast %cst_173 : f32 to vector<2x1xf32>
    %972 = arith.subf %971, %958 : vector<2x1xf32>
    %973 = arith.select %960, %15, %972 : vector<2x1xi1>, vector<2x1xf32>
    %974 = arith.select %960, %16, %973 : vector<2x1xi1>, vector<2x1xf32>
    %cst_174 = arith.constant 2.000000e+00 : f32
    %975 = vector.broadcast %cst_174 : f32 to vector<2x1xf32>
    %976 = arith.select %960, %15, %975 : vector<2x1xi1>, vector<2x1xf32>
    %977 = arith.addf %939, %947 : vector<2x32xf32>
    %978 = math.tanh %977 : vector<2x32xf32>
    %cst_175 = arith.constant dense<0.000000e+00> : vector<2x41xf32>
    %979 = tpu.matmul %978, %5, %cst_175 {dimension_numbers = #tpu.dot_dimension_numbers<[1], [0], [0], [1], [0, 0, 1, 1], [], []>} : vector<2x32xf32>, vector<32x41xf32>, vector<2x41xf32> -> vector<2x41xf32>
    %980 = vector.extract_strided_slice %979 {offsets = [0, 0], sizes = [2, 32], strides = [1, 1]} : vector<2x41xf32> to vector<2x32xf32>
    %981 = vector.extract_strided_slice %979 {offsets = [0, 32], sizes = [2, 9], strides = [1, 1]} : vector<2x41xf32> to vector<2x9xf32>
    %982 = vector.broadcast %6 : vector<1x9xf32> to vector<2x9xf32>
    %983 = arith.addf %981, %982 : vector<2x9xf32>
    %984 = vector.extract_strided_slice %983 {offsets = [0, 1], sizes = [2, 8], strides = [1, 1]} : vector<2x9xf32> to vector<2x8xf32>
    %985 = vector.extract_strided_slice %983 {offsets = [0, 0], sizes = [2, 1], strides = [1, 1]} : vector<2x9xf32> to vector<2x1xf32>
    %986 = arith.negf %985 : vector<2x1xf32>
    %987 = math.exp %986 : vector<2x1xf32>
    %cst_176 = arith.constant 1.000000e+00 : f32
    %988 = vector.broadcast %cst_176 : f32 to vector<2x1xf32>
    %989 = arith.addf %988, %987 : vector<2x1xf32>
    %990 = arith.divf %988, %989 : vector<2x1xf32>
    %991 = arith.addf %958, %990 : vector<2x1xf32>
    %cst_177 = arith.constant 9.900000e-01 : f32
    %992 = vector.broadcast %cst_177 : f32 to vector<2x1xf32>
    %993 = arith.cmpf oge, %991, %992 : vector<2x1xf32>
    %994 = arith.select %993, %973, %990 : vector<2x1xi1>, vector<2x1xf32>
    %995 = vector.broadcast %994 : vector<2x1xf32> to vector<2x8xf32>
    %996 = arith.mulf %995, %984 : vector<2x8xf32>
    %997 = arith.addf %964, %996 : vector<2x8xf32>
    %998 = vector.broadcast %994 : vector<2x1xf32> to vector<2x32xf32>
    %999 = arith.mulf %998, %980 : vector<2x32xf32>
    %1000 = arith.addf %967, %999 : vector<2x32xf32>
    %cst_178 = arith.constant 1.000000e+00 : f32
    %1001 = vector.broadcast %cst_178 : f32 to vector<2x1xf32>
    %1002 = arith.addf %970, %1001 : vector<2x1xf32>
    %1003 = arith.select %993, %970, %1002 : vector<2x1xi1>, vector<2x1xf32>
    %cst_179 = arith.constant 1.000000e+00 : f32
    %1004 = vector.broadcast %cst_179 : f32 to vector<2x1xf32>
    %1005 = arith.subf %1004, %991 : vector<2x1xf32>
    %1006 = arith.select %993, %15, %1005 : vector<2x1xi1>, vector<2x1xf32>
    %1007 = arith.select %993, %974, %1006 : vector<2x1xi1>, vector<2x1xf32>
    %cst_180 = arith.constant 3.000000e+00 : f32
    %1008 = vector.broadcast %cst_180 : f32 to vector<2x1xf32>
    %1009 = arith.select %993, %976, %1008 : vector<2x1xi1>, vector<2x1xf32>
    %1010 = arith.addf %939, %980 : vector<2x32xf32>
    %1011 = math.tanh %1010 : vector<2x32xf32>
    %cst_181 = arith.constant dense<0.000000e+00> : vector<2x41xf32>
    %1012 = tpu.matmul %1011, %5, %cst_181 {dimension_numbers = #tpu.dot_dimension_numbers<[1], [0], [0], [1], [0, 0, 1, 1], [], []>} : vector<2x32xf32>, vector<32x41xf32>, vector<2x41xf32> -> vector<2x41xf32>
    %1013 = vector.extract_strided_slice %1012 {offsets = [0, 0], sizes = [2, 32], strides = [1, 1]} : vector<2x41xf32> to vector<2x32xf32>
    %1014 = vector.extract_strided_slice %1012 {offsets = [0, 32], sizes = [2, 9], strides = [1, 1]} : vector<2x41xf32> to vector<2x9xf32>
    %1015 = vector.broadcast %6 : vector<1x9xf32> to vector<2x9xf32>
    %1016 = arith.addf %1014, %1015 : vector<2x9xf32>
    %1017 = vector.extract_strided_slice %1016 {offsets = [0, 1], sizes = [2, 8], strides = [1, 1]} : vector<2x9xf32> to vector<2x8xf32>
    %1018 = vector.extract_strided_slice %1016 {offsets = [0, 0], sizes = [2, 1], strides = [1, 1]} : vector<2x9xf32> to vector<2x1xf32>
    %1019 = arith.negf %1018 : vector<2x1xf32>
    %1020 = math.exp %1019 : vector<2x1xf32>
    %cst_182 = arith.constant 1.000000e+00 : f32
    %1021 = vector.broadcast %cst_182 : f32 to vector<2x1xf32>
    %1022 = arith.addf %1021, %1020 : vector<2x1xf32>
    %1023 = arith.divf %1021, %1022 : vector<2x1xf32>
    %1024 = arith.addf %991, %1023 : vector<2x1xf32>
    %cst_183 = arith.constant 9.900000e-01 : f32
    %1025 = vector.broadcast %cst_183 : f32 to vector<2x1xf32>
    %1026 = arith.cmpf oge, %1024, %1025 : vector<2x1xf32>
    %1027 = arith.select %1026, %1006, %1023 : vector<2x1xi1>, vector<2x1xf32>
    %1028 = vector.broadcast %1027 : vector<2x1xf32> to vector<2x8xf32>
    %1029 = arith.mulf %1028, %1017 : vector<2x8xf32>
    %1030 = arith.addf %997, %1029 : vector<2x8xf32>
    %1031 = vector.broadcast %1027 : vector<2x1xf32> to vector<2x32xf32>
    %1032 = arith.mulf %1031, %1013 : vector<2x32xf32>
    %1033 = arith.addf %1000, %1032 : vector<2x32xf32>
    %cst_184 = arith.constant 1.000000e+00 : f32
    %1034 = vector.broadcast %cst_184 : f32 to vector<2x1xf32>
    %1035 = arith.addf %1003, %1034 : vector<2x1xf32>
    %1036 = arith.select %1026, %1003, %1035 : vector<2x1xi1>, vector<2x1xf32>
    %cst_185 = arith.constant 1.000000e+00 : f32
    %1037 = vector.broadcast %cst_185 : f32 to vector<2x1xf32>
    %1038 = arith.subf %1037, %1024 : vector<2x1xf32>
    %1039 = arith.select %1026, %15, %1038 : vector<2x1xi1>, vector<2x1xf32>
    %1040 = arith.select %1026, %1007, %1039 : vector<2x1xi1>, vector<2x1xf32>
    %cst_186 = arith.constant 4.000000e+00 : f32
    %1041 = vector.broadcast %cst_186 : f32 to vector<2x1xf32>
    %1042 = arith.select %1026, %1009, %1041 : vector<2x1xi1>, vector<2x1xf32>
    %1043 = arith.addf %939, %1013 : vector<2x32xf32>
    %1044 = math.tanh %1043 : vector<2x32xf32>
    %cst_187 = arith.constant dense<0.000000e+00> : vector<2x41xf32>
    %1045 = tpu.matmul %1044, %5, %cst_187 {dimension_numbers = #tpu.dot_dimension_numbers<[1], [0], [0], [1], [0, 0, 1, 1], [], []>} : vector<2x32xf32>, vector<32x41xf32>, vector<2x41xf32> -> vector<2x41xf32>
    %1046 = vector.extract_strided_slice %1045 {offsets = [0, 0], sizes = [2, 32], strides = [1, 1]} : vector<2x41xf32> to vector<2x32xf32>
    %1047 = vector.extract_strided_slice %1045 {offsets = [0, 32], sizes = [2, 9], strides = [1, 1]} : vector<2x41xf32> to vector<2x9xf32>
    %1048 = vector.broadcast %6 : vector<1x9xf32> to vector<2x9xf32>
    %1049 = arith.addf %1047, %1048 : vector<2x9xf32>
    %1050 = vector.extract_strided_slice %1049 {offsets = [0, 1], sizes = [2, 8], strides = [1, 1]} : vector<2x9xf32> to vector<2x8xf32>
    %1051 = vector.extract_strided_slice %1049 {offsets = [0, 0], sizes = [2, 1], strides = [1, 1]} : vector<2x9xf32> to vector<2x1xf32>
    %1052 = arith.negf %1051 : vector<2x1xf32>
    %1053 = math.exp %1052 : vector<2x1xf32>
    %cst_188 = arith.constant 1.000000e+00 : f32
    %1054 = vector.broadcast %cst_188 : f32 to vector<2x1xf32>
    %1055 = arith.addf %1054, %1053 : vector<2x1xf32>
    %1056 = arith.divf %1054, %1055 : vector<2x1xf32>
    %1057 = arith.addf %1024, %1056 : vector<2x1xf32>
    %cst_189 = arith.constant 9.900000e-01 : f32
    %1058 = vector.broadcast %cst_189 : f32 to vector<2x1xf32>
    %1059 = arith.cmpf oge, %1057, %1058 : vector<2x1xf32>
    %1060 = arith.select %1059, %1039, %1056 : vector<2x1xi1>, vector<2x1xf32>
    %1061 = vector.broadcast %1060 : vector<2x1xf32> to vector<2x8xf32>
    %1062 = arith.mulf %1061, %1050 : vector<2x8xf32>
    %1063 = arith.addf %1030, %1062 : vector<2x8xf32>
    %1064 = vector.broadcast %1060 : vector<2x1xf32> to vector<2x32xf32>
    %1065 = arith.mulf %1064, %1046 : vector<2x32xf32>
    %1066 = arith.addf %1033, %1065 : vector<2x32xf32>
    %cst_190 = arith.constant 1.000000e+00 : f32
    %1067 = vector.broadcast %cst_190 : f32 to vector<2x1xf32>
    %1068 = arith.addf %1036, %1067 : vector<2x1xf32>
    %1069 = arith.select %1059, %1036, %1068 : vector<2x1xi1>, vector<2x1xf32>
    %cst_191 = arith.constant 1.000000e+00 : f32
    %1070 = vector.broadcast %cst_191 : f32 to vector<2x1xf32>
    %1071 = arith.subf %1070, %1057 : vector<2x1xf32>
    %1072 = arith.select %1059, %15, %1071 : vector<2x1xi1>, vector<2x1xf32>
    %1073 = arith.select %1059, %1040, %1072 : vector<2x1xi1>, vector<2x1xf32>
    %cst_192 = arith.constant 5.000000e+00 : f32
    %1074 = vector.broadcast %cst_192 : f32 to vector<2x1xf32>
    %1075 = arith.select %1059, %1042, %1074 : vector<2x1xi1>, vector<2x1xf32>
    %1076 = arith.addf %939, %1046 : vector<2x32xf32>
    %1077 = math.tanh %1076 : vector<2x32xf32>
    %cst_193 = arith.constant dense<0.000000e+00> : vector<2x41xf32>
    %1078 = tpu.matmul %1077, %5, %cst_193 {dimension_numbers = #tpu.dot_dimension_numbers<[1], [0], [0], [1], [0, 0, 1, 1], [], []>} : vector<2x32xf32>, vector<32x41xf32>, vector<2x41xf32> -> vector<2x41xf32>
    %1079 = vector.extract_strided_slice %1078 {offsets = [0, 0], sizes = [2, 32], strides = [1, 1]} : vector<2x41xf32> to vector<2x32xf32>
    %1080 = vector.extract_strided_slice %1078 {offsets = [0, 32], sizes = [2, 9], strides = [1, 1]} : vector<2x41xf32> to vector<2x9xf32>
    %1081 = vector.broadcast %6 : vector<1x9xf32> to vector<2x9xf32>
    %1082 = arith.addf %1080, %1081 : vector<2x9xf32>
    %1083 = vector.extract_strided_slice %1082 {offsets = [0, 1], sizes = [2, 8], strides = [1, 1]} : vector<2x9xf32> to vector<2x8xf32>
    %1084 = vector.broadcast %1072 : vector<2x1xf32> to vector<2x8xf32>
    %1085 = arith.mulf %1084, %1083 : vector<2x8xf32>
    %1086 = arith.addf %1063, %1085 : vector<2x8xf32>
    %1087 = vector.broadcast %1072 : vector<2x1xf32> to vector<2x32xf32>
    %1088 = arith.mulf %1087, %1079 : vector<2x32xf32>
    %1089 = arith.addf %1066, %1088 : vector<2x32xf32>
    %1090 = arith.addf %938, %1073 : vector<2x1xf32>
    %1091 = arith.addf %1090, %1075 : vector<2x1xf32>
    %1092 = vector.extract_strided_slice %10 {offsets = [14, 0], sizes = [2, 32], strides = [1, 1]} : vector<16x32xf32> to vector<2x32xf32>
    %1093 = vector.broadcast %3 : vector<1x32xf32> to vector<2x32xf32>
    %1094 = arith.addf %1092, %1093 : vector<2x32xf32>
    %cst_194 = arith.constant 1.000000e+00 : f32
    %1095 = vector.broadcast %cst_194 : f32 to vector<2x1xf32>
    %1096 = arith.addf %1069, %1095 : vector<2x1xf32>
    %1097 = arith.addf %1094, %1089 : vector<2x32xf32>
    %1098 = math.tanh %1097 : vector<2x32xf32>
    %cst_195 = arith.constant dense<0.000000e+00> : vector<2x41xf32>
    %1099 = tpu.matmul %1098, %5, %cst_195 {dimension_numbers = #tpu.dot_dimension_numbers<[1], [0], [0], [1], [0, 0, 1, 1], [], []>} : vector<2x32xf32>, vector<32x41xf32>, vector<2x41xf32> -> vector<2x41xf32>
    %1100 = vector.extract_strided_slice %1099 {offsets = [0, 0], sizes = [2, 32], strides = [1, 1]} : vector<2x41xf32> to vector<2x32xf32>
    %1101 = vector.extract_strided_slice %1099 {offsets = [0, 32], sizes = [2, 9], strides = [1, 1]} : vector<2x41xf32> to vector<2x9xf32>
    %1102 = vector.broadcast %6 : vector<1x9xf32> to vector<2x9xf32>
    %1103 = arith.addf %1101, %1102 : vector<2x9xf32>
    %1104 = vector.extract_strided_slice %1103 {offsets = [0, 1], sizes = [2, 8], strides = [1, 1]} : vector<2x9xf32> to vector<2x8xf32>
    %1105 = vector.extract_strided_slice %1103 {offsets = [0, 0], sizes = [2, 1], strides = [1, 1]} : vector<2x9xf32> to vector<2x1xf32>
    %1106 = arith.negf %1105 : vector<2x1xf32>
    %1107 = math.exp %1106 : vector<2x1xf32>
    %cst_196 = arith.constant 1.000000e+00 : f32
    %1108 = vector.broadcast %cst_196 : f32 to vector<2x1xf32>
    %1109 = arith.addf %1108, %1107 : vector<2x1xf32>
    %1110 = arith.divf %1108, %1109 : vector<2x1xf32>
    %1111 = arith.addf %15, %1110 : vector<2x1xf32>
    %cst_197 = arith.constant 9.900000e-01 : f32
    %1112 = vector.broadcast %cst_197 : f32 to vector<2x1xf32>
    %1113 = arith.cmpf oge, %1111, %1112 : vector<2x1xf32>
    %1114 = arith.select %1113, %16, %1110 : vector<2x1xi1>, vector<2x1xf32>
    %1115 = vector.broadcast %1114 : vector<2x1xf32> to vector<2x8xf32>
    %1116 = arith.mulf %1115, %1104 : vector<2x8xf32>
    %1117 = arith.addf %17, %1116 : vector<2x8xf32>
    %1118 = vector.broadcast %1114 : vector<2x1xf32> to vector<2x32xf32>
    %1119 = arith.mulf %1118, %1098 : vector<2x32xf32>
    %1120 = arith.addf %18, %1119 : vector<2x32xf32>
    %cst_198 = arith.constant 1.000000e+00 : f32
    %1121 = vector.broadcast %cst_198 : f32 to vector<2x1xf32>
    %1122 = arith.addf %1096, %1121 : vector<2x1xf32>
    %1123 = arith.select %1113, %1096, %1122 : vector<2x1xi1>, vector<2x1xf32>
    %cst_199 = arith.constant 1.000000e+00 : f32
    %1124 = vector.broadcast %cst_199 : f32 to vector<2x1xf32>
    %1125 = arith.subf %1124, %1111 : vector<2x1xf32>
    %1126 = arith.select %1113, %15, %1125 : vector<2x1xi1>, vector<2x1xf32>
    %1127 = arith.select %1113, %16, %1126 : vector<2x1xi1>, vector<2x1xf32>
    %cst_200 = arith.constant 2.000000e+00 : f32
    %1128 = vector.broadcast %cst_200 : f32 to vector<2x1xf32>
    %1129 = arith.select %1113, %15, %1128 : vector<2x1xi1>, vector<2x1xf32>
    %1130 = arith.addf %1092, %1100 : vector<2x32xf32>
    %1131 = math.tanh %1130 : vector<2x32xf32>
    %cst_201 = arith.constant dense<0.000000e+00> : vector<2x41xf32>
    %1132 = tpu.matmul %1131, %5, %cst_201 {dimension_numbers = #tpu.dot_dimension_numbers<[1], [0], [0], [1], [0, 0, 1, 1], [], []>} : vector<2x32xf32>, vector<32x41xf32>, vector<2x41xf32> -> vector<2x41xf32>
    %1133 = vector.extract_strided_slice %1132 {offsets = [0, 0], sizes = [2, 32], strides = [1, 1]} : vector<2x41xf32> to vector<2x32xf32>
    %1134 = vector.extract_strided_slice %1132 {offsets = [0, 32], sizes = [2, 9], strides = [1, 1]} : vector<2x41xf32> to vector<2x9xf32>
    %1135 = vector.broadcast %6 : vector<1x9xf32> to vector<2x9xf32>
    %1136 = arith.addf %1134, %1135 : vector<2x9xf32>
    %1137 = vector.extract_strided_slice %1136 {offsets = [0, 1], sizes = [2, 8], strides = [1, 1]} : vector<2x9xf32> to vector<2x8xf32>
    %1138 = vector.extract_strided_slice %1136 {offsets = [0, 0], sizes = [2, 1], strides = [1, 1]} : vector<2x9xf32> to vector<2x1xf32>
    %1139 = arith.negf %1138 : vector<2x1xf32>
    %1140 = math.exp %1139 : vector<2x1xf32>
    %cst_202 = arith.constant 1.000000e+00 : f32
    %1141 = vector.broadcast %cst_202 : f32 to vector<2x1xf32>
    %1142 = arith.addf %1141, %1140 : vector<2x1xf32>
    %1143 = arith.divf %1141, %1142 : vector<2x1xf32>
    %1144 = arith.addf %1111, %1143 : vector<2x1xf32>
    %cst_203 = arith.constant 9.900000e-01 : f32
    %1145 = vector.broadcast %cst_203 : f32 to vector<2x1xf32>
    %1146 = arith.cmpf oge, %1144, %1145 : vector<2x1xf32>
    %1147 = arith.select %1146, %1126, %1143 : vector<2x1xi1>, vector<2x1xf32>
    %1148 = vector.broadcast %1147 : vector<2x1xf32> to vector<2x8xf32>
    %1149 = arith.mulf %1148, %1137 : vector<2x8xf32>
    %1150 = arith.addf %1117, %1149 : vector<2x8xf32>
    %1151 = vector.broadcast %1147 : vector<2x1xf32> to vector<2x32xf32>
    %1152 = arith.mulf %1151, %1131 : vector<2x32xf32>
    %1153 = arith.addf %1120, %1152 : vector<2x32xf32>
    %cst_204 = arith.constant 1.000000e+00 : f32
    %1154 = vector.broadcast %cst_204 : f32 to vector<2x1xf32>
    %1155 = arith.addf %1123, %1154 : vector<2x1xf32>
    %1156 = arith.select %1146, %1123, %1155 : vector<2x1xi1>, vector<2x1xf32>
    %cst_205 = arith.constant 1.000000e+00 : f32
    %1157 = vector.broadcast %cst_205 : f32 to vector<2x1xf32>
    %1158 = arith.subf %1157, %1144 : vector<2x1xf32>
    %1159 = arith.select %1146, %15, %1158 : vector<2x1xi1>, vector<2x1xf32>
    %1160 = arith.select %1146, %1127, %1159 : vector<2x1xi1>, vector<2x1xf32>
    %cst_206 = arith.constant 3.000000e+00 : f32
    %1161 = vector.broadcast %cst_206 : f32 to vector<2x1xf32>
    %1162 = arith.select %1146, %1129, %1161 : vector<2x1xi1>, vector<2x1xf32>
    %1163 = arith.addf %1092, %1133 : vector<2x32xf32>
    %1164 = math.tanh %1163 : vector<2x32xf32>
    %cst_207 = arith.constant dense<0.000000e+00> : vector<2x41xf32>
    %1165 = tpu.matmul %1164, %5, %cst_207 {dimension_numbers = #tpu.dot_dimension_numbers<[1], [0], [0], [1], [0, 0, 1, 1], [], []>} : vector<2x32xf32>, vector<32x41xf32>, vector<2x41xf32> -> vector<2x41xf32>
    %1166 = vector.extract_strided_slice %1165 {offsets = [0, 0], sizes = [2, 32], strides = [1, 1]} : vector<2x41xf32> to vector<2x32xf32>
    %1167 = vector.extract_strided_slice %1165 {offsets = [0, 32], sizes = [2, 9], strides = [1, 1]} : vector<2x41xf32> to vector<2x9xf32>
    %1168 = vector.broadcast %6 : vector<1x9xf32> to vector<2x9xf32>
    %1169 = arith.addf %1167, %1168 : vector<2x9xf32>
    %1170 = vector.extract_strided_slice %1169 {offsets = [0, 1], sizes = [2, 8], strides = [1, 1]} : vector<2x9xf32> to vector<2x8xf32>
    %1171 = vector.extract_strided_slice %1169 {offsets = [0, 0], sizes = [2, 1], strides = [1, 1]} : vector<2x9xf32> to vector<2x1xf32>
    %1172 = arith.negf %1171 : vector<2x1xf32>
    %1173 = math.exp %1172 : vector<2x1xf32>
    %cst_208 = arith.constant 1.000000e+00 : f32
    %1174 = vector.broadcast %cst_208 : f32 to vector<2x1xf32>
    %1175 = arith.addf %1174, %1173 : vector<2x1xf32>
    %1176 = arith.divf %1174, %1175 : vector<2x1xf32>
    %1177 = arith.addf %1144, %1176 : vector<2x1xf32>
    %cst_209 = arith.constant 9.900000e-01 : f32
    %1178 = vector.broadcast %cst_209 : f32 to vector<2x1xf32>
    %1179 = arith.cmpf oge, %1177, %1178 : vector<2x1xf32>
    %1180 = arith.select %1179, %1159, %1176 : vector<2x1xi1>, vector<2x1xf32>
    %1181 = vector.broadcast %1180 : vector<2x1xf32> to vector<2x8xf32>
    %1182 = arith.mulf %1181, %1170 : vector<2x8xf32>
    %1183 = arith.addf %1150, %1182 : vector<2x8xf32>
    %1184 = vector.broadcast %1180 : vector<2x1xf32> to vector<2x32xf32>
    %1185 = arith.mulf %1184, %1164 : vector<2x32xf32>
    %1186 = arith.addf %1153, %1185 : vector<2x32xf32>
    %cst_210 = arith.constant 1.000000e+00 : f32
    %1187 = vector.broadcast %cst_210 : f32 to vector<2x1xf32>
    %1188 = arith.addf %1156, %1187 : vector<2x1xf32>
    %1189 = arith.select %1179, %1156, %1188 : vector<2x1xi1>, vector<2x1xf32>
    %cst_211 = arith.constant 1.000000e+00 : f32
    %1190 = vector.broadcast %cst_211 : f32 to vector<2x1xf32>
    %1191 = arith.subf %1190, %1177 : vector<2x1xf32>
    %1192 = arith.select %1179, %15, %1191 : vector<2x1xi1>, vector<2x1xf32>
    %1193 = arith.select %1179, %1160, %1192 : vector<2x1xi1>, vector<2x1xf32>
    %cst_212 = arith.constant 4.000000e+00 : f32
    %1194 = vector.broadcast %cst_212 : f32 to vector<2x1xf32>
    %1195 = arith.select %1179, %1162, %1194 : vector<2x1xi1>, vector<2x1xf32>
    %1196 = arith.addf %1092, %1166 : vector<2x32xf32>
    %1197 = math.tanh %1196 : vector<2x32xf32>
    %cst_213 = arith.constant dense<0.000000e+00> : vector<2x41xf32>
    %1198 = tpu.matmul %1197, %5, %cst_213 {dimension_numbers = #tpu.dot_dimension_numbers<[1], [0], [0], [1], [0, 0, 1, 1], [], []>} : vector<2x32xf32>, vector<32x41xf32>, vector<2x41xf32> -> vector<2x41xf32>
    %1199 = vector.extract_strided_slice %1198 {offsets = [0, 0], sizes = [2, 32], strides = [1, 1]} : vector<2x41xf32> to vector<2x32xf32>
    %1200 = vector.extract_strided_slice %1198 {offsets = [0, 32], sizes = [2, 9], strides = [1, 1]} : vector<2x41xf32> to vector<2x9xf32>
    %1201 = vector.broadcast %6 : vector<1x9xf32> to vector<2x9xf32>
    %1202 = arith.addf %1200, %1201 : vector<2x9xf32>
    %1203 = vector.extract_strided_slice %1202 {offsets = [0, 1], sizes = [2, 8], strides = [1, 1]} : vector<2x9xf32> to vector<2x8xf32>
    %1204 = vector.extract_strided_slice %1202 {offsets = [0, 0], sizes = [2, 1], strides = [1, 1]} : vector<2x9xf32> to vector<2x1xf32>
    %1205 = arith.negf %1204 : vector<2x1xf32>
    %1206 = math.exp %1205 : vector<2x1xf32>
    %cst_214 = arith.constant 1.000000e+00 : f32
    %1207 = vector.broadcast %cst_214 : f32 to vector<2x1xf32>
    %1208 = arith.addf %1207, %1206 : vector<2x1xf32>
    %1209 = arith.divf %1207, %1208 : vector<2x1xf32>
    %1210 = arith.addf %1177, %1209 : vector<2x1xf32>
    %cst_215 = arith.constant 9.900000e-01 : f32
    %1211 = vector.broadcast %cst_215 : f32 to vector<2x1xf32>
    %1212 = arith.cmpf oge, %1210, %1211 : vector<2x1xf32>
    %1213 = arith.select %1212, %1192, %1209 : vector<2x1xi1>, vector<2x1xf32>
    %1214 = vector.broadcast %1213 : vector<2x1xf32> to vector<2x8xf32>
    %1215 = arith.mulf %1214, %1203 : vector<2x8xf32>
    %1216 = arith.addf %1183, %1215 : vector<2x8xf32>
    %1217 = vector.broadcast %1213 : vector<2x1xf32> to vector<2x32xf32>
    %1218 = arith.mulf %1217, %1197 : vector<2x32xf32>
    %1219 = arith.addf %1186, %1218 : vector<2x32xf32>
    %cst_216 = arith.constant 1.000000e+00 : f32
    %1220 = vector.broadcast %cst_216 : f32 to vector<2x1xf32>
    %1221 = arith.addf %1189, %1220 : vector<2x1xf32>
    %1222 = arith.select %1212, %1189, %1221 : vector<2x1xi1>, vector<2x1xf32>
    %cst_217 = arith.constant 1.000000e+00 : f32
    %1223 = vector.broadcast %cst_217 : f32 to vector<2x1xf32>
    %1224 = arith.subf %1223, %1210 : vector<2x1xf32>
    %1225 = arith.select %1212, %15, %1224 : vector<2x1xi1>, vector<2x1xf32>
    %1226 = arith.select %1212, %1193, %1225 : vector<2x1xi1>, vector<2x1xf32>
    %cst_218 = arith.constant 5.000000e+00 : f32
    %1227 = vector.broadcast %cst_218 : f32 to vector<2x1xf32>
    %1228 = arith.select %1212, %1195, %1227 : vector<2x1xi1>, vector<2x1xf32>
    %1229 = arith.addf %1092, %1199 : vector<2x32xf32>
    %1230 = math.tanh %1229 : vector<2x32xf32>
    %cst_219 = arith.constant dense<0.000000e+00> : vector<2x41xf32>
    %1231 = tpu.matmul %1230, %5, %cst_219 {dimension_numbers = #tpu.dot_dimension_numbers<[1], [0], [0], [1], [0, 0, 1, 1], [], []>} : vector<2x32xf32>, vector<32x41xf32>, vector<2x41xf32> -> vector<2x41xf32>
    %1232 = vector.extract_strided_slice %1231 {offsets = [0, 32], sizes = [2, 9], strides = [1, 1]} : vector<2x41xf32> to vector<2x9xf32>
    %1233 = vector.broadcast %6 : vector<1x9xf32> to vector<2x9xf32>
    %1234 = arith.addf %1232, %1233 : vector<2x9xf32>
    %1235 = vector.extract_strided_slice %1234 {offsets = [0, 1], sizes = [2, 8], strides = [1, 1]} : vector<2x9xf32> to vector<2x8xf32>
    %1236 = vector.broadcast %1225 : vector<2x1xf32> to vector<2x8xf32>
    %1237 = arith.mulf %1236, %1235 : vector<2x8xf32>
    %1238 = arith.addf %1216, %1237 : vector<2x8xf32>
    %1239 = vector.broadcast %1225 : vector<2x1xf32> to vector<2x32xf32>
    %1240 = arith.mulf %1239, %1230 : vector<2x32xf32>
    %1241 = arith.addf %1219, %1240 : vector<2x32xf32>
    %1242 = arith.addf %1091, %1226 : vector<2x1xf32>
    %1243 = arith.addf %1242, %1228 : vector<2x1xf32>
    %1244 = vector.shape_cast %168 : vector<2x8xf32> to vector<1x2x8xf32>
    %1245 = vector.shape_cast %321 : vector<2x8xf32> to vector<1x2x8xf32>
    %1246 = vector.shape_cast %474 : vector<2x8xf32> to vector<1x2x8xf32>
    %1247 = vector.shape_cast %627 : vector<2x8xf32> to vector<1x2x8xf32>
    %1248 = vector.shape_cast %780 : vector<2x8xf32> to vector<1x2x8xf32>
    %1249 = vector.shape_cast %933 : vector<2x8xf32> to vector<1x2x8xf32>
    %1250 = vector.shape_cast %1086 : vector<2x8xf32> to vector<1x2x8xf32>
    %1251 = vector.shape_cast %1238 : vector<2x8xf32> to vector<1x2x8xf32>
    %1252 = tpu.concatenate %1244, %1245, %1246, %1247, %1248, %1249, %1250, %1251 in 0 : vector<1x2x8xf32>, vector<1x2x8xf32>, vector<1x2x8xf32>, vector<1x2x8xf32>, vector<1x2x8xf32>, vector<1x2x8xf32>, vector<1x2x8xf32>, vector<1x2x8xf32> -> vector<8x2x8xf32>
    %c0_220 = arith.constant 0 : index
    %c0_221 = arith.constant 0 : index
    %c0_222 = arith.constant 0 : index
    %1253 = vector.load %arg4[%c0_220, %c0_221, %c0_222] : memref<8x2x8xf32, #tpu.memory_space<vmem>>, vector<8x2x8xf32>
    tpu.vector_store %arg4[%c0_220, %c0_221, %c0_222], %1252 {strides = array<i32>} : memref<8x2x8xf32, #tpu.memory_space<vmem>>, vector<8x2x8xf32>,
    %c0_223 = arith.constant 0 : index
    %c0_224 = arith.constant 0 : index
    %1254 = vector.load %arg5[%c0_223, %c0_224] : memref<2x34xf32, #tpu.memory_space<vmem>>, vector<2x32xf32>
    tpu.vector_store %arg5[%c0_223, %c0_224], %1241 {strides = array<i32>} : memref<2x34xf32, #tpu.memory_space<vmem>>, vector<2x32xf32>,
    %c0_225 = arith.constant 0 : index
    %c32 = arith.constant 32 : index
    %1255 = vector.load %arg5[%c0_225, %c32] : memref<2x34xf32, #tpu.memory_space<vmem>>, vector<2x1xf32>
    tpu.vector_store %arg5[%c0_225, %c32], %1243 {strides = array<i32>} : memref<2x34xf32, #tpu.memory_space<vmem>>, vector<2x1xf32>,
    %c0_226 = arith.constant 0 : index
    %c33 = arith.constant 33 : index
    %1256 = vector.load %arg5[%c0_226, %c33] : memref<2x34xf32, #tpu.memory_space<vmem>>, vector<2x1xf32>
    tpu.vector_store %arg5[%c0_226, %c33], %1222 {strides = array<i32>} : memref<2x34xf32, #tpu.memory_space<vmem>>, vector<2x1xf32>,
    return
  }
}

</mosaic_0001>

<llo_original>
// kernel: tpu_custom_call.1
$region0: #{tpu_custom_call.1}
  #allocation0 [shape = 'u32[]', space=smem, size = 0x4, offset = 0x4, fixed_abs, tag = 'smem constant byte address 0x4 - core index']
  #allocation1 [shape = 'u32[144,128]{1,0:T(1,128)}', space=vmem, size = 0x12000, scoped, tag = 'internal scratch']
  %s0 = inlined_call_operand.vmem [shape: f32[16,8], index: 0, kind: input, shape index: {}]
  %s1 = inlined_call_operand.vmem [shape: f32[2,34], index: 1, kind: input, shape index: {}]
  %s2 = inlined_call_operand.vmem [shape: f32[10,32], index: 2, kind: input, shape index: {}]
  %s3 = inlined_call_operand.hbm [shape: f32[33,41], index: 3, kind: input, shape index: {}]
  %s4 = inlined_call_operand.hbm [shape: f32[8,2,8], index: 4, kind: output, shape index: {0}]
  %s5 = inlined_call_operand.hbm [shape: f32[2,34], index: 5, kind: output, shape index: {1}]
  %6 = xla_tuple %s4, %s5
  %s7 = sld [smem:[#allocation0]]
  $region38: #{tpu_custom_call.1} parent=0
    _
  %s9 = ssub.s32 1, %s7
  %s10 = scalar_select 0, %s9, %s7
  $region1: #{tpu_custom_call.1} parent=0
    #allocation2 [shape = 'u8[20480]{0}', space=vmem, size = 0x5000, scoped, tag = 'input window, operand 3, single buffered']
    #allocation3 [shape = 's32[1]{0}', space=sflag, size = 0x4, scoped, tag = 'scoped memory for tpu_custom_call.1']
    #allocation4 [shape = 's32[1]{0}', space=sflag, size = 0x4, scoped, tag = 'scoped memory for tpu_custom_call.1']
    #allocation5 [shape = 'u8[8192]{0}', space=vmem, size = 0x2000, scoped, tag = 'output window, operand 0, single buffered']
    #allocation6 [shape = 'u8[1024]{0}', space=vmem, size = 0x400, scoped, tag = 'output window, operand 1, single buffered']
    #allocation7 [shape = 's32[1]{0}', space=sflag, size = 0x4, scoped, tag = 'scoped memory for tpu_custom_call.1']
    %11 = vsyncpa [#allocation3], 0
    %12 = vsyncpa [#allocation4], 0
    %13 = vsyncpa [#allocation7], 0
    // Predicated region
    $region2: #{tpu_custom_call.1} parent=1 // pred_check
      _
    $region3: #{tpu_custom_call.1} parent=1 // pred_check_branch
      %15 = sbr.rel (0) target = $region5
    $region4: #{tpu_custom_call.1} parent=1 // pred_region
      _
    $region5: #{tpu_custom_call.1} parent=1 // pred_fallthru
      _
    // Predicated region
    $region6: #{tpu_custom_call.1} parent=1 // pred_check
      _
    $region7: #{tpu_custom_call.1} parent=1 // pred_check_branch
      %17 = sbr.rel (0) target = $region9
    $region8: #{tpu_custom_call.1} parent=1 // pred_region
      _
    $region9: #{tpu_custom_call.1} parent=1 // pred_fallthru
      _
    // Predicated region
    $region10: #{tpu_custom_call.1} parent=1 // pred_check
      _
    $region11: #{tpu_custom_call.1} parent=1 // pred_check_branch
      %19 = sbr.rel (0) target = $region13
    $region12: #{tpu_custom_call.1} parent=1 // pred_region
      _
    $region13: #{tpu_custom_call.1} parent=1 // pred_fallthru
      _
    // Predicated region
    $region14: #{tpu_custom_call.1} parent=1 // pred_check
      _
    $region15: #{tpu_custom_call.1} parent=1 // pred_check_branch
      %21 = sbr.rel (0) target = $region17
    $region16: #{tpu_custom_call.1} parent=1 // pred_region
      %s23 = ssub.s32 640, 640
      %24 = vsyncadd [#allocation3], %s23
      %s25 = sshll.u32 [#allocation2], 4
      %s26 = int_to_ptr.vmem [resolvable:$true] %s25
      %31 = dma.hbm_to_vmem [thread:$0]  %s3, 640, %s26, [#allocation3], 128, 128, 8
    $region17: #{tpu_custom_call.1} parent=1 // pred_fallthru
      _
    // Predicated region
    $region18: #{tpu_custom_call.1} parent=1 // pred_check
      _
    $region19: #{tpu_custom_call.1} parent=1 // pred_check_branch
      %33 = sbr.rel (0) target = $region21
    $region20: #{tpu_custom_call.1} parent=1 // pred_region
      %34 = dma.done [#allocation3], 640
    $region21: #{tpu_custom_call.1} parent=1 // pred_fallthru
      _
    %v35 = vld [vmem:[%s2] sm:$0xff]
    %v36 = vld [vmem:[%s2 + $0x8] sm:$0x3]
    %v37 = vld [vmem:[#allocation2] sm:$0xff]
    %v38 = vld [vmem:[#allocation2 + $0x8] sm:$0xff]
    %v39 = vld [vmem:[#allocation2 + $0x10] sm:$0xff]
    %v40 = vld [vmem:[#allocation2 + $0x18] sm:$0xff]
    %v41 = vld [vmem:[#allocation2 + $0x20] sm:$0x1]
    %v42 = vld [vmem:[%s0] sm:$0xff]
    %v43 = vld [vmem:[%s0 + $0x8] sm:$0xff]
    %v44 = vlaneseq
    %v45 = vshrl.u32 %v44, 7
    %v46 = vsub.s32 0, %v45
    %v47 = vrot.slane %v36, %v46
    %vm48 = vcmask 64512
    %v50 = vsel %vm48, %v42, 0
    %v53 = vsel %vm48, %v43, 0
    %55 = vmatprep.subr.mxu0 0.0
    %56 = vmatpush1.msra.mxu0 %v35
    %57 = vmatprep.subr.mxu0 0.0
    %58 = vmatpush1.msra.mxu0 0.0
    %59 = vmatprep.subr.mxu0 0.0
    %60 = vmatpush1.msra.mxu0 0.0
    %61 = vmatprep.subr.mxu0 0.0
    %62 = vmatpush1.msra.mxu0 0.0
    %63 = vmatprep.subr.mxu0 0.0
    %64 = vmatpush1.msra.mxu0 0.0
    %65 = vmatprep.subr.mxu0 0.0
    %66 = vmatpush1.msra.mxu0 0.0
    %67 = vmatprep.subr.mxu0 0.0
    %68 = vmatpush1.msra.mxu0 0.0
    %69 = vmatprep.subr.mxu0 0.0
    %70 = vmatpush1.msra.mxu0 0.0
    %71 = vmatprep.subr.mxu0 0.0
    %72 = vmatpush1.msra.mxu0 0.0
    %73 = vmatprep.subr.mxu0 0.0
    %74 = vmatpush1.msra.mxu0 0.0
    %75 = vmatprep.subr.mxu0 0.0
    %76 = vmatpush1.msra.mxu0 0.0
    %77 = vmatprep.subr.mxu0 0.0
    %78 = vmatpush1.msra.mxu0 0.0
    %79 = vmatprep.subr.mxu0 0.0
    %80 = vmatpush1.msra.mxu0 0.0
    %81 = vmatprep.subr.mxu0 0.0
    %82 = vmatpush1.msra.mxu0 0.0
    %83 = vmatprep.subr.mxu0 0.0
    %84 = vmatpush1.msra.mxu0 0.0
    %85 = vmatprep.subr.mxu0 0.0
    %86 = vmatpush1.msra.mxu0 0.0
    %87 = vmatprep.subr.mxu0 0.0
    %88 = vmatpush1.msra.mxu0 0.0
    %89 = vmatprep.subr.mxu0 0.0
    %90 = vmatpush1.msra.mxu0 0.0
    %91 = vmatprep.subr.mxu0 0.0
    %92 = vmatpush1.msra.mxu0 0.0
    %93 = vmatprep.subr.mxu0 0.0
    %94 = vmatpush1.msra.mxu0 0.0
    %95 = vmatprep.subr.mxu0 0.0
    %96 = vmatpush1.msra.mxu0 0.0
    %97 = vmatprep.subr.mxu0 0.0
    %98 = vmatpush1.msra.mxu0 0.0
    %99 = vmatprep.subr.mxu0 0.0
    %100 = vmatpush1.msra.mxu0 0.0
    %101 = vmatprep.subr.mxu0 0.0
    %102 = vmatpush1.msra.mxu0 0.0
    %103 = vmatprep.subr.mxu0 0.0
    %104 = vmatpush1.msra.mxu0 0.0
    %105 = vmatprep.subr.mxu0 0.0
    %106 = vmatpush1.msra.mxu0 0.0
    %107 = vmatprep.subr.mxu0 0.0
    %108 = vmatpush1.msra.mxu0 0.0
    %109 = vmatprep.subr.mxu0 0.0
    %110 = vmatpush1.msra.mxu0 0.0
    %111 = vmatprep.subr.mxu0 0.0
    %112 = vmatpush1.msra.mxu0 0.0
    %113 = vmatprep.subr.mxu0 0.0
    %114 = vmatpush1.msra.mxu0 0.0
    %115 = vmatprep.subr.mxu0 0.0
    %116 = vmatpush1.msra.mxu0 0.0
    %117 = vmatprep.subr.mxu0 0.0
    %118 = vmatpush1.msra.mxu0 0.0
    %119 = vmatprep.mubr.f32.mxu0 0.0
    %120 = vmatmul.mubr.f32.gmra.mrb[0].mxu0 %v50
    %v121 = vpop.f32.mrb[0].mxu0
    %v122 = vadd.f32 %v47, %v121
    %v123 = vpop.f32.mrb[0].mxu0
    %124 = vmatprep.mubr.f32.mxu0 0.0
    %125 = vmatmul.mubr.f32.gmra.mrb[0].mxu0 %v53
    %v126 = vpop.f32.mrb[0].mxu0
    %v127 = vadd.f32 %v47, %v126
    %v128 = vpop.f32.mrb[0].mxu0
    %129 = vdwg.mxu0
    %v130 = vld [vmem:[%s1] sm:$0x3]
    %vm131 = vcmask 261120
    %v133 = vsel %vm131, %v130, 0
    %135 = vmatprep.subr.mxu0 0.0
    %136 = vmatpush1.msra.mxu0 %v37
    %137 = vmatprep.subr.mxu0 0.0
    %138 = vmatpush1.msra.mxu0 %v38
    %139 = vmatprep.subr.mxu0 0.0
    %140 = vmatpush1.msra.mxu0 %v39
    %141 = vmatprep.subr.mxu0 0.0
    %142 = vmatpush1.msra.mxu0 %v40
    %143 = vmatprep.subr.mxu0 0.0
    %144 = vmatpush1.msra.mxu0 0.0
    %145 = vmatprep.subr.mxu0 0.0
    %146 = vmatpush1.msra.mxu0 0.0
    %147 = vmatprep.subr.mxu0 0.0
    %148 = vmatpush1.msra.mxu0 0.0
    %149 = vmatprep.subr.mxu0 0.0
    %150 = vmatpush1.msra.mxu0 0.0
    %151 = vmatprep.subr.mxu0 0.0
    %152 = vmatpush1.msra.mxu0 0.0
    %153 = vmatprep.subr.mxu0 0.0
    %154 = vmatpush1.msra.mxu0 0.0
    %155 = vmatprep.subr.mxu0 0.0
    %156 = vmatpush1.msra.mxu0 0.0
    %157 = vmatprep.subr.mxu0 0.0
    %158 = vmatpush1.msra.mxu0 0.0
    %159 = vmatprep.subr.mxu0 0.0
    %160 = vmatpush1.msra.mxu0 0.0
    %161 = vmatprep.subr.mxu0 0.0
    %162 = vmatpush1.msra.mxu0 0.0
    %163 = vmatprep.subr.mxu0 0.0
    %164 = vmatpush1.msra.mxu0 0.0
    %165 = vmatprep.subr.mxu0 0.0
    %166 = vmatpush1.msra.mxu0 0.0
    %167 = vmatprep.subr.mxu0 0.0
    %168 = vmatpush1.msra.mxu0 0.0
    %169 = vmatprep.subr.mxu0 0.0
    %170 = vmatpush1.msra.mxu0 0.0
    %171 = vmatprep.subr.mxu0 0.0
    %172 = vmatpush1.msra.mxu0 0.0
    %173 = vmatprep.subr.mxu0 0.0
    %174 = vmatpush1.msra.mxu0 0.0
    %175 = vmatprep.subr.mxu0 0.0
    %176 = vmatpush1.msra.mxu0 0.0
    %177 = vmatprep.subr.mxu0 0.0
    %178 = vmatpush1.msra.mxu0 0.0
    %179 = vmatprep.subr.mxu0 0.0
    %180 = vmatpush1.msra.mxu0 0.0
    %181 = vmatprep.subr.mxu0 0.0
    %182 = vmatpush1.msra.mxu0 0.0
    %183 = vmatprep.subr.mxu0 0.0
    %184 = vmatpush1.msra.mxu0 0.0
    %185 = vmatprep.subr.mxu0 0.0
    %186 = vmatpush1.msra.mxu0 0.0
    %187 = vmatprep.subr.mxu0 0.0
    %188 = vmatpush1.msra.mxu0 0.0
    %189 = vmatprep.subr.mxu0 0.0
    %190 = vmatpush1.msra.mxu0 0.0
    %191 = vmatprep.subr.mxu0 0.0
    %192 = vmatpush1.msra.mxu0 0.0
    %193 = vmatprep.subr.mxu0 0.0
    %194 = vmatpush1.msra.mxu0 0.0
    %195 = vmatprep.subr.mxu0 0.0
    %196 = vmatpush1.msra.mxu0 0.0
    %197 = vmatprep.subr.mxu0 0.0
    %198 = vmatpush1.msra.mxu0 0.0
    %199 = vmatprep.mubr.f32.mxu0 0.0
    %200 = vmatmul.mubr.f32.gmra.mrb[0].mxu0 %v133
    %v201 = vpop.f32.mrb[0].mxu0
    %v202 = vadd.f32 0.0, %v201
    %v203 = vpop.f32.mrb[0].mxu0
    %204 = vdwg.mxu0
    %v205 = vlaneseq
    %v206 = vshrl.u32 %v205, 7
    %v207 = vsub.s32 1, %v206
    %v208 = vrot.slane %v36, %v207
    %v209 = vadd.f32 %v122, %v208
    %v210 = vadd.f32 %v130, 1.0
    %v211 = vadd.f32 %v209, %v202
    %v212 = vtanh.pop %v211
    %v214 = vsel %vm131, %v212, 0
    %216 = vmatprep.subr.mxu0 0.0
    %217 = vmatpush1.msra.mxu0 %v37
    %218 = vmatprep.subr.mxu0 0.0
    %219 = vmatpush1.msra.mxu0 %v38
    %220 = vmatprep.subr.mxu0 0.0
    %221 = vmatpush1.msra.mxu0 %v39
    %222 = vmatprep.subr.mxu0 0.0
    %223 = vmatpush1.msra.mxu0 %v40
    %224 = vmatprep.subr.mxu0 0.0
    %225 = vmatpush1.msra.mxu0 0.0
    %226 = vmatprep.subr.mxu0 0.0
    %227 = vmatpush1.msra.mxu0 0.0
    %228 = vmatprep.subr.mxu0 0.0
    %229 = vmatpush1.msra.mxu0 0.0
    %230 = vmatprep.subr.mxu0 0.0
    %231 = vmatpush1.msra.mxu0 0.0
    %232 = vmatprep.subr.mxu0 0.0
    %233 = vmatpush1.msra.mxu0 0.0
    %234 = vmatprep.subr.mxu0 0.0
    %235 = vmatpush1.msra.mxu0 0.0
    %236 = vmatprep.subr.mxu0 0.0
    %237 = vmatpush1.msra.mxu0 0.0
    %238 = vmatprep.subr.mxu0 0.0
    %239 = vmatpush1.msra.mxu0 0.0
    %240 = vmatprep.subr.mxu0 0.0
    %241 = vmatpush1.msra.mxu0 0.0
    %242 = vmatprep.subr.mxu0 0.0
    %243 = vmatpush1.msra.mxu0 0.0
    %244 = vmatprep.subr.mxu0 0.0
    %245 = vmatpush1.msra.mxu0 0.0
    %246 = vmatprep.subr.mxu0 0.0
    %247 = vmatpush1.msra.mxu0 0.0
    %248 = vmatprep.subr.mxu0 0.0
    %249 = vmatpush1.msra.mxu0 0.0
    %250 = vmatprep.subr.mxu0 0.0
    %251 = vmatpush1.msra.mxu0 0.0
    %252 = vmatprep.subr.mxu0 0.0
    %253 = vmatpush1.msra.mxu0 0.0
    %254 = vmatprep.subr.mxu0 0.0
    %255 = vmatpush1.msra.mxu0 0.0
    %256 = vmatprep.subr.mxu0 0.0
    %257 = vmatpush1.msra.mxu0 0.0
    %258 = vmatprep.subr.mxu0 0.0
    %259 = vmatpush1.msra.mxu0 0.0
    %260 = vmatprep.subr.mxu0 0.0
    %261 = vmatpush1.msra.mxu0 0.0
    %262 = vmatprep.subr.mxu0 0.0
    %263 = vmatpush1.msra.mxu0 0.0
    %264 = vmatprep.subr.mxu0 0.0
    %265 = vmatpush1.msra.mxu0 0.0
    %266 = vmatprep.subr.mxu0 0.0
    %267 = vmatpush1.msra.mxu0 0.0
    %268 = vmatprep.subr.mxu0 0.0
    %269 = vmatpush1.msra.mxu0 0.0
    %270 = vmatprep.subr.mxu0 0.0
    %271 = vmatpush1.msra.mxu0 0.0
    %272 = vmatprep.subr.mxu0 0.0
    %273 = vmatpush1.msra.mxu0 0.0
    %274 = vmatprep.subr.mxu0 0.0
    %275 = vmatpush1.msra.mxu0 0.0
    %276 = vmatprep.subr.mxu0 0.0
    %277 = vmatpush1.msra.mxu0 0.0
    %278 = vmatprep.subr.mxu0 0.0
    %279 = vmatpush1.msra.mxu0 0.0
    %280 = vmatprep.mubr.f32.mxu0 0.0
    %281 = vmatmul.mubr.f32.gmra.mrb[0].mxu0 %v214
    %v282 = vpop.f32.mrb[0].mxu0
    %v283 = vadd.f32 0.0, %v282
    %v284 = vpop.f32.mrb[0].mxu0
    %285 = vdwg.mxu0
    %v286 = vlaneseq
    %v287 = vshrl.u32 %v286, 7
    %v288 = vsub.s32 0, %v287
    %v289 = vrot.slane %v41, %v288
    %v290 = vadd.f32 %v283, %v289
    %v291 = vxor.u32 %v290, 2147483648
    %v292 = vmul.f32 %v291, 1.442695
    %v293 = vpow.pop %v292
    %v294 = vadd.f32 %v293, 1.0
    %v295 = vrcp.pop %v294
    %v296 = vmul.f32 1.0, %v295
    %v297 = vadd.f32 %v296, 0.0
    %vm298 = vcmp.ge.f32.partialorder %v297, 0.99
    %v299 = vsel %vm298, 1.0, %v296
    %301 = vset.pattern.permute.xlu0 32
    %302 = vperm.xlu0 %301, %v299
    %v303 = vpop.permute.xlu0 %302
    %v305 = vmul.f32 %v303, %v290
    %v306 = vadd.f32 %v305, 0.0
    %v307 = vmul.f32 %v303, %v283
    %v308 = vadd.f32 %v307, 0.0
    %v309 = vadd.f32 %v210, 1.0
    %311 = vrot.lane.b32.xlu0 %v210, 127
    %v312 = vpop.permute.xlu0 %311
    %315 = vrot.lane.b32.xlu0 %v309, 127
    %v316 = vpop.permute.xlu0 %315
    %v318 = vsel %vm298, %v312, %v316
    %v319 = vsub.f32 1.0, %v297
    %v320 = vsel %vm298, 0.0, %v319
    %v321 = vsel %vm298, 1.0, %v319
    %v322 = vsel %vm298, 0.0, 2.0
    %v323 = vadd.f32 %v122, %v283
    %v324 = vtanh.pop %v323
    %v326 = vsel %vm131, %v324, 0
    %328 = vmatprep.subr.mxu0 0.0
    %329 = vmatpush1.msra.mxu0 %v37
    %330 = vmatprep.subr.mxu0 0.0
    %331 = vmatpush1.msra.mxu0 %v38
    %332 = vmatprep.subr.mxu0 0.0
    %333 = vmatpush1.msra.mxu0 %v39
    %334 = vmatprep.subr.mxu0 0.0
    %335 = vmatpush1.msra.mxu0 %v40
    %336 = vmatprep.subr.mxu0 0.0
    %337 = vmatpush1.msra.mxu0 0.0
    %338 = vmatprep.subr.mxu0 0.0
    %339 = vmatpush1.msra.mxu0 0.0
    %340 = vmatprep.subr.mxu0 0.0
    %341 = vmatpush1.msra.mxu0 0.0
    %342 = vmatprep.subr.mxu0 0.0
    %343 = vmatpush1.msra.mxu0 0.0
    %344 = vmatprep.subr.mxu0 0.0
    %345 = vmatpush1.msra.mxu0 0.0
    %346 = vmatprep.subr.mxu0 0.0
    %347 = vmatpush1.msra.mxu0 0.0
    %348 = vmatprep.subr.mxu0 0.0
    %349 = vmatpush1.msra.mxu0 0.0
    %350 = vmatprep.subr.mxu0 0.0
    %351 = vmatpush1.msra.mxu0 0.0
    %352 = vmatprep.subr.mxu0 0.0
    %353 = vmatpush1.msra.mxu0 0.0
    %354 = vmatprep.subr.mxu0 0.0
    %355 = vmatpush1.msra.mxu0 0.0
    %356 = vmatprep.subr.mxu0 0.0
    %357 = vmatpush1.msra.mxu0 0.0
    %358 = vmatprep.subr.mxu0 0.0
    %359 = vmatpush1.msra.mxu0 0.0
    %360 = vmatprep.subr.mxu0 0.0
    %361 = vmatpush1.msra.mxu0 0.0
    %362 = vmatprep.subr.mxu0 0.0
    %363 = vmatpush1.msra.mxu0 0.0
    %364 = vmatprep.subr.mxu0 0.0
    %365 = vmatpush1.msra.mxu0 0.0
    %366 = vmatprep.subr.mxu0 0.0
    %367 = vmatpush1.msra.mxu0 0.0
    %368 = vmatprep.subr.mxu0 0.0
    %369 = vmatpush1.msra.mxu0 0.0
    %370 = vmatprep.subr.mxu0 0.0
    %371 = vmatpush1.msra.mxu0 0.0
    %372 = vmatprep.subr.mxu0 0.0
    %373 = vmatpush1.msra.mxu0 0.0
    %374 = vmatprep.subr.mxu0 0.0
    %375 = vmatpush1.msra.mxu0 0.0
    %376 = vmatprep.subr.mxu0 0.0
    %377 = vmatpush1.msra.mxu0 0.0
    %378 = vmatprep.subr.mxu0 0.0
    %379 = vmatpush1.msra.mxu0 0.0
    %380 = vmatprep.subr.mxu0 0.0
    %381 = vmatpush1.msra.mxu0 0.0
    %382 = vmatprep.subr.mxu0 0.0
    %383 = vmatpush1.msra.mxu0 0.0
    %384 = vmatprep.subr.mxu0 0.0
    %385 = vmatpush1.msra.mxu0 0.0
    %386 = vmatprep.subr.mxu0 0.0
    %387 = vmatpush1.msra.mxu0 0.0
    %388 = vmatprep.subr.mxu0 0.0
    %389 = vmatpush1.msra.mxu0 0.0
    %390 = vmatprep.subr.mxu0 0.0
    %391 = vmatpush1.msra.mxu0 0.0
    %392 = vmatprep.mubr.f32.mxu0 0.0
    %393 = vmatmul.mubr.f32.gmra.mrb[0].mxu0 %v326
    %v394 = vpop.f32.mrb[0].mxu0
    %v395 = vadd.f32 0.0, %v394
    %v396 = vpop.f32.mrb[0].mxu0
    %397 = vdwg.mxu0
    %v398 = vadd.f32 %v395, %v289
    %v399 = vxor.u32 %v398, 2147483648
    %v400 = vmul.f32 %v399, 1.442695
    %v401 = vpow.pop %v400
    %v402 = vadd.f32 %v401, 1.0
    %v403 = vrcp.pop %v402
    %v404 = vmul.f32 1.0, %v403
    %v405 = vadd.f32 %v297, %v404
    %vm406 = vcmp.ge.f32.partialorder %v405, 0.99
    %v407 = vsel %vm406, %v320, %v404
    %409 = vset.pattern.permute.xlu0 32
    %410 = vperm.xlu0 %409, %v407
    %v411 = vpop.permute.xlu0 %410
    %v413 = vmul.f32 %v411, %v398
    %v414 = vadd.f32 %v306, %v413
    %v415 = vmul.f32 %v411, %v395
    %v416 = vadd.f32 %v308, %v415
    %v417 = vadd.f32 %v318, 1.0
    %v418 = vsel %vm406, %v318, %v417
    %v419 = vsub.f32 1.0, %v405
    %v420 = vsel %vm406, 0.0, %v419
    %v421 = vsel %vm406, %v321, %v419
    %v422 = vsel %vm406, %v322, 3.0
    %v423 = vadd.f32 %v122, %v395
    %v424 = vtanh.pop %v423
    %v426 = vsel %vm131, %v424, 0
    %428 = vmatprep.subr.mxu0 0.0
    %429 = vmatpush1.msra.mxu0 %v37
    %430 = vmatprep.subr.mxu0 0.0
    %431 = vmatpush1.msra.mxu0 %v38
    %432 = vmatprep.subr.mxu0 0.0
    %433 = vmatpush1.msra.mxu0 %v39
    %434 = vmatprep.subr.mxu0 0.0
    %435 = vmatpush1.msra.mxu0 %v40
    %436 = vmatprep.subr.mxu0 0.0
    %437 = vmatpush1.msra.mxu0 0.0
    %438 = vmatprep.subr.mxu0 0.0
    %439 = vmatpush1.msra.mxu0 0.0
    %440 = vmatprep.subr.mxu0 0.0
    %441 = vmatpush1.msra.mxu0 0.0
    %442 = vmatprep.subr.mxu0 0.0
    %443 = vmatpush1.msra.mxu0 0.0
    %444 = vmatprep.subr.mxu0 0.0
    %445 = vmatpush1.msra.mxu0 0.0
    %446 = vmatprep.subr.mxu0 0.0
    %447 = vmatpush1.msra.mxu0 0.0
    %448 = vmatprep.subr.mxu0 0.0
    %449 = vmatpush1.msra.mxu0 0.0
    %450 = vmatprep.subr.mxu0 0.0
    %451 = vmatpush1.msra.mxu0 0.0
    %452 = vmatprep.subr.mxu0 0.0
    %453 = vmatpush1.msra.mxu0 0.0
    %454 = vmatprep.subr.mxu0 0.0
    %455 = vmatpush1.msra.mxu0 0.0
    %456 = vmatprep.subr.mxu0 0.0
    %457 = vmatpush1.msra.mxu0 0.0
    %458 = vmatprep.subr.mxu0 0.0
    %459 = vmatpush1.msra.mxu0 0.0
    %460 = vmatprep.subr.mxu0 0.0
    %461 = vmatpush1.msra.mxu0 0.0
    %462 = vmatprep.subr.mxu0 0.0
    %463 = vmatpush1.msra.mxu0 0.0
    %464 = vmatprep.subr.mxu0 0.0
    %465 = vmatpush1.msra.mxu0 0.0
    %466 = vmatprep.subr.mxu0 0.0
    %467 = vmatpush1.msra.mxu0 0.0
    %468 = vmatprep.subr.mxu0 0.0
    %469 = vmatpush1.msra.mxu0 0.0
    %470 = vmatprep.subr.mxu0 0.0
    %471 = vmatpush1.msra.mxu0 0.0
    %472 = vmatprep.subr.mxu0 0.0
    %473 = vmatpush1.msra.mxu0 0.0
    %474 = vmatprep.subr.mxu0 0.0
    %475 = vmatpush1.msra.mxu0 0.0
    %476 = vmatprep.subr.mxu0 0.0
    %477 = vmatpush1.msra.mxu0 0.0
    %478 = vmatprep.subr.mxu0 0.0
    %479 = vmatpush1.msra.mxu0 0.0
    %480 = vmatprep.subr.mxu0 0.0
    %481 = vmatpush1.msra.mxu0 0.0
    %482 = vmatprep.subr.mxu0 0.0
    %483 = vmatpush1.msra.mxu0 0.0
    %484 = vmatprep.subr.mxu0 0.0
    %485 = vmatpush1.msra.mxu0 0.0
    %486 = vmatprep.subr.mxu0 0.0
    %487 = vmatpush1.msra.mxu0 0.0
    %488 = vmatprep.subr.mxu0 0.0
    %489 = vmatpush1.msra.mxu0 0.0
    %490 = vmatprep.subr.mxu0 0.0
    %491 = vmatpush1.msra.mxu0 0.0
    %492 = vmatprep.mubr.f32.mxu0 0.0
    %493 = vmatmul.mubr.f32.gmra.mrb[0].mxu0 %v426
    %v494 = vpop.f32.mrb[0].mxu0
    %v495 = vadd.f32 0.0, %v494
    %v496 = vpop.f32.mrb[0].mxu0
    %497 = vdwg.mxu0
    %v498 = vadd.f32 %v495, %v289
    %v499 = vxor.u32 %v498, 2147483648
    %v500 = vmul.f32 %v499, 1.442695
    %v501 = vpow.pop %v500
    %v502 = vadd.f32 %v501, 1.0
    %v503 = vrcp.pop %v502
    %v504 = vmul.f32 1.0, %v503
    %v505 = vadd.f32 %v405, %v504
    %vm506 = vcmp.ge.f32.partialorder %v505, 0.99
    %v507 = vsel %vm506, %v420, %v504
    %509 = vset.pattern.permute.xlu0 32
    %510 = vperm.xlu0 %509, %v507
    %v511 = vpop.permute.xlu0 %510
    %v513 = vmul.f32 %v511, %v498
    %v514 = vadd.f32 %v414, %v513
    %v515 = vmul.f32 %v511, %v495
    %v516 = vadd.f32 %v416, %v515
    %v517 = vadd.f32 %v418, 1.0
    %v518 = vsel %vm506, %v418, %v517
    %v519 = vsub.f32 1.0, %v505
    %v520 = vsel %vm506, 0.0, %v519
    %v521 = vsel %vm506, %v421, %v519
    %v522 = vsel %vm506, %v422, 4.0
    %v523 = vadd.f32 %v122, %v495
    %v524 = vtanh.pop %v523
    %v526 = vsel %vm131, %v524, 0
    %528 = vmatprep.subr.mxu0 0.0
    %529 = vmatpush1.msra.mxu0 %v37
    %530 = vmatprep.subr.mxu0 0.0
    %531 = vmatpush1.msra.mxu0 %v38
    %532 = vmatprep.subr.mxu0 0.0
    %533 = vmatpush1.msra.mxu0 %v39
    %534 = vmatprep.subr.mxu0 0.0
    %535 = vmatpush1.msra.mxu0 %v40
    %536 = vmatprep.subr.mxu0 0.0
    %537 = vmatpush1.msra.mxu0 0.0
    %538 = vmatprep.subr.mxu0 0.0
    %539 = vmatpush1.msra.mxu0 0.0
    %540 = vmatprep.subr.mxu0 0.0
    %541 = vmatpush1.msra.mxu0 0.0
    %542 = vmatprep.subr.mxu0 0.0
    %543 = vmatpush1.msra.mxu0 0.0
    %544 = vmatprep.subr.mxu0 0.0
    %545 = vmatpush1.msra.mxu0 0.0
    %546 = vmatprep.subr.mxu0 0.0
    %547 = vmatpush1.msra.mxu0 0.0
    %548 = vmatprep.subr.mxu0 0.0
    %549 = vmatpush1.msra.mxu0 0.0
    %550 = vmatprep.subr.mxu0 0.0
    %551 = vmatpush1.msra.mxu0 0.0
    %552 = vmatprep.subr.mxu0 0.0
    %553 = vmatpush1.msra.mxu0 0.0
    %554 = vmatprep.subr.mxu0 0.0
    %555 = vmatpush1.msra.mxu0 0.0
    %556 = vmatprep.subr.mxu0 0.0
    %557 = vmatpush1.msra.mxu0 0.0
    %558 = vmatprep.subr.mxu0 0.0
    %559 = vmatpush1.msra.mxu0 0.0
    %560 = vmatprep.subr.mxu0 0.0
    %561 = vmatpush1.msra.mxu0 0.0
    %562 = vmatprep.subr.mxu0 0.0
    %563 = vmatpush1.msra.mxu0 0.0
    %564 = vmatprep.subr.mxu0 0.0
    %565 = vmatpush1.msra.mxu0 0.0
    %566 = vmatprep.subr.mxu0 0.0
    %567 = vmatpush1.msra.mxu0 0.0
    %568 = vmatprep.subr.mxu0 0.0
    %569 = vmatpush1.msra.mxu0 0.0
    %570 = vmatprep.subr.mxu0 0.0
    %571 = vmatpush1.msra.mxu0 0.0
    %572 = vmatprep.subr.mxu0 0.0
    %573 = vmatpush1.msra.mxu0 0.0
    %574 = vmatprep.subr.mxu0 0.0
    %575 = vmatpush1.msra.mxu0 0.0
    %576 = vmatprep.subr.mxu0 0.0
    %577 = vmatpush1.msra.mxu0 0.0
    %578 = vmatprep.subr.mxu0 0.0
    %579 = vmatpush1.msra.mxu0 0.0
    %580 = vmatprep.subr.mxu0 0.0
    %581 = vmatpush1.msra.mxu0 0.0
    %582 = vmatprep.subr.mxu0 0.0
    %583 = vmatpush1.msra.mxu0 0.0
    %584 = vmatprep.subr.mxu0 0.0
    %585 = vmatpush1.msra.mxu0 0.0
    %586 = vmatprep.subr.mxu0 0.0
    %587 = vmatpush1.msra.mxu0 0.0
    %588 = vmatprep.subr.mxu0 0.0
    %589 = vmatpush1.msra.mxu0 0.0
    %590 = vmatprep.subr.mxu0 0.0
    %591 = vmatpush1.msra.mxu0 0.0
    %592 = vmatprep.mubr.f32.mxu0 0.0
    %593 = vmatmul.mubr.f32.gmra.mrb[0].mxu0 %v526
    %v594 = vpop.f32.mrb[0].mxu0
    %v595 = vadd.f32 0.0, %v594
    %v596 = vpop.f32.mrb[0].mxu0
    %597 = vdwg.mxu0
    %v598 = vadd.f32 %v595, %v289
    %v599 = vxor.u32 %v598, 2147483648
    %v600 = vmul.f32 %v599, 1.442695
    %v601 = vpow.pop %v600
    %v602 = vadd.f32 %v601, 1.0
    %v603 = vrcp.pop %v602
    %v604 = vmul.f32 1.0, %v603
    %v605 = vadd.f32 %v505, %v604
    %vm606 = vcmp.ge.f32.partialorder %v605, 0.99
    %v607 = vsel %vm606, %v520, %v604
    %609 = vset.pattern.permute.xlu0 32
    %610 = vperm.xlu0 %609, %v607
    %v611 = vpop.permute.xlu0 %610
    %v613 = vmul.f32 %v611, %v598
    %v614 = vadd.f32 %v514, %v613
    %v615 = vmul.f32 %v611, %v595
    %v616 = vadd.f32 %v516, %v615
    %v617 = vadd.f32 %v518, 1.0
    %v618 = vsel %vm606, %v518, %v617
    %v619 = vsub.f32 1.0, %v605
    %v620 = vsel %vm606, 0.0, %v619
    %v621 = vsel %vm606, %v521, %v619
    %v622 = vsel %vm606, %v522, 5.0
    %v623 = vadd.f32 %v122, %v595
    %v624 = vtanh.pop %v623
    %v626 = vsel %vm131, %v624, 0
    %628 = vmatprep.subr.mxu0 0.0
    %629 = vmatpush1.msra.mxu0 %v37
    %630 = vmatprep.subr.mxu0 0.0
    %631 = vmatpush1.msra.mxu0 %v38
    %632 = vmatprep.subr.mxu0 0.0
    %633 = vmatpush1.msra.mxu0 %v39
    %634 = vmatprep.subr.mxu0 0.0
    %635 = vmatpush1.msra.mxu0 %v40
    %636 = vmatprep.subr.mxu0 0.0
    %637 = vmatpush1.msra.mxu0 0.0
    %638 = vmatprep.subr.mxu0 0.0
    %639 = vmatpush1.msra.mxu0 0.0
    %640 = vmatprep.subr.mxu0 0.0
    %641 = vmatpush1.msra.mxu0 0.0
    %642 = vmatprep.subr.mxu0 0.0
    %643 = vmatpush1.msra.mxu0 0.0
    %644 = vmatprep.subr.mxu0 0.0
    %645 = vmatpush1.msra.mxu0 0.0
    %646 = vmatprep.subr.mxu0 0.0
    %647 = vmatpush1.msra.mxu0 0.0
    %648 = vmatprep.subr.mxu0 0.0
    %649 = vmatpush1.msra.mxu0 0.0
    %650 = vmatprep.subr.mxu0 0.0
    %651 = vmatpush1.msra.mxu0 0.0
    %652 = vmatprep.subr.mxu0 0.0
    %653 = vmatpush1.msra.mxu0 0.0
    %654 = vmatprep.subr.mxu0 0.0
    %655 = vmatpush1.msra.mxu0 0.0
    %656 = vmatprep.subr.mxu0 0.0
    %657 = vmatpush1.msra.mxu0 0.0
    %658 = vmatprep.subr.mxu0 0.0
    %659 = vmatpush1.msra.mxu0 0.0
    %660 = vmatprep.subr.mxu0 0.0
    %661 = vmatpush1.msra.mxu0 0.0
    %662 = vmatprep.subr.mxu0 0.0
    %663 = vmatpush1.msra.mxu0 0.0
    %664 = vmatprep.subr.mxu0 0.0
    %665 = vmatpush1.msra.mxu0 0.0
    %666 = vmatprep.subr.mxu0 0.0
    %667 = vmatpush1.msra.mxu0 0.0
    %668 = vmatprep.subr.mxu0 0.0
    %669 = vmatpush1.msra.mxu0 0.0
    %670 = vmatprep.subr.mxu0 0.0
    %671 = vmatpush1.msra.mxu0 0.0
    %672 = vmatprep.subr.mxu0 0.0
    %673 = vmatpush1.msra.mxu0 0.0
    %674 = vmatprep.subr.mxu0 0.0
    %675 = vmatpush1.msra.mxu0 0.0
    %676 = vmatprep.subr.mxu0 0.0
    %677 = vmatpush1.msra.mxu0 0.0
    %678 = vmatprep.subr.mxu0 0.0
    %679 = vmatpush1.msra.mxu0 0.0
    %680 = vmatprep.subr.mxu0 0.0
    %681 = vmatpush1.msra.mxu0 0.0
    %682 = vmatprep.subr.mxu0 0.0
    %683 = vmatpush1.msra.mxu0 0.0
    %684 = vmatprep.subr.mxu0 0.0
    %685 = vmatpush1.msra.mxu0 0.0
    %686 = vmatprep.subr.mxu0 0.0
    %687 = vmatpush1.msra.mxu0 0.0
    %688 = vmatprep.subr.mxu0 0.0
    %689 = vmatpush1.msra.mxu0 0.0
    %690 = vmatprep.subr.mxu0 0.0
    %691 = vmatpush1.msra.mxu0 0.0
    %692 = vmatprep.mubr.f32.mxu0 0.0
    %693 = vmatmul.mubr.f32.gmra.mrb[0].mxu0 %v626
    %v694 = vpop.f32.mrb[0].mxu0
    %v695 = vadd.f32 0.0, %v694
    %v696 = vpop.f32.mrb[0].mxu0
    %697 = vdwg.mxu0
    %v698 = vadd.f32 %v695, %v289
    %700 = vset.pattern.permute.xlu0 32
    %701 = vperm.xlu0 %700, %v620
    %v702 = vpop.permute.xlu0 %701
    %v704 = vmul.f32 %v702, %v698
    %v705 = vadd.f32 %v614, %v704
    %v706 = vmul.f32 %v702, %v695
    %v707 = vadd.f32 %v616, %v706
    %v708 = vadd.f32 %v130, %v621
    %v709 = vadd.f32 %v708, %v622
    %v710 = vadd.f32 %v618, 1.0
    %v712 = vrot.slane %v707, 6
    %v714 = vadd.f32 %v209, %v712
    %v715 = vtanh.pop %v714
    %v717 = vrot.slane %v715, 2
    %v718 = vsel %vm131, %v717, 0
    %720 = vmatprep.subr.mxu0 0.0
    %721 = vmatpush1.msra.mxu0 %v37
    %722 = vmatprep.subr.mxu0 0.0
    %723 = vmatpush1.msra.mxu0 %v38
    %724 = vmatprep.subr.mxu0 0.0
    %725 = vmatpush1.msra.mxu0 %v39
    %726 = vmatprep.subr.mxu0 0.0
    %727 = vmatpush1.msra.mxu0 %v40
    %728 = vmatprep.subr.mxu0 0.0
    %729 = vmatpush1.msra.mxu0 0.0
    %730 = vmatprep.subr.mxu0 0.0
    %731 = vmatpush1.msra.mxu0 0.0
    %732 = vmatprep.subr.mxu0 0.0
    %733 = vmatpush1.msra.mxu0 0.0
    %734 = vmatprep.subr.mxu0 0.0
    %735 = vmatpush1.msra.mxu0 0.0
    %736 = vmatprep.subr.mxu0 0.0
    %737 = vmatpush1.msra.mxu0 0.0
    %738 = vmatprep.subr.mxu0 0.0
    %739 = vmatpush1.msra.mxu0 0.0
    %740 = vmatprep.subr.mxu0 0.0
    %741 = vmatpush1.msra.mxu0 0.0
    %742 = vmatprep.subr.mxu0 0.0
    %743 = vmatpush1.msra.mxu0 0.0
    %744 = vmatprep.subr.mxu0 0.0
    %745 = vmatpush1.msra.mxu0 0.0
    %746 = vmatprep.subr.mxu0 0.0
    %747 = vmatpush1.msra.mxu0 0.0
    %748 = vmatprep.subr.mxu0 0.0
    %749 = vmatpush1.msra.mxu0 0.0
    %750 = vmatprep.subr.mxu0 0.0
    %751 = vmatpush1.msra.mxu0 0.0
    %752 = vmatprep.subr.mxu0 0.0
    %753 = vmatpush1.msra.mxu0 0.0
    %754 = vmatprep.subr.mxu0 0.0
    %755 = vmatpush1.msra.mxu0 0.0
    %756 = vmatprep.subr.mxu0 0.0
    %757 = vmatpush1.msra.mxu0 0.0
    %758 = vmatprep.subr.mxu0 0.0
    %759 = vmatpush1.msra.mxu0 0.0
    %760 = vmatprep.subr.mxu0 0.0
    %761 = vmatpush1.msra.mxu0 0.0
    %762 = vmatprep.subr.mxu0 0.0
    %763 = vmatpush1.msra.mxu0 0.0
    %764 = vmatprep.subr.mxu0 0.0
    %765 = vmatpush1.msra.mxu0 0.0
    %766 = vmatprep.subr.mxu0 0.0
    %767 = vmatpush1.msra.mxu0 0.0
    %768 = vmatprep.subr.mxu0 0.0
    %769 = vmatpush1.msra.mxu0 0.0
    %770 = vmatprep.subr.mxu0 0.0
    %771 = vmatpush1.msra.mxu0 0.0
    %772 = vmatprep.subr.mxu0 0.0
    %773 = vmatpush1.msra.mxu0 0.0
    %774 = vmatprep.subr.mxu0 0.0
    %775 = vmatpush1.msra.mxu0 0.0
    %776 = vmatprep.subr.mxu0 0.0
    %777 = vmatpush1.msra.mxu0 0.0
    %778 = vmatprep.subr.mxu0 0.0
    %779 = vmatpush1.msra.mxu0 0.0
    %780 = vmatprep.subr.mxu0 0.0
    %781 = vmatpush1.msra.mxu0 0.0
    %782 = vmatprep.subr.mxu0 0.0
    %783 = vmatpush1.msra.mxu0 0.0
    %784 = vmatprep.mubr.f32.mxu0 0.0
    %785 = vmatmul.mubr.f32.gmra.mrb[0].mxu0 %v718
    %v786 = vpop.f32.mrb[0].mxu0
    %v787 = vadd.f32 0.0, %v786
    %v788 = vpop.f32.mrb[0].mxu0
    %789 = vdwg.mxu0
    %v790 = vadd.f32 %v787, %v289
    %v791 = vxor.u32 %v790, 2147483648
    %v792 = vmul.f32 %v791, 1.442695
    %v793 = vpow.pop %v792
    %v794 = vadd.f32 %v793, 1.0
    %v795 = vrcp.pop %v794
    %v796 = vmul.f32 1.0, %v795
    %v797 = vadd.f32 %v796, 0.0
    %vm798 = vcmp.ge.f32.partialorder %v797, 0.99
    %v799 = vsel %vm798, 1.0, %v796
    %801 = vset.pattern.permute.xlu0 32
    %802 = vperm.xlu0 %801, %v799
    %v803 = vpop.permute.xlu0 %802
    %v805 = vmul.f32 %v803, %v790
    %v806 = vadd.f32 %v805, 0.0
    %v807 = vmul.f32 %v803, %v787
    %v808 = vadd.f32 %v807, 0.0
    %v809 = vadd.f32 %v710, 1.0
    %v810 = vsel %vm798, %v710, %v809
    %v811 = vsub.f32 1.0, %v797
    %v812 = vsel %vm798, 0.0, %v811
    %v813 = vsel %vm798, 1.0, %v811
    %v814 = vsel %vm798, 0.0, 2.0
    %v816 = vrot.slane %v787, 6
    %v818 = vadd.f32 %v122, %v816
    %v819 = vtanh.pop %v818
    %v821 = vrot.slane %v819, 2
    %v822 = vsel %vm131, %v821, 0
    %824 = vmatprep.subr.mxu0 0.0
    %825 = vmatpush1.msra.mxu0 %v37
    %826 = vmatprep.subr.mxu0 0.0
    %827 = vmatpush1.msra.mxu0 %v38
    %828 = vmatprep.subr.mxu0 0.0
    %829 = vmatpush1.msra.mxu0 %v39
    %830 = vmatprep.subr.mxu0 0.0
    %831 = vmatpush1.msra.mxu0 %v40
    %832 = vmatprep.subr.mxu0 0.0
    %833 = vmatpush1.msra.mxu0 0.0
    %834 = vmatprep.subr.mxu0 0.0
    %835 = vmatpush1.msra.mxu0 0.0
    %836 = vmatprep.subr.mxu0 0.0
    %837 = vmatpush1.msra.mxu0 0.0
    %838 = vmatprep.subr.mxu0 0.0
    %839 = vmatpush1.msra.mxu0 0.0
    %840 = vmatprep.subr.mxu0 0.0
    %841 = vmatpush1.msra.mxu0 0.0
    %842 = vmatprep.subr.mxu0 0.0
    %843 = vmatpush1.msra.mxu0 0.0
    %844 = vmatprep.subr.mxu0 0.0
    %845 = vmatpush1.msra.mxu0 0.0
    %846 = vmatprep.subr.mxu0 0.0
    %847 = vmatpush1.msra.mxu0 0.0
    %848 = vmatprep.subr.mxu0 0.0
    %849 = vmatpush1.msra.mxu0 0.0
    %850 = vmatprep.subr.mxu0 0.0
    %851 = vmatpush1.msra.mxu0 0.0
    %852 = vmatprep.subr.mxu0 0.0
    %853 = vmatpush1.msra.mxu0 0.0
    %854 = vmatprep.subr.mxu0 0.0
    %855 = vmatpush1.msra.mxu0 0.0
    %856 = vmatprep.subr.mxu0 0.0
    %857 = vmatpush1.msra.mxu0 0.0
    %858 = vmatprep.subr.mxu0 0.0
    %859 = vmatpush1.msra.mxu0 0.0
    %860 = vmatprep.subr.mxu0 0.0
    %861 = vmatpush1.msra.mxu0 0.0
    %862 = vmatprep.subr.mxu0 0.0
    %863 = vmatpush1.msra.mxu0 0.0
    %864 = vmatprep.subr.mxu0 0.0
    %865 = vmatpush1.msra.mxu0 0.0
    %866 = vmatprep.subr.mxu0 0.0
    %867 = vmatpush1.msra.mxu0 0.0
    %868 = vmatprep.subr.mxu0 0.0
    %869 = vmatpush1.msra.mxu0 0.0
    %870 = vmatprep.subr.mxu0 0.0
    %871 = vmatpush1.msra.mxu0 0.0
    %872 = vmatprep.subr.mxu0 0.0
    %873 = vmatpush1.msra.mxu0 0.0
    %874 = vmatprep.subr.mxu0 0.0
    %875 = vmatpush1.msra.mxu0 0.0
    %876 = vmatprep.subr.mxu0 0.0
    %877 = vmatpush1.msra.mxu0 0.0
    %878 = vmatprep.subr.mxu0 0.0
    %879 = vmatpush1.msra.mxu0 0.0
    %880 = vmatprep.subr.mxu0 0.0
    %881 = vmatpush1.msra.mxu0 0.0
    %882 = vmatprep.subr.mxu0 0.0
    %883 = vmatpush1.msra.mxu0 0.0
    %884 = vmatprep.subr.mxu0 0.0
    %885 = vmatpush1.msra.mxu0 0.0
    %886 = vmatprep.subr.mxu0 0.0
    %887 = vmatpush1.msra.mxu0 0.0
    %888 = vmatprep.mubr.f32.mxu0 0.0
    %889 = vmatmul.mubr.f32.gmra.mrb[0].mxu0 %v822
    %v890 = vpop.f32.mrb[0].mxu0
    %v891 = vadd.f32 0.0, %v890
    %v892 = vpop.f32.mrb[0].mxu0
    %893 = vdwg.mxu0
    %v894 = vadd.f32 %v891, %v289
    %v895 = vxor.u32 %v894, 2147483648
    %v896 = vmul.f32 %v895, 1.442695
    %v897 = vpow.pop %v896
    %v898 = vadd.f32 %v897, 1.0
    %v899 = vrcp.pop %v898
    %v900 = vmul.f32 1.0, %v899
    %v901 = vadd.f32 %v797, %v900
    %vm902 = vcmp.ge.f32.partialorder %v901, 0.99
    %v903 = vsel %vm902, %v812, %v900
    %905 = vset.pattern.permute.xlu0 32
    %906 = vperm.xlu0 %905, %v903
    %v907 = vpop.permute.xlu0 %906
    %v909 = vmul.f32 %v907, %v894
    %v910 = vadd.f32 %v806, %v909
    %v911 = vmul.f32 %v907, %v891
    %v912 = vadd.f32 %v808, %v911
    %v913 = vadd.f32 %v810, 1.0
    %v914 = vsel %vm902, %v810, %v913
    %v915 = vsub.f32 1.0, %v901
    %v916 = vsel %vm902, 0.0, %v915
    %v917 = vsel %vm902, %v813, %v915
    %v918 = vsel %vm902, %v814, 3.0
    %v920 = vrot.slane %v891, 6
    %v922 = vadd.f32 %v122, %v920
    %v923 = vtanh.pop %v922
    %v925 = vrot.slane %v923, 2
    %v926 = vsel %vm131, %v925, 0
    %928 = vmatprep.subr.mxu0 0.0
    %929 = vmatpush1.msra.mxu0 %v37
    %930 = vmatprep.subr.mxu0 0.0
    %931 = vmatpush1.msra.mxu0 %v38
    %932 = vmatprep.subr.mxu0 0.0
    %933 = vmatpush1.msra.mxu0 %v39
    %934 = vmatprep.subr.mxu0 0.0
    %935 = vmatpush1.msra.mxu0 %v40
    %936 = vmatprep.subr.mxu0 0.0
    %937 = vmatpush1.msra.mxu0 0.0
    %938 = vmatprep.subr.mxu0 0.0
    %939 = vmatpush1.msra.mxu0 0.0
    %940 = vmatprep.subr.mxu0 0.0
    %941 = vmatpush1.msra.mxu0 0.0
    %942 = vmatprep.subr.mxu0 0.0
    %943 = vmatpush1.msra.mxu0 0.0
    %944 = vmatprep.subr.mxu0 0.0
    %945 = vmatpush1.msra.mxu0 0.0
    %946 = vmatprep.subr.mxu0 0.0
    %947 = vmatpush1.msra.mxu0 0.0
    %948 = vmatprep.subr.mxu0 0.0
    %949 = vmatpush1.msra.mxu0 0.0
    %950 = vmatprep.subr.mxu0 0.0
    %951 = vmatpush1.msra.mxu0 0.0
    %952 = vmatprep.subr.mxu0 0.0
    %953 = vmatpush1.msra.mxu0 0.0
    %954 = vmatprep.subr.mxu0 0.0
    %955 = vmatpush1.msra.mxu0 0.0
    %956 = vmatprep.subr.mxu0 0.0
    %957 = vmatpush1.msra.mxu0 0.0
    %958 = vmatprep.subr.mxu0 0.0
    %959 = vmatpush1.msra.mxu0 0.0
    %960 = vmatprep.subr.mxu0 0.0
    %961 = vmatpush1.msra.mxu0 0.0
    %962 = vmatprep.subr.mxu0 0.0
    %963 = vmatpush1.msra.mxu0 0.0
    %964 = vmatprep.subr.mxu0 0.0
    %965 = vmatpush1.msra.mxu0 0.0
    %966 = vmatprep.subr.mxu0 0.0
    %967 = vmatpush1.msra.mxu0 0.0
    %968 = vmatprep.subr.mxu0 0.0
    %969 = vmatpush1.msra.mxu0 0.0
    %970 = vmatprep.subr.mxu0 0.0
    %971 = vmatpush1.msra.mxu0 0.0
    %972 = vmatprep.subr.mxu0 0.0
    %973 = vmatpush1.msra.mxu0 0.0
    %974 = vmatprep.subr.mxu0 0.0
    %975 = vmatpush1.msra.mxu0 0.0
    %976 = vmatprep.subr.mxu0 0.0
    %977 = vmatpush1.msra.mxu0 0.0
    %978 = vmatprep.subr.mxu0 0.0
    %979 = vmatpush1.msra.mxu0 0.0
    %980 = vmatprep.subr.mxu0 0.0
    %981 = vmatpush1.msra.mxu0 0.0
    %982 = vmatprep.subr.mxu0 0.0
    %983 = vmatpush1.msra.mxu0 0.0
    %984 = vmatprep.subr.mxu0 0.0
    %985 = vmatpush1.msra.mxu0 0.0
    %986 = vmatprep.subr.mxu0 0.0
    %987 = vmatpush1.msra.mxu0 0.0
    %988 = vmatprep.subr.mxu0 0.0
    %989 = vmatpush1.msra.mxu0 0.0
    %990 = vmatprep.subr.mxu0 0.0
    %991 = vmatpush1.msra.mxu0 0.0
    %992 = vmatprep.mubr.f32.mxu0 0.0
    %993 = vmatmul.mubr.f32.gmra.mrb[0].mxu0 %v926
    %v994 = vpop.f32.mrb[0].mxu0
    %v995 = vadd.f32 0.0, %v994
    %v996 = vpop.f32.mrb[0].mxu0
    %997 = vdwg.mxu0
    %v998 = vadd.f32 %v995, %v289
    %v999 = vxor.u32 %v998, 2147483648
    %v1000 = vmul.f32 %v999, 1.442695
    %v1001 = vpow.pop %v1000
    %v1002 = vadd.f32 %v1001, 1.0
    %v1003 = vrcp.pop %v1002
    %v1004 = vmul.f32 1.0, %v1003
    %v1005 = vadd.f32 %v901, %v1004
    %vm1006 = vcmp.ge.f32.partialorder %v1005, 0.99
    %v1007 = vsel %vm1006, %v916, %v1004
    %1009 = vset.pattern.permute.xlu0 32
    %1010 = vperm.xlu0 %1009, %v1007
    %v1011 = vpop.permute.xlu0 %1010
    %v1013 = vmul.f32 %v1011, %v998
    %v1014 = vadd.f32 %v910, %v1013
    %v1015 = vmul.f32 %v1011, %v995
    %v1016 = vadd.f32 %v912, %v1015
    %v1017 = vadd.f32 %v914, 1.0
    %v1018 = vsel %vm1006, %v914, %v1017
    %v1019 = vsub.f32 1.0, %v1005
    %v1020 = vsel %vm1006, 0.0, %v1019
    %v1021 = vsel %vm1006, %v917, %v1019
    %v1022 = vsel %vm1006, %v918, 4.0
    %v1024 = vrot.slane %v995, 6
    %v1026 = vadd.f32 %v122, %v1024
    %v1027 = vtanh.pop %v1026
    %v1029 = vrot.slane %v1027, 2
    %v1030 = vsel %vm131, %v1029, 0
    %1032 = vmatprep.subr.mxu0 0.0
    %1033 = vmatpush1.msra.mxu0 %v37
    %1034 = vmatprep.subr.mxu0 0.0
    %1035 = vmatpush1.msra.mxu0 %v38
    %1036 = vmatprep.subr.mxu0 0.0
    %1037 = vmatpush1.msra.mxu0 %v39
    %1038 = vmatprep.subr.mxu0 0.0
    %1039 = vmatpush1.msra.mxu0 %v40
    %1040 = vmatprep.subr.mxu0 0.0
    %1041 = vmatpush1.msra.mxu0 0.0
    %1042 = vmatprep.subr.mxu0 0.0
    %1043 = vmatpush1.msra.mxu0 0.0
    %1044 = vmatprep.subr.mxu0 0.0
    %1045 = vmatpush1.msra.mxu0 0.0
    %1046 = vmatprep.subr.mxu0 0.0
    %1047 = vmatpush1.msra.mxu0 0.0
    %1048 = vmatprep.subr.mxu0 0.0
    %1049 = vmatpush1.msra.mxu0 0.0
    %1050 = vmatprep.subr.mxu0 0.0
    %1051 = vmatpush1.msra.mxu0 0.0
    %1052 = vmatprep.subr.mxu0 0.0
    %1053 = vmatpush1.msra.mxu0 0.0
    %1054 = vmatprep.subr.mxu0 0.0
    %1055 = vmatpush1.msra.mxu0 0.0
    %1056 = vmatprep.subr.mxu0 0.0
    %1057 = vmatpush1.msra.mxu0 0.0
    %1058 = vmatprep.subr.mxu0 0.0
    %1059 = vmatpush1.msra.mxu0 0.0
    %1060 = vmatprep.subr.mxu0 0.0
    %1061 = vmatpush1.msra.mxu0 0.0
    %1062 = vmatprep.subr.mxu0 0.0
    %1063 = vmatpush1.msra.mxu0 0.0
    %1064 = vmatprep.subr.mxu0 0.0
    %1065 = vmatpush1.msra.mxu0 0.0
    %1066 = vmatprep.subr.mxu0 0.0
    %1067 = vmatpush1.msra.mxu0 0.0
    %1068 = vmatprep.subr.mxu0 0.0
    %1069 = vmatpush1.msra.mxu0 0.0
    %1070 = vmatprep.subr.mxu0 0.0
    %1071 = vmatpush1.msra.mxu0 0.0
    %1072 = vmatprep.subr.mxu0 0.0
    %1073 = vmatpush1.msra.mxu0 0.0
    %1074 = vmatprep.subr.mxu0 0.0
    %1075 = vmatpush1.msra.mxu0 0.0
    %1076 = vmatprep.subr.mxu0 0.0
    %1077 = vmatpush1.msra.mxu0 0.0
    %1078 = vmatprep.subr.mxu0 0.0
    %1079 = vmatpush1.msra.mxu0 0.0
    %1080 = vmatprep.subr.mxu0 0.0
    %1081 = vmatpush1.msra.mxu0 0.0
    %1082 = vmatprep.subr.mxu0 0.0
    %1083 = vmatpush1.msra.mxu0 0.0
    %1084 = vmatprep.subr.mxu0 0.0
    %1085 = vmatpush1.msra.mxu0 0.0
    %1086 = vmatprep.subr.mxu0 0.0
    %1087 = vmatpush1.msra.mxu0 0.0
    %1088 = vmatprep.subr.mxu0 0.0
    %1089 = vmatpush1.msra.mxu0 0.0
    %1090 = vmatprep.subr.mxu0 0.0
    %1091 = vmatpush1.msra.mxu0 0.0
    %1092 = vmatprep.subr.mxu0 0.0
    %1093 = vmatpush1.msra.mxu0 0.0
    %1094 = vmatprep.subr.mxu0 0.0
    %1095 = vmatpush1.msra.mxu0 0.0
    %1096 = vmatprep.mubr.f32.mxu0 0.0
    %1097 = vmatmul.mubr.f32.gmra.mrb[0].mxu0 %v1030
    %v1098 = vpop.f32.mrb[0].mxu0
    %v1099 = vadd.f32 0.0, %v1098
    %v1100 = vpop.f32.mrb[0].mxu0
    %1101 = vdwg.mxu0
    %v1102 = vadd.f32 %v1099, %v289
    %v1103 = vxor.u32 %v1102, 2147483648
    %v1104 = vmul.f32 %v1103, 1.442695
    %v1105 = vpow.pop %v1104
    %v1106 = vadd.f32 %v1105, 1.0
    %v1107 = vrcp.pop %v1106
    %v1108 = vmul.f32 1.0, %v1107
    %v1109 = vadd.f32 %v1005, %v1108
    %vm1110 = vcmp.ge.f32.partialorder %v1109, 0.99
    %v1111 = vsel %vm1110, %v1020, %v1108
    %1113 = vset.pattern.permute.xlu0 32
    %1114 = vperm.xlu0 %1113, %v1111
    %v1115 = vpop.permute.xlu0 %1114
    %v1117 = vmul.f32 %v1115, %v1102
    %v1118 = vadd.f32 %v1014, %v1117
    %v1119 = vmul.f32 %v1115, %v1099
    %v1120 = vadd.f32 %v1016, %v1119
    %v1121 = vadd.f32 %v1018, 1.0
    %v1122 = vsel %vm1110, %v1018, %v1121
    %v1123 = vsub.f32 1.0, %v1109
    %v1124 = vsel %vm1110, 0.0, %v1123
    %v1125 = vsel %vm1110, %v1021, %v1123
    %v1126 = vsel %vm1110, %v1022, 5.0
    %v1128 = vrot.slane %v1099, 6
    %v1130 = vadd.f32 %v122, %v1128
    %v1131 = vtanh.pop %v1130
    %v1133 = vrot.slane %v1131, 2
    %v1134 = vsel %vm131, %v1133, 0
    %1136 = vmatprep.subr.mxu0 0.0
    %1137 = vmatpush1.msra.mxu0 %v37
    %1138 = vmatprep.subr.mxu0 0.0
    %1139 = vmatpush1.msra.mxu0 %v38
    %1140 = vmatprep.subr.mxu0 0.0
    %1141 = vmatpush1.msra.mxu0 %v39
    %1142 = vmatprep.subr.mxu0 0.0
    %1143 = vmatpush1.msra.mxu0 %v40
    %1144 = vmatprep.subr.mxu0 0.0
    %1145 = vmatpush1.msra.mxu0 0.0
    %1146 = vmatprep.subr.mxu0 0.0
    %1147 = vmatpush1.msra.mxu0 0.0
    %1148 = vmatprep.subr.mxu0 0.0
    %1149 = vmatpush1.msra.mxu0 0.0
    %1150 = vmatprep.subr.mxu0 0.0
    %1151 = vmatpush1.msra.mxu0 0.0
    %1152 = vmatprep.subr.mxu0 0.0
    %1153 = vmatpush1.msra.mxu0 0.0
    %1154 = vmatprep.subr.mxu0 0.0
    %1155 = vmatpush1.msra.mxu0 0.0
    %1156 = vmatprep.subr.mxu0 0.0
    %1157 = vmatpush1.msra.mxu0 0.0
    %1158 = vmatprep.subr.mxu0 0.0
    %1159 = vmatpush1.msra.mxu0 0.0
    %1160 = vmatprep.subr.mxu0 0.0
    %1161 = vmatpush1.msra.mxu0 0.0
    %1162 = vmatprep.subr.mxu0 0.0
    %1163 = vmatpush1.msra.mxu0 0.0
    %1164 = vmatprep.subr.mxu0 0.0
    %1165 = vmatpush1.msra.mxu0 0.0
    %1166 = vmatprep.subr.mxu0 0.0
    %1167 = vmatpush1.msra.mxu0 0.0
    %1168 = vmatprep.subr.mxu0 0.0
    %1169 = vmatpush1.msra.mxu0 0.0
    %1170 = vmatprep.subr.mxu0 0.0
    %1171 = vmatpush1.msra.mxu0 0.0
    %1172 = vmatprep.subr.mxu0 0.0
    %1173 = vmatpush1.msra.mxu0 0.0
    %1174 = vmatprep.subr.mxu0 0.0
    %1175 = vmatpush1.msra.mxu0 0.0
    %1176 = vmatprep.subr.mxu0 0.0
    %1177 = vmatpush1.msra.mxu0 0.0
    %1178 = vmatprep.subr.mxu0 0.0
    %1179 = vmatpush1.msra.mxu0 0.0
    %1180 = vmatprep.subr.mxu0 0.0
    %1181 = vmatpush1.msra.mxu0 0.0
    %1182 = vmatprep.subr.mxu0 0.0
    %1183 = vmatpush1.msra.mxu0 0.0
    %1184 = vmatprep.subr.mxu0 0.0
    %1185 = vmatpush1.msra.mxu0 0.0
    %1186 = vmatprep.subr.mxu0 0.0
    %1187 = vmatpush1.msra.mxu0 0.0
    %1188 = vmatprep.subr.mxu0 0.0
    %1189 = vmatpush1.msra.mxu0 0.0
    %1190 = vmatprep.subr.mxu0 0.0
    %1191 = vmatpush1.msra.mxu0 0.0
    %1192 = vmatprep.subr.mxu0 0.0
    %1193 = vmatpush1.msra.mxu0 0.0
    %1194 = vmatprep.subr.mxu0 0.0
    %1195 = vmatpush1.msra.mxu0 0.0
    %1196 = vmatprep.subr.mxu0 0.0
    %1197 = vmatpush1.msra.mxu0 0.0
    %1198 = vmatprep.subr.mxu0 0.0
    %1199 = vmatpush1.msra.mxu0 0.0
    %1200 = vmatprep.mubr.f32.mxu0 0.0
    %1201 = vmatmul.mubr.f32.gmra.mrb[0].mxu0 %v1134
    %v1202 = vpop.f32.mrb[0].mxu0
    %v1203 = vadd.f32 0.0, %v1202
    %v1204 = vpop.f32.mrb[0].mxu0
    %1205 = vdwg.mxu0
    %v1206 = vadd.f32 %v1203, %v289
    %1208 = vset.pattern.permute.xlu0 32
    %1209 = vperm.xlu0 %1208, %v1124
    %v1210 = vpop.permute.xlu0 %1209
    %v1212 = vmul.f32 %v1210, %v1206
    %v1213 = vadd.f32 %v1118, %v1212
    %v1214 = vmul.f32 %v1210, %v1203
    %v1215 = vadd.f32 %v1120, %v1214
    %v1216 = vadd.f32 %v709, %v1125
    %v1217 = vadd.f32 %v1216, %v1126
    %v1218 = vadd.f32 %v1122, 1.0
    %v1220 = vrot.slane %v1215, 4
    %v1222 = vadd.f32 %v209, %v1220
    %v1223 = vtanh.pop %v1222
    %v1225 = vrot.slane %v1223, 4
    %v1226 = vsel %vm131, %v1225, 0
    %1228 = vmatprep.subr.mxu0 0.0
    %1229 = vmatpush1.msra.mxu0 %v37
    %1230 = vmatprep.subr.mxu0 0.0
    %1231 = vmatpush1.msra.mxu0 %v38
    %1232 = vmatprep.subr.mxu0 0.0
    %1233 = vmatpush1.msra.mxu0 %v39
    %1234 = vmatprep.subr.mxu0 0.0
    %1235 = vmatpush1.msra.mxu0 %v40
    %1236 = vmatprep.subr.mxu0 0.0
    %1237 = vmatpush1.msra.mxu0 0.0
    %1238 = vmatprep.subr.mxu0 0.0
    %1239 = vmatpush1.msra.mxu0 0.0
    %1240 = vmatprep.subr.mxu0 0.0
    %1241 = vmatpush1.msra.mxu0 0.0
    %1242 = vmatprep.subr.mxu0 0.0
    %1243 = vmatpush1.msra.mxu0 0.0
    %1244 = vmatprep.subr.mxu0 0.0
    %1245 = vmatpush1.msra.mxu0 0.0
    %1246 = vmatprep.subr.mxu0 0.0
    %1247 = vmatpush1.msra.mxu0 0.0
    %1248 = vmatprep.subr.mxu0 0.0
    %1249 = vmatpush1.msra.mxu0 0.0
    %1250 = vmatprep.subr.mxu0 0.0
    %1251 = vmatpush1.msra.mxu0 0.0
    %1252 = vmatprep.subr.mxu0 0.0
    %1253 = vmatpush1.msra.mxu0 0.0
    %1254 = vmatprep.subr.mxu0 0.0
    %1255 = vmatpush1.msra.mxu0 0.0
    %1256 = vmatprep.subr.mxu0 0.0
    %1257 = vmatpush1.msra.mxu0 0.0
    %1258 = vmatprep.subr.mxu0 0.0
    %1259 = vmatpush1.msra.mxu0 0.0
    %1260 = vmatprep.subr.mxu0 0.0
    %1261 = vmatpush1.msra.mxu0 0.0
    %1262 = vmatprep.subr.mxu0 0.0
    %1263 = vmatpush1.msra.mxu0 0.0
    %1264 = vmatprep.subr.mxu0 0.0
    %1265 = vmatpush1.msra.mxu0 0.0
    %1266 = vmatprep.subr.mxu0 0.0
    %1267 = vmatpush1.msra.mxu0 0.0
    %1268 = vmatprep.subr.mxu0 0.0
    %1269 = vmatpush1.msra.mxu0 0.0
    %1270 = vmatprep.subr.mxu0 0.0
    %1271 = vmatpush1.msra.mxu0 0.0
    %1272 = vmatprep.subr.mxu0 0.0
    %1273 = vmatpush1.msra.mxu0 0.0
    %1274 = vmatprep.subr.mxu0 0.0
    %1275 = vmatpush1.msra.mxu0 0.0
    %1276 = vmatprep.subr.mxu0 0.0
    %1277 = vmatpush1.msra.mxu0 0.0
    %1278 = vmatprep.subr.mxu0 0.0
    %1279 = vmatpush1.msra.mxu0 0.0
    %1280 = vmatprep.subr.mxu0 0.0
    %1281 = vmatpush1.msra.mxu0 0.0
    %1282 = vmatprep.subr.mxu0 0.0
    %1283 = vmatpush1.msra.mxu0 0.0
    %1284 = vmatprep.subr.mxu0 0.0
    %1285 = vmatpush1.msra.mxu0 0.0
    %1286 = vmatprep.subr.mxu0 0.0
    %1287 = vmatpush1.msra.mxu0 0.0
    %1288 = vmatprep.subr.mxu0 0.0
    %1289 = vmatpush1.msra.mxu0 0.0
    %1290 = vmatprep.subr.mxu0 0.0
    %1291 = vmatpush1.msra.mxu0 0.0
    %1292 = vmatprep.mubr.f32.mxu0 0.0
    %1293 = vmatmul.mubr.f32.gmra.mrb[0].mxu0 %v1226
    %v1294 = vpop.f32.mrb[0].mxu0
    %v1295 = vadd.f32 0.0, %v1294
    %v1296 = vpop.f32.mrb[0].mxu0
    %1297 = vdwg.mxu0
    %v1298 = vadd.f32 %v1295, %v289
    %v1299 = vxor.u32 %v1298, 2147483648
    %v1300 = vmul.f32 %v1299, 1.442695
    %v1301 = vpow.pop %v1300
    %v1302 = vadd.f32 %v1301, 1.0
    %v1303 = vrcp.pop %v1302
    %v1304 = vmul.f32 1.0, %v1303
    %v1305 = vadd.f32 %v1304, 0.0
    %vm1306 = vcmp.ge.f32.partialorder %v1305, 0.99
    %v1307 = vsel %vm1306, 1.0, %v1304
    %1309 = vset.pattern.permute.xlu0 32
    %1310 = vperm.xlu0 %1309, %v1307
    %v1311 = vpop.permute.xlu0 %1310
    %v1313 = vmul.f32 %v1311, %v1298
    %v1314 = vadd.f32 %v1313, 0.0
    %v1315 = vmul.f32 %v1311, %v1295
    %v1316 = vadd.f32 %v1315, 0.0
    %v1317 = vadd.f32 %v1218, 1.0
    %v1318 = vsel %vm1306, %v1218, %v1317
    %v1319 = vsub.f32 1.0, %v1305
    %v1320 = vsel %vm1306, 0.0, %v1319
    %v1321 = vsel %vm1306, 1.0, %v1319
    %v1322 = vsel %vm1306, 0.0, 2.0
    %v1324 = vrot.slane %v1295, 4
    %v1326 = vadd.f32 %v122, %v1324
    %v1327 = vtanh.pop %v1326
    %v1329 = vrot.slane %v1327, 4
    %v1330 = vsel %vm131, %v1329, 0
    %1332 = vmatprep.subr.mxu0 0.0
    %1333 = vmatpush1.msra.mxu0 %v37
    %1334 = vmatprep.subr.mxu0 0.0
    %1335 = vmatpush1.msra.mxu0 %v38
    %1336 = vmatprep.subr.mxu0 0.0
    %1337 = vmatpush1.msra.mxu0 %v39
    %1338 = vmatprep.subr.mxu0 0.0
    %1339 = vmatpush1.msra.mxu0 %v40
    %1340 = vmatprep.subr.mxu0 0.0
    %1341 = vmatpush1.msra.mxu0 0.0
    %1342 = vmatprep.subr.mxu0 0.0
    %1343 = vmatpush1.msra.mxu0 0.0
    %1344 = vmatprep.subr.mxu0 0.0
    %1345 = vmatpush1.msra.mxu0 0.0
    %1346 = vmatprep.subr.mxu0 0.0
    %1347 = vmatpush1.msra.mxu0 0.0
    %1348 = vmatprep.subr.mxu0 0.0
    %1349 = vmatpush1.msra.mxu0 0.0
    %1350 = vmatprep.subr.mxu0 0.0
    %1351 = vmatpush1.msra.mxu0 0.0
    %1352 = vmatprep.subr.mxu0 0.0
    %1353 = vmatpush1.msra.mxu0 0.0
    %1354 = vmatprep.subr.mxu0 0.0
    %1355 = vmatpush1.msra.mxu0 0.0
    %1356 = vmatprep.subr.mxu0 0.0
    %1357 = vmatpush1.msra.mxu0 0.0
    %1358 = vmatprep.subr.mxu0 0.0
    %1359 = vmatpush1.msra.mxu0 0.0
    %1360 = vmatprep.subr.mxu0 0.0
    %1361 = vmatpush1.msra.mxu0 0.0
    %1362 = vmatprep.subr.mxu0 0.0
    %1363 = vmatpush1.msra.mxu0 0.0
    %1364 = vmatprep.subr.mxu0 0.0
    %1365 = vmatpush1.msra.mxu0 0.0
    %1366 = vmatprep.subr.mxu0 0.0
    %1367 = vmatpush1.msra.mxu0 0.0
    %1368 = vmatprep.subr.mxu0 0.0
    %1369 = vmatpush1.msra.mxu0 0.0
    %1370 = vmatprep.subr.mxu0 0.0
    %1371 = vmatpush1.msra.mxu0 0.0
    %1372 = vmatprep.subr.mxu0 0.0
    %1373 = vmatpush1.msra.mxu0 0.0
    %1374 = vmatprep.subr.mxu0 0.0
    %1375 = vmatpush1.msra.mxu0 0.0
    %1376 = vmatprep.subr.mxu0 0.0
    %1377 = vmatpush1.msra.mxu0 0.0
    %1378 = vmatprep.subr.mxu0 0.0
    %1379 = vmatpush1.msra.mxu0 0.0
    %1380 = vmatprep.subr.mxu0 0.0
    %1381 = vmatpush1.msra.mxu0 0.0
    %1382 = vmatprep.subr.mxu0 0.0
    %1383 = vmatpush1.msra.mxu0 0.0
    %1384 = vmatprep.subr.mxu0 0.0
    %1385 = vmatpush1.msra.mxu0 0.0
    %1386 = vmatprep.subr.mxu0 0.0
    %1387 = vmatpush1.msra.mxu0 0.0
    %1388 = vmatprep.subr.mxu0 0.0
    %1389 = vmatpush1.msra.mxu0 0.0
    %1390 = vmatprep.subr.mxu0 0.0
    %1391 = vmatpush1.msra.mxu0 0.0
    %1392 = vmatprep.subr.mxu0 0.0
    %1393 = vmatpush1.msra.mxu0 0.0
    %1394 = vmatprep.subr.mxu0 0.0
    %1395 = vmatpush1.msra.mxu0 0.0
    %1396 = vmatprep.mubr.f32.mxu0 0.0
    %1397 = vmatmul.mubr.f32.gmra.mrb[0].mxu0 %v1330
    %v1398 = vpop.f32.mrb[0].mxu0
    %v1399 = vadd.f32 0.0, %v1398
    %v1400 = vpop.f32.mrb[0].mxu0
    %1401 = vdwg.mxu0
    %v1402 = vadd.f32 %v1399, %v289
    %v1403 = vxor.u32 %v1402, 2147483648
    %v1404 = vmul.f32 %v1403, 1.442695
    %v1405 = vpow.pop %v1404
    %v1406 = vadd.f32 %v1405, 1.0
    %v1407 = vrcp.pop %v1406
    %v1408 = vmul.f32 1.0, %v1407
    %v1409 = vadd.f32 %v1305, %v1408
    %vm1410 = vcmp.ge.f32.partialorder %v1409, 0.99
    %v1411 = vsel %vm1410, %v1320, %v1408
    %1413 = vset.pattern.permute.xlu0 32
    %1414 = vperm.xlu0 %1413, %v1411
    %v1415 = vpop.permute.xlu0 %1414
    %v1417 = vmul.f32 %v1415, %v1402
    %v1418 = vadd.f32 %v1314, %v1417
    %v1419 = vmul.f32 %v1415, %v1399
    %v1420 = vadd.f32 %v1316, %v1419
    %v1421 = vadd.f32 %v1318, 1.0
    %v1422 = vsel %vm1410, %v1318, %v1421
    %v1423 = vsub.f32 1.0, %v1409
    %v1424 = vsel %vm1410, 0.0, %v1423
    %v1425 = vsel %vm1410, %v1321, %v1423
    %v1426 = vsel %vm1410, %v1322, 3.0
    %v1428 = vrot.slane %v1399, 4
    %v1430 = vadd.f32 %v122, %v1428
    %v1431 = vtanh.pop %v1430
    %v1433 = vrot.slane %v1431, 4
    %v1434 = vsel %vm131, %v1433, 0
    %1436 = vmatprep.subr.mxu0 0.0
    %1437 = vmatpush1.msra.mxu0 %v37
    %1438 = vmatprep.subr.mxu0 0.0
    %1439 = vmatpush1.msra.mxu0 %v38
    %1440 = vmatprep.subr.mxu0 0.0
    %1441 = vmatpush1.msra.mxu0 %v39
    %1442 = vmatprep.subr.mxu0 0.0
    %1443 = vmatpush1.msra.mxu0 %v40
    %1444 = vmatprep.subr.mxu0 0.0
    %1445 = vmatpush1.msra.mxu0 0.0
    %1446 = vmatprep.subr.mxu0 0.0
    %1447 = vmatpush1.msra.mxu0 0.0
    %1448 = vmatprep.subr.mxu0 0.0
    %1449 = vmatpush1.msra.mxu0 0.0
    %1450 = vmatprep.subr.mxu0 0.0
    %1451 = vmatpush1.msra.mxu0 0.0
    %1452 = vmatprep.subr.mxu0 0.0
    %1453 = vmatpush1.msra.mxu0 0.0
    %1454 = vmatprep.subr.mxu0 0.0
    %1455 = vmatpush1.msra.mxu0 0.0
    %1456 = vmatprep.subr.mxu0 0.0
    %1457 = vmatpush1.msra.mxu0 0.0
    %1458 = vmatprep.subr.mxu0 0.0
    %1459 = vmatpush1.msra.mxu0 0.0
    %1460 = vmatprep.subr.mxu0 0.0
    %1461 = vmatpush1.msra.mxu0 0.0
    %1462 = vmatprep.subr.mxu0 0.0
    %1463 = vmatpush1.msra.mxu0 0.0
    %1464 = vmatprep.subr.mxu0 0.0
    %1465 = vmatpush1.msra.mxu0 0.0
    %1466 = vmatprep.subr.mxu0 0.0
    %1467 = vmatpush1.msra.mxu0 0.0
    %1468 = vmatprep.subr.mxu0 0.0
    %1469 = vmatpush1.msra.mxu0 0.0
    %1470 = vmatprep.subr.mxu0 0.0
    %1471 = vmatpush1.msra.mxu0 0.0
    %1472 = vmatprep.subr.mxu0 0.0
    %1473 = vmatpush1.msra.mxu0 0.0
    %1474 = vmatprep.subr.mxu0 0.0
    %1475 = vmatpush1.msra.mxu0 0.0
    %1476 = vmatprep.subr.mxu0 0.0
    %1477 = vmatpush1.msra.mxu0 0.0
    %1478 = vmatprep.subr.mxu0 0.0
    %1479 = vmatpush1.msra.mxu0 0.0
    %1480 = vmatprep.subr.mxu0 0.0
    %1481 = vmatpush1.msra.mxu0 0.0
    %1482 = vmatprep.subr.mxu0 0.0
    %1483 = vmatpush1.msra.mxu0 0.0
    %1484 = vmatprep.subr.mxu0 0.0
    %1485 = vmatpush1.msra.mxu0 0.0
    %1486 = vmatprep.subr.mxu0 0.0
    %1487 = vmatpush1.msra.mxu0 0.0
    %1488 = vmatprep.subr.mxu0 0.0
    %1489 = vmatpush1.msra.mxu0 0.0
    %1490 = vmatprep.subr.mxu0 0.0
    %1491 = vmatpush1.msra.mxu0 0.0
    %1492 = vmatprep.subr.mxu0 0.0
    %1493 = vmatpush1.msra.mxu0 0.0
    %1494 = vmatprep.subr.mxu0 0.0
    %1495 = vmatpush1.msra.mxu0 0.0
    %1496 = vmatprep.subr.mxu0 0.0
    %1497 = vmatpush1.msra.mxu0 0.0
    %1498 = vmatprep.subr.mxu0 0.0
    %1499 = vmatpush1.msra.mxu0 0.0
    %1500 = vmatprep.mubr.f32.mxu0 0.0
    %1501 = vmatmul.mubr.f32.gmra.mrb[0].mxu0 %v1434
    %v1502 = vpop.f32.mrb[0].mxu0
    %v1503 = vadd.f32 0.0, %v1502
    %v1504 = vpop.f32.mrb[0].mxu0
    %1505 = vdwg.mxu0
    %v1506 = vadd.f32 %v1503, %v289
    %v1507 = vxor.u32 %v1506, 2147483648
    %v1508 = vmul.f32 %v1507, 1.442695
    %v1509 = vpow.pop %v1508
    %v1510 = vadd.f32 %v1509, 1.0
    %v1511 = vrcp.pop %v1510
    %v1512 = vmul.f32 1.0, %v1511
    %v1513 = vadd.f32 %v1409, %v1512
    %vm1514 = vcmp.ge.f32.partialorder %v1513, 0.99
    %v1515 = vsel %vm1514, %v1424, %v1512
    %1517 = vset.pattern.permute.xlu0 32
    %1518 = vperm.xlu0 %1517, %v1515
    %v1519 = vpop.permute.xlu0 %1518
    %v1521 = vmul.f32 %v1519, %v1506
    %v1522 = vadd.f32 %v1418, %v1521
    %v1523 = vmul.f32 %v1519, %v1503
    %v1524 = vadd.f32 %v1420, %v1523
    %v1525 = vadd.f32 %v1422, 1.0
    %v1526 = vsel %vm1514, %v1422, %v1525
    %v1527 = vsub.f32 1.0, %v1513
    %v1528 = vsel %vm1514, 0.0, %v1527
    %v1529 = vsel %vm1514, %v1425, %v1527
    %v1530 = vsel %vm1514, %v1426, 4.0
    %v1532 = vrot.slane %v1503, 4
    %v1534 = vadd.f32 %v122, %v1532
    %v1535 = vtanh.pop %v1534
    %v1537 = vrot.slane %v1535, 4
    %v1538 = vsel %vm131, %v1537, 0
    %1540 = vmatprep.subr.mxu0 0.0
    %1541 = vmatpush1.msra.mxu0 %v37
    %1542 = vmatprep.subr.mxu0 0.0
    %1543 = vmatpush1.msra.mxu0 %v38
    %1544 = vmatprep.subr.mxu0 0.0
    %1545 = vmatpush1.msra.mxu0 %v39
    %1546 = vmatprep.subr.mxu0 0.0
    %1547 = vmatpush1.msra.mxu0 %v40
    %1548 = vmatprep.subr.mxu0 0.0
    %1549 = vmatpush1.msra.mxu0 0.0
    %1550 = vmatprep.subr.mxu0 0.0
    %1551 = vmatpush1.msra.mxu0 0.0
    %1552 = vmatprep.subr.mxu0 0.0
    %1553 = vmatpush1.msra.mxu0 0.0
    %1554 = vmatprep.subr.mxu0 0.0
    %1555 = vmatpush1.msra.mxu0 0.0
    %1556 = vmatprep.subr.mxu0 0.0
    %1557 = vmatpush1.msra.mxu0 0.0
    %1558 = vmatprep.subr.mxu0 0.0
    %1559 = vmatpush1.msra.mxu0 0.0
    %1560 = vmatprep.subr.mxu0 0.0
    %1561 = vmatpush1.msra.mxu0 0.0
    %1562 = vmatprep.subr.mxu0 0.0
    %1563 = vmatpush1.msra.mxu0 0.0
    %1564 = vmatprep.subr.mxu0 0.0
    %1565 = vmatpush1.msra.mxu0 0.0
    %1566 = vmatprep.subr.mxu0 0.0
    %1567 = vmatpush1.msra.mxu0 0.0
    %1568 = vmatprep.subr.mxu0 0.0
    %1569 = vmatpush1.msra.mxu0 0.0
    %1570 = vmatprep.subr.mxu0 0.0
    %1571 = vmatpush1.msra.mxu0 0.0
    %1572 = vmatprep.subr.mxu0 0.0
    %1573 = vmatpush1.msra.mxu0 0.0
    %1574 = vmatprep.subr.mxu0 0.0
    %1575 = vmatpush1.msra.mxu0 0.0
    %1576 = vmatprep.subr.mxu0 0.0
    %1577 = vmatpush1.msra.mxu0 0.0
    %1578 = vmatprep.subr.mxu0 0.0
    %1579 = vmatpush1.msra.mxu0 0.0
    %1580 = vmatprep.subr.mxu0 0.0
    %1581 = vmatpush1.msra.mxu0 0.0
    %1582 = vmatprep.subr.mxu0 0.0
    %1583 = vmatpush1.msra.mxu0 0.0
    %1584 = vmatprep.subr.mxu0 0.0
    %1585 = vmatpush1.msra.mxu0 0.0
    %1586 = vmatprep.subr.mxu0 0.0
    %1587 = vmatpush1.msra.mxu0 0.0
    %1588 = vmatprep.subr.mxu0 0.0
    %1589 = vmatpush1.msra.mxu0 0.0
    %1590 = vmatprep.subr.mxu0 0.0
    %1591 = vmatpush1.msra.mxu0 0.0
    %1592 = vmatprep.subr.mxu0 0.0
    %1593 = vmatpush1.msra.mxu0 0.0
    %1594 = vmatprep.subr.mxu0 0.0
    %1595 = vmatpush1.msra.mxu0 0.0
    %1596 = vmatprep.subr.mxu0 0.0
    %1597 = vmatpush1.msra.mxu0 0.0
    %1598 = vmatprep.subr.mxu0 0.0
    %1599 = vmatpush1.msra.mxu0 0.0
    %1600 = vmatprep.subr.mxu0 0.0
    %1601 = vmatpush1.msra.mxu0 0.0
    %1602 = vmatprep.subr.mxu0 0.0
    %1603 = vmatpush1.msra.mxu0 0.0
    %1604 = vmatprep.mubr.f32.mxu0 0.0
    %1605 = vmatmul.mubr.f32.gmra.mrb[0].mxu0 %v1538
    %v1606 = vpop.f32.mrb[0].mxu0
    %v1607 = vadd.f32 0.0, %v1606
    %v1608 = vpop.f32.mrb[0].mxu0
    %1609 = vdwg.mxu0
    %v1610 = vadd.f32 %v1607, %v289
    %v1611 = vxor.u32 %v1610, 2147483648
    %v1612 = vmul.f32 %v1611, 1.442695
    %v1613 = vpow.pop %v1612
    %v1614 = vadd.f32 %v1613, 1.0
    %v1615 = vrcp.pop %v1614
    %v1616 = vmul.f32 1.0, %v1615
    %v1617 = vadd.f32 %v1513, %v1616
    %vm1618 = vcmp.ge.f32.partialorder %v1617, 0.99
    %v1619 = vsel %vm1618, %v1528, %v1616
    %1621 = vset.pattern.permute.xlu0 32
    %1622 = vperm.xlu0 %1621, %v1619
    %v1623 = vpop.permute.xlu0 %1622
    %v1625 = vmul.f32 %v1623, %v1610
    %v1626 = vadd.f32 %v1522, %v1625
    %v1627 = vmul.f32 %v1623, %v1607
    %v1628 = vadd.f32 %v1524, %v1627
    %v1629 = vadd.f32 %v1526, 1.0
    %v1630 = vsel %vm1618, %v1526, %v1629
    %v1631 = vsub.f32 1.0, %v1617
    %v1632 = vsel %vm1618, 0.0, %v1631
    %v1633 = vsel %vm1618, %v1529, %v1631
    %v1634 = vsel %vm1618, %v1530, 5.0
    %v1636 = vrot.slane %v1607, 4
    %v1638 = vadd.f32 %v122, %v1636
    %v1639 = vtanh.pop %v1638
    %v1641 = vrot.slane %v1639, 4
    %v1642 = vsel %vm131, %v1641, 0
    %1644 = vmatprep.subr.mxu0 0.0
    %1645 = vmatpush1.msra.mxu0 %v37
    %1646 = vmatprep.subr.mxu0 0.0
    %1647 = vmatpush1.msra.mxu0 %v38
    %1648 = vmatprep.subr.mxu0 0.0
    %1649 = vmatpush1.msra.mxu0 %v39
    %1650 = vmatprep.subr.mxu0 0.0
    %1651 = vmatpush1.msra.mxu0 %v40
    %1652 = vmatprep.subr.mxu0 0.0
    %1653 = vmatpush1.msra.mxu0 0.0
    %1654 = vmatprep.subr.mxu0 0.0
    %1655 = vmatpush1.msra.mxu0 0.0
    %1656 = vmatprep.subr.mxu0 0.0
    %1657 = vmatpush1.msra.mxu0 0.0
    %1658 = vmatprep.subr.mxu0 0.0
    %1659 = vmatpush1.msra.mxu0 0.0
    %1660 = vmatprep.subr.mxu0 0.0
    %1661 = vmatpush1.msra.mxu0 0.0
    %1662 = vmatprep.subr.mxu0 0.0
    %1663 = vmatpush1.msra.mxu0 0.0
    %1664 = vmatprep.subr.mxu0 0.0
    %1665 = vmatpush1.msra.mxu0 0.0
    %1666 = vmatprep.subr.mxu0 0.0
    %1667 = vmatpush1.msra.mxu0 0.0
    %1668 = vmatprep.subr.mxu0 0.0
    %1669 = vmatpush1.msra.mxu0 0.0
    %1670 = vmatprep.subr.mxu0 0.0
    %1671 = vmatpush1.msra.mxu0 0.0
    %1672 = vmatprep.subr.mxu0 0.0
    %1673 = vmatpush1.msra.mxu0 0.0
    %1674 = vmatprep.subr.mxu0 0.0
    %1675 = vmatpush1.msra.mxu0 0.0
    %1676 = vmatprep.subr.mxu0 0.0
    %1677 = vmatpush1.msra.mxu0 0.0
    %1678 = vmatprep.subr.mxu0 0.0
    %1679 = vmatpush1.msra.mxu0 0.0
    %1680 = vmatprep.subr.mxu0 0.0
    %1681 = vmatpush1.msra.mxu0 0.0
    %1682 = vmatprep.subr.mxu0 0.0
    %1683 = vmatpush1.msra.mxu0 0.0
    %1684 = vmatprep.subr.mxu0 0.0
    %1685 = vmatpush1.msra.mxu0 0.0
    %1686 = vmatprep.subr.mxu0 0.0
    %1687 = vmatpush1.msra.mxu0 0.0
    %1688 = vmatprep.subr.mxu0 0.0
    %1689 = vmatpush1.msra.mxu0 0.0
    %1690 = vmatprep.subr.mxu0 0.0
    %1691 = vmatpush1.msra.mxu0 0.0
    %1692 = vmatprep.subr.mxu0 0.0
    %1693 = vmatpush1.msra.mxu0 0.0
    %1694 = vmatprep.subr.mxu0 0.0
    %1695 = vmatpush1.msra.mxu0 0.0
    %1696 = vmatprep.subr.mxu0 0.0
    %1697 = vmatpush1.msra.mxu0 0.0
    %1698 = vmatprep.subr.mxu0 0.0
    %1699 = vmatpush1.msra.mxu0 0.0
    %1700 = vmatprep.subr.mxu0 0.0
    %1701 = vmatpush1.msra.mxu0 0.0
    %1702 = vmatprep.subr.mxu0 0.0
    %1703 = vmatpush1.msra.mxu0 0.0
    %1704 = vmatprep.subr.mxu0 0.0
    %1705 = vmatpush1.msra.mxu0 0.0
    %1706 = vmatprep.subr.mxu0 0.0
    %1707 = vmatpush1.msra.mxu0 0.0
    %1708 = vmatprep.mubr.f32.mxu0 0.0
    %1709 = vmatmul.mubr.f32.gmra.mrb[0].mxu0 %v1642
    %v1710 = vpop.f32.mrb[0].mxu0
    %v1711 = vadd.f32 0.0, %v1710
    %v1712 = vpop.f32.mrb[0].mxu0
    %1713 = vdwg.mxu0
    %v1714 = vadd.f32 %v1711, %v289
    %1716 = vset.pattern.permute.xlu0 32
    %1717 = vperm.xlu0 %1716, %v1632
    %v1718 = vpop.permute.xlu0 %1717
    %v1720 = vmul.f32 %v1718, %v1714
    %v1721 = vadd.f32 %v1626, %v1720
    %v1722 = vmul.f32 %v1718, %v1711
    %v1723 = vadd.f32 %v1628, %v1722
    %v1724 = vadd.f32 %v1217, %v1633
    %v1725 = vadd.f32 %v1724, %v1634
    %v1726 = vadd.f32 %v1630, 1.0
    %v1728 = vrot.slane %v1723, 2
    %v1730 = vadd.f32 %v209, %v1728
    %v1731 = vtanh.pop %v1730
    %v1733 = vrot.slane %v1731, 6
    %v1734 = vsel %vm131, %v1733, 0
    %1736 = vmatprep.subr.mxu0 0.0
    %1737 = vmatpush1.msra.mxu0 %v37
    %1738 = vmatprep.subr.mxu0 0.0
    %1739 = vmatpush1.msra.mxu0 %v38
    %1740 = vmatprep.subr.mxu0 0.0
    %1741 = vmatpush1.msra.mxu0 %v39
    %1742 = vmatprep.subr.mxu0 0.0
    %1743 = vmatpush1.msra.mxu0 %v40
    %1744 = vmatprep.subr.mxu0 0.0
    %1745 = vmatpush1.msra.mxu0 0.0
    %1746 = vmatprep.subr.mxu0 0.0
    %1747 = vmatpush1.msra.mxu0 0.0
    %1748 = vmatprep.subr.mxu0 0.0
    %1749 = vmatpush1.msra.mxu0 0.0
    %1750 = vmatprep.subr.mxu0 0.0
    %1751 = vmatpush1.msra.mxu0 0.0
    %1752 = vmatprep.subr.mxu0 0.0
    %1753 = vmatpush1.msra.mxu0 0.0
    %1754 = vmatprep.subr.mxu0 0.0
    %1755 = vmatpush1.msra.mxu0 0.0
    %1756 = vmatprep.subr.mxu0 0.0
    %1757 = vmatpush1.msra.mxu0 0.0
    %1758 = vmatprep.subr.mxu0 0.0
    %1759 = vmatpush1.msra.mxu0 0.0
    %1760 = vmatprep.subr.mxu0 0.0
    %1761 = vmatpush1.msra.mxu0 0.0
    %1762 = vmatprep.subr.mxu0 0.0
    %1763 = vmatpush1.msra.mxu0 0.0
    %1764 = vmatprep.subr.mxu0 0.0
    %1765 = vmatpush1.msra.mxu0 0.0
    %1766 = vmatprep.subr.mxu0 0.0
    %1767 = vmatpush1.msra.mxu0 0.0
    %1768 = vmatprep.subr.mxu0 0.0
    %1769 = vmatpush1.msra.mxu0 0.0
    %1770 = vmatprep.subr.mxu0 0.0
    %1771 = vmatpush1.msra.mxu0 0.0
    %1772 = vmatprep.subr.mxu0 0.0
    %1773 = vmatpush1.msra.mxu0 0.0
    %1774 = vmatprep.subr.mxu0 0.0
    %1775 = vmatpush1.msra.mxu0 0.0
    %1776 = vmatprep.subr.mxu0 0.0
    %1777 = vmatpush1.msra.mxu0 0.0
    %1778 = vmatprep.subr.mxu0 0.0
    %1779 = vmatpush1.msra.mxu0 0.0
    %1780 = vmatprep.subr.mxu0 0.0
    %1781 = vmatpush1.msra.mxu0 0.0
    %1782 = vmatprep.subr.mxu0 0.0
    %1783 = vmatpush1.msra.mxu0 0.0
    %1784 = vmatprep.subr.mxu0 0.0
    %1785 = vmatpush1.msra.mxu0 0.0
    %1786 = vmatprep.subr.mxu0 0.0
    %1787 = vmatpush1.msra.mxu0 0.0
    %1788 = vmatprep.subr.mxu0 0.0
    %1789 = vmatpush1.msra.mxu0 0.0
    %1790 = vmatprep.subr.mxu0 0.0
    %1791 = vmatpush1.msra.mxu0 0.0
    %1792 = vmatprep.subr.mxu0 0.0
    %1793 = vmatpush1.msra.mxu0 0.0
    %1794 = vmatprep.subr.mxu0 0.0
    %1795 = vmatpush1.msra.mxu0 0.0
    %1796 = vmatprep.subr.mxu0 0.0
    %1797 = vmatpush1.msra.mxu0 0.0
    %1798 = vmatprep.subr.mxu0 0.0
    %1799 = vmatpush1.msra.mxu0 0.0
    %1800 = vmatprep.mubr.f32.mxu0 0.0
    %1801 = vmatmul.mubr.f32.gmra.mrb[0].mxu0 %v1734
    %v1802 = vpop.f32.mrb[0].mxu0
    %v1803 = vadd.f32 0.0, %v1802
    %v1804 = vpop.f32.mrb[0].mxu0
    %1805 = vdwg.mxu0
    %v1806 = vadd.f32 %v1803, %v289
    %v1807 = vxor.u32 %v1806, 2147483648
    %v1808 = vmul.f32 %v1807, 1.442695
    %v1809 = vpow.pop %v1808
    %v1810 = vadd.f32 %v1809, 1.0
    %v1811 = vrcp.pop %v1810
    %v1812 = vmul.f32 1.0, %v1811
    %v1813 = vadd.f32 %v1812, 0.0
    %vm1814 = vcmp.ge.f32.partialorder %v1813, 0.99
    %v1815 = vsel %vm1814, 1.0, %v1812
    %1817 = vset.pattern.permute.xlu0 32
    %1818 = vperm.xlu0 %1817, %v1815
    %v1819 = vpop.permute.xlu0 %1818
    %v1821 = vmul.f32 %v1819, %v1806
    %v1822 = vadd.f32 %v1821, 0.0
    %v1823 = vmul.f32 %v1819, %v1803
    %v1824 = vadd.f32 %v1823, 0.0
    %v1825 = vadd.f32 %v1726, 1.0
    %v1826 = vsel %vm1814, %v1726, %v1825
    %v1827 = vsub.f32 1.0, %v1813
    %v1828 = vsel %vm1814, 0.0, %v1827
    %v1829 = vsel %vm1814, 1.0, %v1827
    %v1830 = vsel %vm1814, 0.0, 2.0
    %v1832 = vrot.slane %v1803, 2
    %v1834 = vadd.f32 %v122, %v1832
    %v1835 = vtanh.pop %v1834
    %v1837 = vrot.slane %v1835, 6
    %v1838 = vsel %vm131, %v1837, 0
    %1840 = vmatprep.subr.mxu0 0.0
    %1841 = vmatpush1.msra.mxu0 %v37
    %1842 = vmatprep.subr.mxu0 0.0
    %1843 = vmatpush1.msra.mxu0 %v38
    %1844 = vmatprep.subr.mxu0 0.0
    %1845 = vmatpush1.msra.mxu0 %v39
    %1846 = vmatprep.subr.mxu0 0.0
    %1847 = vmatpush1.msra.mxu0 %v40
    %1848 = vmatprep.subr.mxu0 0.0
    %1849 = vmatpush1.msra.mxu0 0.0
    %1850 = vmatprep.subr.mxu0 0.0
    %1851 = vmatpush1.msra.mxu0 0.0
    %1852 = vmatprep.subr.mxu0 0.0
    %1853 = vmatpush1.msra.mxu0 0.0
    %1854 = vmatprep.subr.mxu0 0.0
    %1855 = vmatpush1.msra.mxu0 0.0
    %1856 = vmatprep.subr.mxu0 0.0
    %1857 = vmatpush1.msra.mxu0 0.0
    %1858 = vmatprep.subr.mxu0 0.0
    %1859 = vmatpush1.msra.mxu0 0.0
    %1860 = vmatprep.subr.mxu0 0.0
    %1861 = vmatpush1.msra.mxu0 0.0
    %1862 = vmatprep.subr.mxu0 0.0
    %1863 = vmatpush1.msra.mxu0 0.0
    %1864 = vmatprep.subr.mxu0 0.0
    %1865 = vmatpush1.msra.mxu0 0.0
    %1866 = vmatprep.subr.mxu0 0.0
    %1867 = vmatpush1.msra.mxu0 0.0
    %1868 = vmatprep.subr.mxu0 0.0
    %1869 = vmatpush1.msra.mxu0 0.0
    %1870 = vmatprep.subr.mxu0 0.0
    %1871 = vmatpush1.msra.mxu0 0.0
    %1872 = vmatprep.subr.mxu0 0.0
    %1873 = vmatpush1.msra.mxu0 0.0
    %1874 = vmatprep.subr.mxu0 0.0
    %1875 = vmatpush1.msra.mxu0 0.0
    %1876 = vmatprep.subr.mxu0 0.0
    %1877 = vmatpush1.msra.mxu0 0.0
    %1878 = vmatprep.subr.mxu0 0.0
    %1879 = vmatpush1.msra.mxu0 0.0
    %1880 = vmatprep.subr.mxu0 0.0
    %1881 = vmatpush1.msra.mxu0 0.0
    %1882 = vmatprep.subr.mxu0 0.0
    %1883 = vmatpush1.msra.mxu0 0.0
    %1884 = vmatprep.subr.mxu0 0.0
    %1885 = vmatpush1.msra.mxu0 0.0
    %1886 = vmatprep.subr.mxu0 0.0
    %1887 = vmatpush1.msra.mxu0 0.0
    %1888 = vmatprep.subr.mxu0 0.0
    %1889 = vmatpush1.msra.mxu0 0.0
    %1890 = vmatprep.subr.mxu0 0.0
    %1891 = vmatpush1.msra.mxu0 0.0
    %1892 = vmatprep.subr.mxu0 0.0
    %1893 = vmatpush1.msra.mxu0 0.0
    %1894 = vmatprep.subr.mxu0 0.0
    %1895 = vmatpush1.msra.mxu0 0.0
    %1896 = vmatprep.subr.mxu0 0.0
    %1897 = vmatpush1.msra.mxu0 0.0
    %1898 = vmatprep.subr.mxu0 0.0
    %1899 = vmatpush1.msra.mxu0 0.0
    %1900 = vmatprep.subr.mxu0 0.0
    %1901 = vmatpush1.msra.mxu0 0.0
    %1902 = vmatprep.subr.mxu0 0.0
    %1903 = vmatpush1.msra.mxu0 0.0
    %1904 = vmatprep.mubr.f32.mxu0 0.0
    %1905 = vmatmul.mubr.f32.gmra.mrb[0].mxu0 %v1838
    %v1906 = vpop.f32.mrb[0].mxu0
    %v1907 = vadd.f32 0.0, %v1906
    %v1908 = vpop.f32.mrb[0].mxu0
    %1909 = vdwg.mxu0
    %v1910 = vadd.f32 %v1907, %v289
    %v1911 = vxor.u32 %v1910, 2147483648
    %v1912 = vmul.f32 %v1911, 1.442695
    %v1913 = vpow.pop %v1912
    %v1914 = vadd.f32 %v1913, 1.0
    %v1915 = vrcp.pop %v1914
    %v1916 = vmul.f32 1.0, %v1915
    %v1917 = vadd.f32 %v1813, %v1916
    %vm1918 = vcmp.ge.f32.partialorder %v1917, 0.99
    %v1919 = vsel %vm1918, %v1828, %v1916
    %1921 = vset.pattern.permute.xlu0 32
    %1922 = vperm.xlu0 %1921, %v1919
    %v1923 = vpop.permute.xlu0 %1922
    %v1925 = vmul.f32 %v1923, %v1910
    %v1926 = vadd.f32 %v1822, %v1925
    %v1927 = vmul.f32 %v1923, %v1907
    %v1928 = vadd.f32 %v1824, %v1927
    %v1929 = vadd.f32 %v1826, 1.0
    %v1930 = vsel %vm1918, %v1826, %v1929
    %v1931 = vsub.f32 1.0, %v1917
    %v1932 = vsel %vm1918, 0.0, %v1931
    %v1933 = vsel %vm1918, %v1829, %v1931
    %v1934 = vsel %vm1918, %v1830, 3.0
    %v1936 = vrot.slane %v1907, 2
    %v1938 = vadd.f32 %v122, %v1936
    %v1939 = vtanh.pop %v1938
    %v1941 = vrot.slane %v1939, 6
    %v1942 = vsel %vm131, %v1941, 0
    %1944 = vmatprep.subr.mxu0 0.0
    %1945 = vmatpush1.msra.mxu0 %v37
    %1946 = vmatprep.subr.mxu0 0.0
    %1947 = vmatpush1.msra.mxu0 %v38
    %1948 = vmatprep.subr.mxu0 0.0
    %1949 = vmatpush1.msra.mxu0 %v39
    %1950 = vmatprep.subr.mxu0 0.0
    %1951 = vmatpush1.msra.mxu0 %v40
    %1952 = vmatprep.subr.mxu0 0.0
    %1953 = vmatpush1.msra.mxu0 0.0
    %1954 = vmatprep.subr.mxu0 0.0
    %1955 = vmatpush1.msra.mxu0 0.0
    %1956 = vmatprep.subr.mxu0 0.0
    %1957 = vmatpush1.msra.mxu0 0.0
    %1958 = vmatprep.subr.mxu0 0.0
    %1959 = vmatpush1.msra.mxu0 0.0
    %1960 = vmatprep.subr.mxu0 0.0
    %1961 = vmatpush1.msra.mxu0 0.0
    %1962 = vmatprep.subr.mxu0 0.0
    %1963 = vmatpush1.msra.mxu0 0.0
    %1964 = vmatprep.subr.mxu0 0.0
    %1965 = vmatpush1.msra.mxu0 0.0
    %1966 = vmatprep.subr.mxu0 0.0
    %1967 = vmatpush1.msra.mxu0 0.0
    %1968 = vmatprep.subr.mxu0 0.0
    %1969 = vmatpush1.msra.mxu0 0.0
    %1970 = vmatprep.subr.mxu0 0.0
    %1971 = vmatpush1.msra.mxu0 0.0
    %1972 = vmatprep.subr.mxu0 0.0
    %1973 = vmatpush1.msra.mxu0 0.0
    %1974 = vmatprep.subr.mxu0 0.0
    %1975 = vmatpush1.msra.mxu0 0.0
    %1976 = vmatprep.subr.mxu0 0.0
    %1977 = vmatpush1.msra.mxu0 0.0
    %1978 = vmatprep.subr.mxu0 0.0
    %1979 = vmatpush1.msra.mxu0 0.0
    %1980 = vmatprep.subr.mxu0 0.0
    %1981 = vmatpush1.msra.mxu0 0.0
    %1982 = vmatprep.subr.mxu0 0.0
    %1983 = vmatpush1.msra.mxu0 0.0
    %1984 = vmatprep.subr.mxu0 0.0
    %1985 = vmatpush1.msra.mxu0 0.0
    %1986 = vmatprep.subr.mxu0 0.0
    %1987 = vmatpush1.msra.mxu0 0.0
    %1988 = vmatprep.subr.mxu0 0.0
    %1989 = vmatpush1.msra.mxu0 0.0
    %1990 = vmatprep.subr.mxu0 0.0
    %1991 = vmatpush1.msra.mxu0 0.0
    %1992 = vmatprep.subr.mxu0 0.0
    %1993 = vmatpush1.msra.mxu0 0.0
    %1994 = vmatprep.subr.mxu0 0.0
    %1995 = vmatpush1.msra.mxu0 0.0
    %1996 = vmatprep.subr.mxu0 0.0
    %1997 = vmatpush1.msra.mxu0 0.0
    %1998 = vmatprep.subr.mxu0 0.0
    %1999 = vmatpush1.msra.mxu0 0.0
    %2000 = vmatprep.subr.mxu0 0.0
    %2001 = vmatpush1.msra.mxu0 0.0
    %2002 = vmatprep.subr.mxu0 0.0
    %2003 = vmatpush1.msra.mxu0 0.0
    %2004 = vmatprep.subr.mxu0 0.0
    %2005 = vmatpush1.msra.mxu0 0.0
    %2006 = vmatprep.subr.mxu0 0.0
    %2007 = vmatpush1.msra.mxu0 0.0
    %2008 = vmatprep.mubr.f32.mxu0 0.0
    %2009 = vmatmul.mubr.f32.gmra.mrb[0].mxu0 %v1942
    %v2010 = vpop.f32.mrb[0].mxu0
    %v2011 = vadd.f32 0.0, %v2010
    %v2012 = vpop.f32.mrb[0].mxu0
    %2013 = vdwg.mxu0
    %v2014 = vadd.f32 %v2011, %v289
    %v2015 = vxor.u32 %v2014, 2147483648
    %v2016 = vmul.f32 %v2015, 1.442695
    %v2017 = vpow.pop %v2016
    %v2018 = vadd.f32 %v2017, 1.0
    %v2019 = vrcp.pop %v2018
    %v2020 = vmul.f32 1.0, %v2019
    %v2021 = vadd.f32 %v1917, %v2020
    %vm2022 = vcmp.ge.f32.partialorder %v2021, 0.99
    %v2023 = vsel %vm2022, %v1932, %v2020
    %2025 = vset.pattern.permute.xlu0 32
    %2026 = vperm.xlu0 %2025, %v2023
    %v2027 = vpop.permute.xlu0 %2026
    %v2029 = vmul.f32 %v2027, %v2014
    %v2030 = vadd.f32 %v1926, %v2029
    %v2031 = vmul.f32 %v2027, %v2011
    %v2032 = vadd.f32 %v1928, %v2031
    %v2033 = vadd.f32 %v1930, 1.0
    %v2034 = vsel %vm2022, %v1930, %v2033
    %v2035 = vsub.f32 1.0, %v2021
    %v2036 = vsel %vm2022, 0.0, %v2035
    %v2037 = vsel %vm2022, %v1933, %v2035
    %v2038 = vsel %vm2022, %v1934, 4.0
    %v2040 = vrot.slane %v2011, 2
    %v2042 = vadd.f32 %v122, %v2040
    %v2043 = vtanh.pop %v2042
    %v2045 = vrot.slane %v2043, 6
    %v2046 = vsel %vm131, %v2045, 0
    %2048 = vmatprep.subr.mxu0 0.0
    %2049 = vmatpush1.msra.mxu0 %v37
    %2050 = vmatprep.subr.mxu0 0.0
    %2051 = vmatpush1.msra.mxu0 %v38
    %2052 = vmatprep.subr.mxu0 0.0
    %2053 = vmatpush1.msra.mxu0 %v39
    %2054 = vmatprep.subr.mxu0 0.0
    %2055 = vmatpush1.msra.mxu0 %v40
    %2056 = vmatprep.subr.mxu0 0.0
    %2057 = vmatpush1.msra.mxu0 0.0
    %2058 = vmatprep.subr.mxu0 0.0
    %2059 = vmatpush1.msra.mxu0 0.0
    %2060 = vmatprep.subr.mxu0 0.0
    %2061 = vmatpush1.msra.mxu0 0.0
    %2062 = vmatprep.subr.mxu0 0.0
    %2063 = vmatpush1.msra.mxu0 0.0
    %2064 = vmatprep.subr.mxu0 0.0
    %2065 = vmatpush1.msra.mxu0 0.0
    %2066 = vmatprep.subr.mxu0 0.0
    %2067 = vmatpush1.msra.mxu0 0.0
    %2068 = vmatprep.subr.mxu0 0.0
    %2069 = vmatpush1.msra.mxu0 0.0
    %2070 = vmatprep.subr.mxu0 0.0
    %2071 = vmatpush1.msra.mxu0 0.0
    %2072 = vmatprep.subr.mxu0 0.0
    %2073 = vmatpush1.msra.mxu0 0.0
    %2074 = vmatprep.subr.mxu0 0.0
    %2075 = vmatpush1.msra.mxu0 0.0
    %2076 = vmatprep.subr.mxu0 0.0
    %2077 = vmatpush1.msra.mxu0 0.0
    %2078 = vmatprep.subr.mxu0 0.0
    %2079 = vmatpush1.msra.mxu0 0.0
    %2080 = vmatprep.subr.mxu0 0.0
    %2081 = vmatpush1.msra.mxu0 0.0
    %2082 = vmatprep.subr.mxu0 0.0
    %2083 = vmatpush1.msra.mxu0 0.0
    %2084 = vmatprep.subr.mxu0 0.0
    %2085 = vmatpush1.msra.mxu0 0.0
    %2086 = vmatprep.subr.mxu0 0.0
    %2087 = vmatpush1.msra.mxu0 0.0
    %2088 = vmatprep.subr.mxu0 0.0
    %2089 = vmatpush1.msra.mxu0 0.0
    %2090 = vmatprep.subr.mxu0 0.0
    %2091 = vmatpush1.msra.mxu0 0.0
    %2092 = vmatprep.subr.mxu0 0.0
    %2093 = vmatpush1.msra.mxu0 0.0
    %2094 = vmatprep.subr.mxu0 0.0
    %2095 = vmatpush1.msra.mxu0 0.0
    %2096 = vmatprep.subr.mxu0 0.0
    %2097 = vmatpush1.msra.mxu0 0.0
    %2098 = vmatprep.subr.mxu0 0.0
    %2099 = vmatpush1.msra.mxu0 0.0
    %2100 = vmatprep.subr.mxu0 0.0
    %2101 = vmatpush1.msra.mxu0 0.0
    %2102 = vmatprep.subr.mxu0 0.0
    %2103 = vmatpush1.msra.mxu0 0.0
    %2104 = vmatprep.subr.mxu0 0.0
    %2105 = vmatpush1.msra.mxu0 0.0
    %2106 = vmatprep.subr.mxu0 0.0
    %2107 = vmatpush1.msra.mxu0 0.0
    %2108 = vmatprep.subr.mxu0 0.0
    %2109 = vmatpush1.msra.mxu0 0.0
    %2110 = vmatprep.subr.mxu0 0.0
    %2111 = vmatpush1.msra.mxu0 0.0
    %2112 = vmatprep.mubr.f32.mxu0 0.0
    %2113 = vmatmul.mubr.f32.gmra.mrb[0].mxu0 %v2046
    %v2114 = vpop.f32.mrb[0].mxu0
    %v2115 = vadd.f32 0.0, %v2114
    %v2116 = vpop.f32.mrb[0].mxu0
    %2117 = vdwg.mxu0
    %v2118 = vadd.f32 %v2115, %v289
    %v2119 = vxor.u32 %v2118, 2147483648
    %v2120 = vmul.f32 %v2119, 1.442695
    %v2121 = vpow.pop %v2120
    %v2122 = vadd.f32 %v2121, 1.0
    %v2123 = vrcp.pop %v2122
    %v2124 = vmul.f32 1.0, %v2123
    %v2125 = vadd.f32 %v2021, %v2124
    %vm2126 = vcmp.ge.f32.partialorder %v2125, 0.99
    %v2127 = vsel %vm2126, %v2036, %v2124
    %2129 = vset.pattern.permute.xlu0 32
    %2130 = vperm.xlu0 %2129, %v2127
    %v2131 = vpop.permute.xlu0 %2130
    %v2133 = vmul.f32 %v2131, %v2118
    %v2134 = vadd.f32 %v2030, %v2133
    %v2135 = vmul.f32 %v2131, %v2115
    %v2136 = vadd.f32 %v2032, %v2135
    %v2137 = vadd.f32 %v2034, 1.0
    %v2138 = vsel %vm2126, %v2034, %v2137
    %v2139 = vsub.f32 1.0, %v2125
    %v2140 = vsel %vm2126, 0.0, %v2139
    %v2141 = vsel %vm2126, %v2037, %v2139
    %v2142 = vsel %vm2126, %v2038, 5.0
    %v2144 = vrot.slane %v2115, 2
    %v2146 = vadd.f32 %v122, %v2144
    %v2147 = vtanh.pop %v2146
    %v2149 = vrot.slane %v2147, 6
    %v2150 = vsel %vm131, %v2149, 0
    %2152 = vmatprep.subr.mxu0 0.0
    %2153 = vmatpush1.msra.mxu0 %v37
    %2154 = vmatprep.subr.mxu0 0.0
    %2155 = vmatpush1.msra.mxu0 %v38
    %2156 = vmatprep.subr.mxu0 0.0
    %2157 = vmatpush1.msra.mxu0 %v39
    %2158 = vmatprep.subr.mxu0 0.0
    %2159 = vmatpush1.msra.mxu0 %v40
    %2160 = vmatprep.subr.mxu0 0.0
    %2161 = vmatpush1.msra.mxu0 0.0
    %2162 = vmatprep.subr.mxu0 0.0
    %2163 = vmatpush1.msra.mxu0 0.0
    %2164 = vmatprep.subr.mxu0 0.0
    %2165 = vmatpush1.msra.mxu0 0.0
    %2166 = vmatprep.subr.mxu0 0.0
    %2167 = vmatpush1.msra.mxu0 0.0
    %2168 = vmatprep.subr.mxu0 0.0
    %2169 = vmatpush1.msra.mxu0 0.0
    %2170 = vmatprep.subr.mxu0 0.0
    %2171 = vmatpush1.msra.mxu0 0.0
    %2172 = vmatprep.subr.mxu0 0.0
    %2173 = vmatpush1.msra.mxu0 0.0
    %2174 = vmatprep.subr.mxu0 0.0
    %2175 = vmatpush1.msra.mxu0 0.0
    %2176 = vmatprep.subr.mxu0 0.0
    %2177 = vmatpush1.msra.mxu0 0.0
    %2178 = vmatprep.subr.mxu0 0.0
    %2179 = vmatpush1.msra.mxu0 0.0
    %2180 = vmatprep.subr.mxu0 0.0
    %2181 = vmatpush1.msra.mxu0 0.0
    %2182 = vmatprep.subr.mxu0 0.0
    %2183 = vmatpush1.msra.mxu0 0.0
    %2184 = vmatprep.subr.mxu0 0.0
    %2185 = vmatpush1.msra.mxu0 0.0
    %2186 = vmatprep.subr.mxu0 0.0
    %2187 = vmatpush1.msra.mxu0 0.0
    %2188 = vmatprep.subr.mxu0 0.0
    %2189 = vmatpush1.msra.mxu0 0.0
    %2190 = vmatprep.subr.mxu0 0.0
    %2191 = vmatpush1.msra.mxu0 0.0
    %2192 = vmatprep.subr.mxu0 0.0
    %2193 = vmatpush1.msra.mxu0 0.0
    %2194 = vmatprep.subr.mxu0 0.0
    %2195 = vmatpush1.msra.mxu0 0.0
    %2196 = vmatprep.subr.mxu0 0.0
    %2197 = vmatpush1.msra.mxu0 0.0
    %2198 = vmatprep.subr.mxu0 0.0
    %2199 = vmatpush1.msra.mxu0 0.0
    %2200 = vmatprep.subr.mxu0 0.0
    %2201 = vmatpush1.msra.mxu0 0.0
    %2202 = vmatprep.subr.mxu0 0.0
    %2203 = vmatpush1.msra.mxu0 0.0
    %2204 = vmatprep.subr.mxu0 0.0
    %2205 = vmatpush1.msra.mxu0 0.0
    %2206 = vmatprep.subr.mxu0 0.0
    %2207 = vmatpush1.msra.mxu0 0.0
    %2208 = vmatprep.subr.mxu0 0.0
    %2209 = vmatpush1.msra.mxu0 0.0
    %2210 = vmatprep.subr.mxu0 0.0
    %2211 = vmatpush1.msra.mxu0 0.0
    %2212 = vmatprep.subr.mxu0 0.0
    %2213 = vmatpush1.msra.mxu0 0.0
    %2214 = vmatprep.subr.mxu0 0.0
    %2215 = vmatpush1.msra.mxu0 0.0
    %2216 = vmatprep.mubr.f32.mxu0 0.0
    %2217 = vmatmul.mubr.f32.gmra.mrb[0].mxu0 %v2150
    %v2218 = vpop.f32.mrb[0].mxu0
    %v2219 = vadd.f32 0.0, %v2218
    %v2220 = vpop.f32.mrb[0].mxu0
    %2221 = vdwg.mxu0
    %v2222 = vadd.f32 %v2219, %v289
    %2224 = vset.pattern.permute.xlu0 32
    %2225 = vperm.xlu0 %2224, %v2140
    %v2226 = vpop.permute.xlu0 %2225
    %v2228 = vmul.f32 %v2226, %v2222
    %v2229 = vadd.f32 %v2134, %v2228
    %v2230 = vmul.f32 %v2226, %v2219
    %v2231 = vadd.f32 %v2136, %v2230
    %v2232 = vadd.f32 %v1725, %v2141
    %v2233 = vadd.f32 %v2232, %v2142
    %v2234 = vadd.f32 %v127, %v208
    %v2235 = vadd.f32 %v2138, 1.0
    %v2236 = vadd.f32 %v2234, %v2231
    %v2237 = vtanh.pop %v2236
    %v2239 = vsel %vm131, %v2237, 0
    %2241 = vmatprep.subr.mxu0 0.0
    %2242 = vmatpush1.msra.mxu0 %v37
    %2243 = vmatprep.subr.mxu0 0.0
    %2244 = vmatpush1.msra.mxu0 %v38
    %2245 = vmatprep.subr.mxu0 0.0
    %2246 = vmatpush1.msra.mxu0 %v39
    %2247 = vmatprep.subr.mxu0 0.0
    %2248 = vmatpush1.msra.mxu0 %v40
    %2249 = vmatprep.subr.mxu0 0.0
    %2250 = vmatpush1.msra.mxu0 0.0
    %2251 = vmatprep.subr.mxu0 0.0
    %2252 = vmatpush1.msra.mxu0 0.0
    %2253 = vmatprep.subr.mxu0 0.0
    %2254 = vmatpush1.msra.mxu0 0.0
    %2255 = vmatprep.subr.mxu0 0.0
    %2256 = vmatpush1.msra.mxu0 0.0
    %2257 = vmatprep.subr.mxu0 0.0
    %2258 = vmatpush1.msra.mxu0 0.0
    %2259 = vmatprep.subr.mxu0 0.0
    %2260 = vmatpush1.msra.mxu0 0.0
    %2261 = vmatprep.subr.mxu0 0.0
    %2262 = vmatpush1.msra.mxu0 0.0
    %2263 = vmatprep.subr.mxu0 0.0
    %2264 = vmatpush1.msra.mxu0 0.0
    %2265 = vmatprep.subr.mxu0 0.0
    %2266 = vmatpush1.msra.mxu0 0.0
    %2267 = vmatprep.subr.mxu0 0.0
    %2268 = vmatpush1.msra.mxu0 0.0
    %2269 = vmatprep.subr.mxu0 0.0
    %2270 = vmatpush1.msra.mxu0 0.0
    %2271 = vmatprep.subr.mxu0 0.0
    %2272 = vmatpush1.msra.mxu0 0.0
    %2273 = vmatprep.subr.mxu0 0.0
    %2274 = vmatpush1.msra.mxu0 0.0
    %2275 = vmatprep.subr.mxu0 0.0
    %2276 = vmatpush1.msra.mxu0 0.0
    %2277 = vmatprep.subr.mxu0 0.0
    %2278 = vmatpush1.msra.mxu0 0.0
    %2279 = vmatprep.subr.mxu0 0.0
    %2280 = vmatpush1.msra.mxu0 0.0
    %2281 = vmatprep.subr.mxu0 0.0
    %2282 = vmatpush1.msra.mxu0 0.0
    %2283 = vmatprep.subr.mxu0 0.0
    %2284 = vmatpush1.msra.mxu0 0.0
    %2285 = vmatprep.subr.mxu0 0.0
    %2286 = vmatpush1.msra.mxu0 0.0
    %2287 = vmatprep.subr.mxu0 0.0
    %2288 = vmatpush1.msra.mxu0 0.0
    %2289 = vmatprep.subr.mxu0 0.0
    %2290 = vmatpush1.msra.mxu0 0.0
    %2291 = vmatprep.subr.mxu0 0.0
    %2292 = vmatpush1.msra.mxu0 0.0
    %2293 = vmatprep.subr.mxu0 0.0
    %2294 = vmatpush1.msra.mxu0 0.0
    %2295 = vmatprep.subr.mxu0 0.0
    %2296 = vmatpush1.msra.mxu0 0.0
    %2297 = vmatprep.subr.mxu0 0.0
    %2298 = vmatpush1.msra.mxu0 0.0
    %2299 = vmatprep.subr.mxu0 0.0
    %2300 = vmatpush1.msra.mxu0 0.0
    %2301 = vmatprep.subr.mxu0 0.0
    %2302 = vmatpush1.msra.mxu0 0.0
    %2303 = vmatprep.subr.mxu0 0.0
    %2304 = vmatpush1.msra.mxu0 0.0
    %2305 = vmatprep.mubr.f32.mxu0 0.0
    %2306 = vmatmul.mubr.f32.gmra.mrb[0].mxu0 %v2239
    %v2307 = vpop.f32.mrb[0].mxu0
    %v2308 = vadd.f32 0.0, %v2307
    %v2309 = vpop.f32.mrb[0].mxu0
    %2310 = vdwg.mxu0
    %v2311 = vadd.f32 %v2308, %v289
    %v2312 = vxor.u32 %v2311, 2147483648
    %v2313 = vmul.f32 %v2312, 1.442695
    %v2314 = vpow.pop %v2313
    %v2315 = vadd.f32 %v2314, 1.0
    %v2316 = vrcp.pop %v2315
    %v2317 = vmul.f32 1.0, %v2316
    %v2318 = vadd.f32 %v2317, 0.0
    %vm2319 = vcmp.ge.f32.partialorder %v2318, 0.99
    %v2320 = vsel %vm2319, 1.0, %v2317
    %2322 = vset.pattern.permute.xlu0 32
    %2323 = vperm.xlu0 %2322, %v2320
    %v2324 = vpop.permute.xlu0 %2323
    %v2326 = vmul.f32 %v2324, %v2311
    %v2327 = vadd.f32 %v2326, 0.0
    %v2328 = vmul.f32 %v2324, %v2308
    %v2329 = vadd.f32 %v2328, 0.0
    %v2330 = vadd.f32 %v2235, 1.0
    %v2331 = vsel %vm2319, %v2235, %v2330
    %v2332 = vsub.f32 1.0, %v2318
    %v2333 = vsel %vm2319, 0.0, %v2332
    %v2334 = vsel %vm2319, 1.0, %v2332
    %v2335 = vsel %vm2319, 0.0, 2.0
    %v2336 = vadd.f32 %v127, %v2308
    %v2337 = vtanh.pop %v2336
    %v2339 = vsel %vm131, %v2337, 0
    %2341 = vmatprep.subr.mxu0 0.0
    %2342 = vmatpush1.msra.mxu0 %v37
    %2343 = vmatprep.subr.mxu0 0.0
    %2344 = vmatpush1.msra.mxu0 %v38
    %2345 = vmatprep.subr.mxu0 0.0
    %2346 = vmatpush1.msra.mxu0 %v39
    %2347 = vmatprep.subr.mxu0 0.0
    %2348 = vmatpush1.msra.mxu0 %v40
    %2349 = vmatprep.subr.mxu0 0.0
    %2350 = vmatpush1.msra.mxu0 0.0
    %2351 = vmatprep.subr.mxu0 0.0
    %2352 = vmatpush1.msra.mxu0 0.0
    %2353 = vmatprep.subr.mxu0 0.0
    %2354 = vmatpush1.msra.mxu0 0.0
    %2355 = vmatprep.subr.mxu0 0.0
    %2356 = vmatpush1.msra.mxu0 0.0
    %2357 = vmatprep.subr.mxu0 0.0
    %2358 = vmatpush1.msra.mxu0 0.0
    %2359 = vmatprep.subr.mxu0 0.0
    %2360 = vmatpush1.msra.mxu0 0.0
    %2361 = vmatprep.subr.mxu0 0.0
    %2362 = vmatpush1.msra.mxu0 0.0
    %2363 = vmatprep.subr.mxu0 0.0
    %2364 = vmatpush1.msra.mxu0 0.0
    %2365 = vmatprep.subr.mxu0 0.0
    %2366 = vmatpush1.msra.mxu0 0.0
    %2367 = vmatprep.subr.mxu0 0.0
    %2368 = vmatpush1.msra.mxu0 0.0
    %2369 = vmatprep.subr.mxu0 0.0
    %2370 = vmatpush1.msra.mxu0 0.0
    %2371 = vmatprep.subr.mxu0 0.0
    %2372 = vmatpush1.msra.mxu0 0.0
    %2373 = vmatprep.subr.mxu0 0.0
    %2374 = vmatpush1.msra.mxu0 0.0
    %2375 = vmatprep.subr.mxu0 0.0
    %2376 = vmatpush1.msra.mxu0 0.0
    %2377 = vmatprep.subr.mxu0 0.0
    %2378 = vmatpush1.msra.mxu0 0.0
    %2379 = vmatprep.subr.mxu0 0.0
    %2380 = vmatpush1.msra.mxu0 0.0
    %2381 = vmatprep.subr.mxu0 0.0
    %2382 = vmatpush1.msra.mxu0 0.0
    %2383 = vmatprep.subr.mxu0 0.0
    %2384 = vmatpush1.msra.mxu0 0.0
    %2385 = vmatprep.subr.mxu0 0.0
    %2386 = vmatpush1.msra.mxu0 0.0
    %2387 = vmatprep.subr.mxu0 0.0
    %2388 = vmatpush1.msra.mxu0 0.0
    %2389 = vmatprep.subr.mxu0 0.0
    %2390 = vmatpush1.msra.mxu0 0.0
    %2391 = vmatprep.subr.mxu0 0.0
    %2392 = vmatpush1.msra.mxu0 0.0
    %2393 = vmatprep.subr.mxu0 0.0
    %2394 = vmatpush1.msra.mxu0 0.0
    %2395 = vmatprep.subr.mxu0 0.0
    %2396 = vmatpush1.msra.mxu0 0.0
    %2397 = vmatprep.subr.mxu0 0.0
    %2398 = vmatpush1.msra.mxu0 0.0
    %2399 = vmatprep.subr.mxu0 0.0
    %2400 = vmatpush1.msra.mxu0 0.0
    %2401 = vmatprep.subr.mxu0 0.0
    %2402 = vmatpush1.msra.mxu0 0.0
    %2403 = vmatprep.subr.mxu0 0.0
    %2404 = vmatpush1.msra.mxu0 0.0
    %2405 = vmatprep.mubr.f32.mxu0 0.0
    %2406 = vmatmul.mubr.f32.gmra.mrb[0].mxu0 %v2339
    %v2407 = vpop.f32.mrb[0].mxu0
    %v2408 = vadd.f32 0.0, %v2407
    %v2409 = vpop.f32.mrb[0].mxu0
    %2410 = vdwg.mxu0
    %v2411 = vadd.f32 %v2408, %v289
    %v2412 = vxor.u32 %v2411, 2147483648
    %v2413 = vmul.f32 %v2412, 1.442695
    %v2414 = vpow.pop %v2413
    %v2415 = vadd.f32 %v2414, 1.0
    %v2416 = vrcp.pop %v2415
    %v2417 = vmul.f32 1.0, %v2416
    %v2418 = vadd.f32 %v2318, %v2417
    %vm2419 = vcmp.ge.f32.partialorder %v2418, 0.99
    %v2420 = vsel %vm2419, %v2333, %v2417
    %2422 = vset.pattern.permute.xlu0 32
    %2423 = vperm.xlu0 %2422, %v2420
    %v2424 = vpop.permute.xlu0 %2423
    %v2426 = vmul.f32 %v2424, %v2411
    %v2427 = vadd.f32 %v2327, %v2426
    %v2428 = vmul.f32 %v2424, %v2408
    %v2429 = vadd.f32 %v2329, %v2428
    %v2430 = vadd.f32 %v2331, 1.0
    %v2431 = vsel %vm2419, %v2331, %v2430
    %v2432 = vsub.f32 1.0, %v2418
    %v2433 = vsel %vm2419, 0.0, %v2432
    %v2434 = vsel %vm2419, %v2334, %v2432
    %v2435 = vsel %vm2419, %v2335, 3.0
    %v2436 = vadd.f32 %v127, %v2408
    %v2437 = vtanh.pop %v2436
    %v2439 = vsel %vm131, %v2437, 0
    %2441 = vmatprep.subr.mxu0 0.0
    %2442 = vmatpush1.msra.mxu0 %v37
    %2443 = vmatprep.subr.mxu0 0.0
    %2444 = vmatpush1.msra.mxu0 %v38
    %2445 = vmatprep.subr.mxu0 0.0
    %2446 = vmatpush1.msra.mxu0 %v39
    %2447 = vmatprep.subr.mxu0 0.0
    %2448 = vmatpush1.msra.mxu0 %v40
    %2449 = vmatprep.subr.mxu0 0.0
    %2450 = vmatpush1.msra.mxu0 0.0
    %2451 = vmatprep.subr.mxu0 0.0
    %2452 = vmatpush1.msra.mxu0 0.0
    %2453 = vmatprep.subr.mxu0 0.0
    %2454 = vmatpush1.msra.mxu0 0.0
    %2455 = vmatprep.subr.mxu0 0.0
    %2456 = vmatpush1.msra.mxu0 0.0
    %2457 = vmatprep.subr.mxu0 0.0
    %2458 = vmatpush1.msra.mxu0 0.0
    %2459 = vmatprep.subr.mxu0 0.0
    %2460 = vmatpush1.msra.mxu0 0.0
    %2461 = vmatprep.subr.mxu0 0.0
    %2462 = vmatpush1.msra.mxu0 0.0
    %2463 = vmatprep.subr.mxu0 0.0
    %2464 = vmatpush1.msra.mxu0 0.0
    %2465 = vmatprep.subr.mxu0 0.0
    %2466 = vmatpush1.msra.mxu0 0.0
    %2467 = vmatprep.subr.mxu0 0.0
    %2468 = vmatpush1.msra.mxu0 0.0
    %2469 = vmatprep.subr.mxu0 0.0
    %2470 = vmatpush1.msra.mxu0 0.0
    %2471 = vmatprep.subr.mxu0 0.0
    %2472 = vmatpush1.msra.mxu0 0.0
    %2473 = vmatprep.subr.mxu0 0.0
    %2474 = vmatpush1.msra.mxu0 0.0
    %2475 = vmatprep.subr.mxu0 0.0
    %2476 = vmatpush1.msra.mxu0 0.0
    %2477 = vmatprep.subr.mxu0 0.0
    %2478 = vmatpush1.msra.mxu0 0.0
    %2479 = vmatprep.subr.mxu0 0.0
    %2480 = vmatpush1.msra.mxu0 0.0
    %2481 = vmatprep.subr.mxu0 0.0
    %2482 = vmatpush1.msra.mxu0 0.0
    %2483 = vmatprep.subr.mxu0 0.0
    %2484 = vmatpush1.msra.mxu0 0.0
    %2485 = vmatprep.subr.mxu0 0.0
    %2486 = vmatpush1.msra.mxu0 0.0
    %2487 = vmatprep.subr.mxu0 0.0
    %2488 = vmatpush1.msra.mxu0 0.0
    %2489 = vmatprep.subr.mxu0 0.0
    %2490 = vmatpush1.msra.mxu0 0.0
    %2491 = vmatprep.subr.mxu0 0.0
    %2492 = vmatpush1.msra.mxu0 0.0
    %2493 = vmatprep.subr.mxu0 0.0
    %2494 = vmatpush1.msra.mxu0 0.0
    %2495 = vmatprep.subr.mxu0 0.0
    %2496 = vmatpush1.msra.mxu0 0.0
    %2497 = vmatprep.subr.mxu0 0.0
    %2498 = vmatpush1.msra.mxu0 0.0
    %2499 = vmatprep.subr.mxu0 0.0
    %2500 = vmatpush1.msra.mxu0 0.0
    %2501 = vmatprep.subr.mxu0 0.0
    %2502 = vmatpush1.msra.mxu0 0.0
    %2503 = vmatprep.subr.mxu0 0.0
    %2504 = vmatpush1.msra.mxu0 0.0
    %2505 = vmatprep.mubr.f32.mxu0 0.0
    %2506 = vmatmul.mubr.f32.gmra.mrb[0].mxu0 %v2439
    %v2507 = vpop.f32.mrb[0].mxu0
    %v2508 = vadd.f32 0.0, %v2507
    %v2509 = vpop.f32.mrb[0].mxu0
    %2510 = vdwg.mxu0
    %v2511 = vadd.f32 %v2508, %v289
    %v2512 = vxor.u32 %v2511, 2147483648
    %v2513 = vmul.f32 %v2512, 1.442695
    %v2514 = vpow.pop %v2513
    %v2515 = vadd.f32 %v2514, 1.0
    %v2516 = vrcp.pop %v2515
    %v2517 = vmul.f32 1.0, %v2516
    %v2518 = vadd.f32 %v2418, %v2517
    %vm2519 = vcmp.ge.f32.partialorder %v2518, 0.99
    %v2520 = vsel %vm2519, %v2433, %v2517
    %2522 = vset.pattern.permute.xlu0 32
    %2523 = vperm.xlu0 %2522, %v2520
    %v2524 = vpop.permute.xlu0 %2523
    %v2526 = vmul.f32 %v2524, %v2511
    %v2527 = vadd.f32 %v2427, %v2526
    %v2528 = vmul.f32 %v2524, %v2508
    %v2529 = vadd.f32 %v2429, %v2528
    %v2530 = vadd.f32 %v2431, 1.0
    %v2531 = vsel %vm2519, %v2431, %v2530
    %v2532 = vsub.f32 1.0, %v2518
    %v2533 = vsel %vm2519, 0.0, %v2532
    %v2534 = vsel %vm2519, %v2434, %v2532
    %v2535 = vsel %vm2519, %v2435, 4.0
    %v2536 = vadd.f32 %v127, %v2508
    %v2537 = vtanh.pop %v2536
    %v2539 = vsel %vm131, %v2537, 0
    %2541 = vmatprep.subr.mxu0 0.0
    %2542 = vmatpush1.msra.mxu0 %v37
    %2543 = vmatprep.subr.mxu0 0.0
    %2544 = vmatpush1.msra.mxu0 %v38
    %2545 = vmatprep.subr.mxu0 0.0
    %2546 = vmatpush1.msra.mxu0 %v39
    %2547 = vmatprep.subr.mxu0 0.0
    %2548 = vmatpush1.msra.mxu0 %v40
    %2549 = vmatprep.subr.mxu0 0.0
    %2550 = vmatpush1.msra.mxu0 0.0
    %2551 = vmatprep.subr.mxu0 0.0
    %2552 = vmatpush1.msra.mxu0 0.0
    %2553 = vmatprep.subr.mxu0 0.0
    %2554 = vmatpush1.msra.mxu0 0.0
    %2555 = vmatprep.subr.mxu0 0.0
    %2556 = vmatpush1.msra.mxu0 0.0
    %2557 = vmatprep.subr.mxu0 0.0
    %2558 = vmatpush1.msra.mxu0 0.0
    %2559 = vmatprep.subr.mxu0 0.0
    %2560 = vmatpush1.msra.mxu0 0.0
    %2561 = vmatprep.subr.mxu0 0.0
    %2562 = vmatpush1.msra.mxu0 0.0
    %2563 = vmatprep.subr.mxu0 0.0
    %2564 = vmatpush1.msra.mxu0 0.0
    %2565 = vmatprep.subr.mxu0 0.0
    %2566 = vmatpush1.msra.mxu0 0.0
    %2567 = vmatprep.subr.mxu0 0.0
    %2568 = vmatpush1.msra.mxu0 0.0
    %2569 = vmatprep.subr.mxu0 0.0
    %2570 = vmatpush1.msra.mxu0 0.0
    %2571 = vmatprep.subr.mxu0 0.0
    %2572 = vmatpush1.msra.mxu0 0.0
    %2573 = vmatprep.subr.mxu0 0.0
    %2574 = vmatpush1.msra.mxu0 0.0
    %2575 = vmatprep.subr.mxu0 0.0
    %2576 = vmatpush1.msra.mxu0 0.0
    %2577 = vmatprep.subr.mxu0 0.0
    %2578 = vmatpush1.msra.mxu0 0.0
    %2579 = vmatprep.subr.mxu0 0.0
    %2580 = vmatpush1.msra.mxu0 0.0
    %2581 = vmatprep.subr.mxu0 0.0
    %2582 = vmatpush1.msra.mxu0 0.0
    %2583 = vmatprep.subr.mxu0 0.0
    %2584 = vmatpush1.msra.mxu0 0.0
    %2585 = vmatprep.subr.mxu0 0.0
    %2586 = vmatpush1.msra.mxu0 0.0
    %2587 = vmatprep.subr.mxu0 0.0
    %2588 = vmatpush1.msra.mxu0 0.0
    %2589 = vmatprep.subr.mxu0 0.0
    %2590 = vmatpush1.msra.mxu0 0.0
    %2591 = vmatprep.subr.mxu0 0.0
    %2592 = vmatpush1.msra.mxu0 0.0
    %2593 = vmatprep.subr.mxu0 0.0
    %2594 = vmatpush1.msra.mxu0 0.0
    %2595 = vmatprep.subr.mxu0 0.0
    %2596 = vmatpush1.msra.mxu0 0.0
    %2597 = vmatprep.subr.mxu0 0.0
    %2598 = vmatpush1.msra.mxu0 0.0
    %2599 = vmatprep.subr.mxu0 0.0
    %2600 = vmatpush1.msra.mxu0 0.0
    %2601 = vmatprep.subr.mxu0 0.0
    %2602 = vmatpush1.msra.mxu0 0.0
    %2603 = vmatprep.subr.mxu0 0.0
    %2604 = vmatpush1.msra.mxu0 0.0
    %2605 = vmatprep.mubr.f32.mxu0 0.0
    %2606 = vmatmul.mubr.f32.gmra.mrb[0].mxu0 %v2539
    %v2607 = vpop.f32.mrb[0].mxu0
    %v2608 = vadd.f32 0.0, %v2607
    %v2609 = vpop.f32.mrb[0].mxu0
    %2610 = vdwg.mxu0
    %v2611 = vadd.f32 %v2608, %v289
    %v2612 = vxor.u32 %v2611, 2147483648
    %v2613 = vmul.f32 %v2612, 1.442695
    %v2614 = vpow.pop %v2613
    %v2615 = vadd.f32 %v2614, 1.0
    %v2616 = vrcp.pop %v2615
    %v2617 = vmul.f32 1.0, %v2616
    %v2618 = vadd.f32 %v2518, %v2617
    %vm2619 = vcmp.ge.f32.partialorder %v2618, 0.99
    %v2620 = vsel %vm2619, %v2533, %v2617
    %2622 = vset.pattern.permute.xlu0 32
    %2623 = vperm.xlu0 %2622, %v2620
    %v2624 = vpop.permute.xlu0 %2623
    %v2626 = vmul.f32 %v2624, %v2611
    %v2627 = vadd.f32 %v2527, %v2626
    %v2628 = vmul.f32 %v2624, %v2608
    %v2629 = vadd.f32 %v2529, %v2628
    %v2630 = vadd.f32 %v2531, 1.0
    %v2631 = vsel %vm2619, %v2531, %v2630
    %v2632 = vsub.f32 1.0, %v2618
    %v2633 = vsel %vm2619, 0.0, %v2632
    %v2634 = vsel %vm2619, %v2534, %v2632
    %v2635 = vsel %vm2619, %v2535, 5.0
    %v2636 = vadd.f32 %v127, %v2608
    %v2637 = vtanh.pop %v2636
    %v2639 = vsel %vm131, %v2637, 0
    %2641 = vmatprep.subr.mxu0 0.0
    %2642 = vmatpush1.msra.mxu0 %v37
    %2643 = vmatprep.subr.mxu0 0.0
    %2644 = vmatpush1.msra.mxu0 %v38
    %2645 = vmatprep.subr.mxu0 0.0
    %2646 = vmatpush1.msra.mxu0 %v39
    %2647 = vmatprep.subr.mxu0 0.0
    %2648 = vmatpush1.msra.mxu0 %v40
    %2649 = vmatprep.subr.mxu0 0.0
    %2650 = vmatpush1.msra.mxu0 0.0
    %2651 = vmatprep.subr.mxu0 0.0
    %2652 = vmatpush1.msra.mxu0 0.0
    %2653 = vmatprep.subr.mxu0 0.0
    %2654 = vmatpush1.msra.mxu0 0.0
    %2655 = vmatprep.subr.mxu0 0.0
    %2656 = vmatpush1.msra.mxu0 0.0
    %2657 = vmatprep.subr.mxu0 0.0
    %2658 = vmatpush1.msra.mxu0 0.0
    %2659 = vmatprep.subr.mxu0 0.0
    %2660 = vmatpush1.msra.mxu0 0.0
    %2661 = vmatprep.subr.mxu0 0.0
    %2662 = vmatpush1.msra.mxu0 0.0
    %2663 = vmatprep.subr.mxu0 0.0
    %2664 = vmatpush1.msra.mxu0 0.0
    %2665 = vmatprep.subr.mxu0 0.0
    %2666 = vmatpush1.msra.mxu0 0.0
    %2667 = vmatprep.subr.mxu0 0.0
    %2668 = vmatpush1.msra.mxu0 0.0
    %2669 = vmatprep.subr.mxu0 0.0
    %2670 = vmatpush1.msra.mxu0 0.0
    %2671 = vmatprep.subr.mxu0 0.0
    %2672 = vmatpush1.msra.mxu0 0.0
    %2673 = vmatprep.subr.mxu0 0.0
    %2674 = vmatpush1.msra.mxu0 0.0
    %2675 = vmatprep.subr.mxu0 0.0
    %2676 = vmatpush1.msra.mxu0 0.0
    %2677 = vmatprep.subr.mxu0 0.0
    %2678 = vmatpush1.msra.mxu0 0.0
    %2679 = vmatprep.subr.mxu0 0.0
    %2680 = vmatpush1.msra.mxu0 0.0
    %2681 = vmatprep.subr.mxu0 0.0
    %2682 = vmatpush1.msra.mxu0 0.0
    %2683 = vmatprep.subr.mxu0 0.0
    %2684 = vmatpush1.msra.mxu0 0.0
    %2685 = vmatprep.subr.mxu0 0.0
    %2686 = vmatpush1.msra.mxu0 0.0
    %2687 = vmatprep.subr.mxu0 0.0
    %2688 = vmatpush1.msra.mxu0 0.0
    %2689 = vmatprep.subr.mxu0 0.0
    %2690 = vmatpush1.msra.mxu0 0.0
    %2691 = vmatprep.subr.mxu0 0.0
    %2692 = vmatpush1.msra.mxu0 0.0
    %2693 = vmatprep.subr.mxu0 0.0
    %2694 = vmatpush1.msra.mxu0 0.0
    %2695 = vmatprep.subr.mxu0 0.0
    %2696 = vmatpush1.msra.mxu0 0.0
    %2697 = vmatprep.subr.mxu0 0.0
    %2698 = vmatpush1.msra.mxu0 0.0
    %2699 = vmatprep.subr.mxu0 0.0
    %2700 = vmatpush1.msra.mxu0 0.0
    %2701 = vmatprep.subr.mxu0 0.0
    %2702 = vmatpush1.msra.mxu0 0.0
    %2703 = vmatprep.subr.mxu0 0.0
    %2704 = vmatpush1.msra.mxu0 0.0
    %2705 = vmatprep.mubr.f32.mxu0 0.0
    %2706 = vmatmul.mubr.f32.gmra.mrb[0].mxu0 %v2639
    %v2707 = vpop.f32.mrb[0].mxu0
    %v2708 = vadd.f32 0.0, %v2707
    %v2709 = vpop.f32.mrb[0].mxu0
    %2710 = vdwg.mxu0
    %v2711 = vadd.f32 %v2708, %v289
    %2713 = vset.pattern.permute.xlu0 32
    %2714 = vperm.xlu0 %2713, %v2633
    %v2715 = vpop.permute.xlu0 %2714
    %v2717 = vmul.f32 %v2715, %v2711
    %v2718 = vadd.f32 %v2627, %v2717
    %v2719 = vmul.f32 %v2715, %v2708
    %v2720 = vadd.f32 %v2629, %v2719
    %v2721 = vadd.f32 %v2233, %v2634
    %v2722 = vadd.f32 %v2721, %v2635
    %v2723 = vadd.f32 %v2631, 1.0
    %v2725 = vrot.slane %v2720, 6
    %v2727 = vadd.f32 %v2234, %v2725
    %v2728 = vtanh.pop %v2727
    %v2730 = vrot.slane %v2728, 2
    %v2731 = vsel %vm131, %v2730, 0
    %2733 = vmatprep.subr.mxu0 0.0
    %2734 = vmatpush1.msra.mxu0 %v37
    %2735 = vmatprep.subr.mxu0 0.0
    %2736 = vmatpush1.msra.mxu0 %v38
    %2737 = vmatprep.subr.mxu0 0.0
    %2738 = vmatpush1.msra.mxu0 %v39
    %2739 = vmatprep.subr.mxu0 0.0
    %2740 = vmatpush1.msra.mxu0 %v40
    %2741 = vmatprep.subr.mxu0 0.0
    %2742 = vmatpush1.msra.mxu0 0.0
    %2743 = vmatprep.subr.mxu0 0.0
    %2744 = vmatpush1.msra.mxu0 0.0
    %2745 = vmatprep.subr.mxu0 0.0
    %2746 = vmatpush1.msra.mxu0 0.0
    %2747 = vmatprep.subr.mxu0 0.0
    %2748 = vmatpush1.msra.mxu0 0.0
    %2749 = vmatprep.subr.mxu0 0.0
    %2750 = vmatpush1.msra.mxu0 0.0
    %2751 = vmatprep.subr.mxu0 0.0
    %2752 = vmatpush1.msra.mxu0 0.0
    %2753 = vmatprep.subr.mxu0 0.0
    %2754 = vmatpush1.msra.mxu0 0.0
    %2755 = vmatprep.subr.mxu0 0.0
    %2756 = vmatpush1.msra.mxu0 0.0
    %2757 = vmatprep.subr.mxu0 0.0
    %2758 = vmatpush1.msra.mxu0 0.0
    %2759 = vmatprep.subr.mxu0 0.0
    %2760 = vmatpush1.msra.mxu0 0.0
    %2761 = vmatprep.subr.mxu0 0.0
    %2762 = vmatpush1.msra.mxu0 0.0
    %2763 = vmatprep.subr.mxu0 0.0
    %2764 = vmatpush1.msra.mxu0 0.0
    %2765 = vmatprep.subr.mxu0 0.0
    %2766 = vmatpush1.msra.mxu0 0.0
    %2767 = vmatprep.subr.mxu0 0.0
    %2768 = vmatpush1.msra.mxu0 0.0
    %2769 = vmatprep.subr.mxu0 0.0
    %2770 = vmatpush1.msra.mxu0 0.0
    %2771 = vmatprep.subr.mxu0 0.0
    %2772 = vmatpush1.msra.mxu0 0.0
    %2773 = vmatprep.subr.mxu0 0.0
    %2774 = vmatpush1.msra.mxu0 0.0
    %2775 = vmatprep.subr.mxu0 0.0
    %2776 = vmatpush1.msra.mxu0 0.0
    %2777 = vmatprep.subr.mxu0 0.0
    %2778 = vmatpush1.msra.mxu0 0.0
    %2779 = vmatprep.subr.mxu0 0.0
    %2780 = vmatpush1.msra.mxu0 0.0
    %2781 = vmatprep.subr.mxu0 0.0
    %2782 = vmatpush1.msra.mxu0 0.0
    %2783 = vmatprep.subr.mxu0 0.0
    %2784 = vmatpush1.msra.mxu0 0.0
    %2785 = vmatprep.subr.mxu0 0.0
    %2786 = vmatpush1.msra.mxu0 0.0
    %2787 = vmatprep.subr.mxu0 0.0
    %2788 = vmatpush1.msra.mxu0 0.0
    %2789 = vmatprep.subr.mxu0 0.0
    %2790 = vmatpush1.msra.mxu0 0.0
    %2791 = vmatprep.subr.mxu0 0.0
    %2792 = vmatpush1.msra.mxu0 0.0
    %2793 = vmatprep.subr.mxu0 0.0
    %2794 = vmatpush1.msra.mxu0 0.0
    %2795 = vmatprep.subr.mxu0 0.0
    %2796 = vmatpush1.msra.mxu0 0.0
    %2797 = vmatprep.mubr.f32.mxu0 0.0
    %2798 = vmatmul.mubr.f32.gmra.mrb[0].mxu0 %v2731
    %v2799 = vpop.f32.mrb[0].mxu0
    %v2800 = vadd.f32 0.0, %v2799
    %v2801 = vpop.f32.mrb[0].mxu0
    %2802 = vdwg.mxu0
    %v2803 = vadd.f32 %v2800, %v289
    %v2804 = vxor.u32 %v2803, 2147483648
    %v2805 = vmul.f32 %v2804, 1.442695
    %v2806 = vpow.pop %v2805
    %v2807 = vadd.f32 %v2806, 1.0
    %v2808 = vrcp.pop %v2807
    %v2809 = vmul.f32 1.0, %v2808
    %v2810 = vadd.f32 %v2809, 0.0
    %vm2811 = vcmp.ge.f32.partialorder %v2810, 0.99
    %v2812 = vsel %vm2811, 1.0, %v2809
    %2814 = vset.pattern.permute.xlu0 32
    %2815 = vperm.xlu0 %2814, %v2812
    %v2816 = vpop.permute.xlu0 %2815
    %v2818 = vmul.f32 %v2816, %v2803
    %v2819 = vadd.f32 %v2818, 0.0
    %v2820 = vmul.f32 %v2816, %v2800
    %v2821 = vadd.f32 %v2820, 0.0
    %v2822 = vadd.f32 %v2723, 1.0
    %v2823 = vsel %vm2811, %v2723, %v2822
    %v2824 = vsub.f32 1.0, %v2810
    %v2825 = vsel %vm2811, 0.0, %v2824
    %v2826 = vsel %vm2811, 1.0, %v2824
    %v2827 = vsel %vm2811, 0.0, 2.0
    %v2829 = vrot.slane %v2800, 6
    %v2831 = vadd.f32 %v127, %v2829
    %v2832 = vtanh.pop %v2831
    %v2834 = vrot.slane %v2832, 2
    %v2835 = vsel %vm131, %v2834, 0
    %2837 = vmatprep.subr.mxu0 0.0
    %2838 = vmatpush1.msra.mxu0 %v37
    %2839 = vmatprep.subr.mxu0 0.0
    %2840 = vmatpush1.msra.mxu0 %v38
    %2841 = vmatprep.subr.mxu0 0.0
    %2842 = vmatpush1.msra.mxu0 %v39
    %2843 = vmatprep.subr.mxu0 0.0
    %2844 = vmatpush1.msra.mxu0 %v40
    %2845 = vmatprep.subr.mxu0 0.0
    %2846 = vmatpush1.msra.mxu0 0.0
    %2847 = vmatprep.subr.mxu0 0.0
    %2848 = vmatpush1.msra.mxu0 0.0
    %2849 = vmatprep.subr.mxu0 0.0
    %2850 = vmatpush1.msra.mxu0 0.0
    %2851 = vmatprep.subr.mxu0 0.0
    %2852 = vmatpush1.msra.mxu0 0.0
    %2853 = vmatprep.subr.mxu0 0.0
    %2854 = vmatpush1.msra.mxu0 0.0
    %2855 = vmatprep.subr.mxu0 0.0
    %2856 = vmatpush1.msra.mxu0 0.0
    %2857 = vmatprep.subr.mxu0 0.0
    %2858 = vmatpush1.msra.mxu0 0.0
    %2859 = vmatprep.subr.mxu0 0.0
    %2860 = vmatpush1.msra.mxu0 0.0
    %2861 = vmatprep.subr.mxu0 0.0
    %2862 = vmatpush1.msra.mxu0 0.0
    %2863 = vmatprep.subr.mxu0 0.0
    %2864 = vmatpush1.msra.mxu0 0.0
    %2865 = vmatprep.subr.mxu0 0.0
    %2866 = vmatpush1.msra.mxu0 0.0
    %2867 = vmatprep.subr.mxu0 0.0
    %2868 = vmatpush1.msra.mxu0 0.0
    %2869 = vmatprep.subr.mxu0 0.0
    %2870 = vmatpush1.msra.mxu0 0.0
    %2871 = vmatprep.subr.mxu0 0.0
    %2872 = vmatpush1.msra.mxu0 0.0
    %2873 = vmatprep.subr.mxu0 0.0
    %2874 = vmatpush1.msra.mxu0 0.0
    %2875 = vmatprep.subr.mxu0 0.0
    %2876 = vmatpush1.msra.mxu0 0.0
    %2877 = vmatprep.subr.mxu0 0.0
    %2878 = vmatpush1.msra.mxu0 0.0
    %2879 = vmatprep.subr.mxu0 0.0
    %2880 = vmatpush1.msra.mxu0 0.0
    %2881 = vmatprep.subr.mxu0 0.0
    %2882 = vmatpush1.msra.mxu0 0.0
    %2883 = vmatprep.subr.mxu0 0.0
    %2884 = vmatpush1.msra.mxu0 0.0
    %2885 = vmatprep.subr.mxu0 0.0
    %2886 = vmatpush1.msra.mxu0 0.0
    %2887 = vmatprep.subr.mxu0 0.0
    %2888 = vmatpush1.msra.mxu0 0.0
    %2889 = vmatprep.subr.mxu0 0.0
    %2890 = vmatpush1.msra.mxu0 0.0
    %2891 = vmatprep.subr.mxu0 0.0
    %2892 = vmatpush1.msra.mxu0 0.0
    %2893 = vmatprep.subr.mxu0 0.0
    %2894 = vmatpush1.msra.mxu0 0.0
    %2895 = vmatprep.subr.mxu0 0.0
    %2896 = vmatpush1.msra.mxu0 0.0
    %2897 = vmatprep.subr.mxu0 0.0
    %2898 = vmatpush1.msra.mxu0 0.0
    %2899 = vmatprep.subr.mxu0 0.0
    %2900 = vmatpush1.msra.mxu0 0.0
    %2901 = vmatprep.mubr.f32.mxu0 0.0
    %2902 = vmatmul.mubr.f32.gmra.mrb[0].mxu0 %v2835
    %v2903 = vpop.f32.mrb[0].mxu0
    %v2904 = vadd.f32 0.0, %v2903
    %v2905 = vpop.f32.mrb[0].mxu0
    %2906 = vdwg.mxu0
    %v2907 = vadd.f32 %v2904, %v289
    %v2908 = vxor.u32 %v2907, 2147483648
    %v2909 = vmul.f32 %v2908, 1.442695
    %v2910 = vpow.pop %v2909
    %v2911 = vadd.f32 %v2910, 1.0
    %v2912 = vrcp.pop %v2911
    %v2913 = vmul.f32 1.0, %v2912
    %v2914 = vadd.f32 %v2810, %v2913
    %vm2915 = vcmp.ge.f32.partialorder %v2914, 0.99
    %v2916 = vsel %vm2915, %v2825, %v2913
    %2918 = vset.pattern.permute.xlu0 32
    %2919 = vperm.xlu0 %2918, %v2916
    %v2920 = vpop.permute.xlu0 %2919
    %v2922 = vmul.f32 %v2920, %v2907
    %v2923 = vadd.f32 %v2819, %v2922
    %v2924 = vmul.f32 %v2920, %v2904
    %v2925 = vadd.f32 %v2821, %v2924
    %v2926 = vadd.f32 %v2823, 1.0
    %v2927 = vsel %vm2915, %v2823, %v2926
    %v2928 = vsub.f32 1.0, %v2914
    %v2929 = vsel %vm2915, 0.0, %v2928
    %v2930 = vsel %vm2915, %v2826, %v2928
    %v2931 = vsel %vm2915, %v2827, 3.0
    %v2933 = vrot.slane %v2904, 6
    %v2935 = vadd.f32 %v127, %v2933
    %v2936 = vtanh.pop %v2935
    %v2938 = vrot.slane %v2936, 2
    %v2939 = vsel %vm131, %v2938, 0
    %2941 = vmatprep.subr.mxu0 0.0
    %2942 = vmatpush1.msra.mxu0 %v37
    %2943 = vmatprep.subr.mxu0 0.0
    %2944 = vmatpush1.msra.mxu0 %v38
    %2945 = vmatprep.subr.mxu0 0.0
    %2946 = vmatpush1.msra.mxu0 %v39
    %2947 = vmatprep.subr.mxu0 0.0
    %2948 = vmatpush1.msra.mxu0 %v40
    %2949 = vmatprep.subr.mxu0 0.0
    %2950 = vmatpush1.msra.mxu0 0.0
    %2951 = vmatprep.subr.mxu0 0.0
    %2952 = vmatpush1.msra.mxu0 0.0
    %2953 = vmatprep.subr.mxu0 0.0
    %2954 = vmatpush1.msra.mxu0 0.0
    %2955 = vmatprep.subr.mxu0 0.0
    %2956 = vmatpush1.msra.mxu0 0.0
    %2957 = vmatprep.subr.mxu0 0.0
    %2958 = vmatpush1.msra.mxu0 0.0
    %2959 = vmatprep.subr.mxu0 0.0
    %2960 = vmatpush1.msra.mxu0 0.0
    %2961 = vmatprep.subr.mxu0 0.0
    %2962 = vmatpush1.msra.mxu0 0.0
    %2963 = vmatprep.subr.mxu0 0.0
    %2964 = vmatpush1.msra.mxu0 0.0
    %2965 = vmatprep.subr.mxu0 0.0
    %2966 = vmatpush1.msra.mxu0 0.0
    %2967 = vmatprep.subr.mxu0 0.0
    %2968 = vmatpush1.msra.mxu0 0.0
    %2969 = vmatprep.subr.mxu0 0.0
    %2970 = vmatpush1.msra.mxu0 0.0
    %2971 = vmatprep.subr.mxu0 0.0
    %2972 = vmatpush1.msra.mxu0 0.0
    %2973 = vmatprep.subr.mxu0 0.0
    %2974 = vmatpush1.msra.mxu0 0.0
    %2975 = vmatprep.subr.mxu0 0.0
    %2976 = vmatpush1.msra.mxu0 0.0
    %2977 = vmatprep.subr.mxu0 0.0
    %2978 = vmatpush1.msra.mxu0 0.0
    %2979 = vmatprep.subr.mxu0 0.0
    %2980 = vmatpush1.msra.mxu0 0.0
    %2981 = vmatprep.subr.mxu0 0.0
    %2982 = vmatpush1.msra.mxu0 0.0
    %2983 = vmatprep.subr.mxu0 0.0
    %2984 = vmatpush1.msra.mxu0 0.0
    %2985 = vmatprep.subr.mxu0 0.0
    %2986 = vmatpush1.msra.mxu0 0.0
    %2987 = vmatprep.subr.mxu0 0.0
    %2988 = vmatpush1.msra.mxu0 0.0
    %2989 = vmatprep.subr.mxu0 0.0
    %2990 = vmatpush1.msra.mxu0 0.0
    %2991 = vmatprep.subr.mxu0 0.0
    %2992 = vmatpush1.msra.mxu0 0.0
    %2993 = vmatprep.subr.mxu0 0.0
    %2994 = vmatpush1.msra.mxu0 0.0
    %2995 = vmatprep.subr.mxu0 0.0
    %2996 = vmatpush1.msra.mxu0 0.0
    %2997 = vmatprep.subr.mxu0 0.0
    %2998 = vmatpush1.msra.mxu0 0.0
    %2999 = vmatprep.subr.mxu0 0.0
    %3000 = vmatpush1.msra.mxu0 0.0
    %3001 = vmatprep.subr.mxu0 0.0
    %3002 = vmatpush1.msra.mxu0 0.0
    %3003 = vmatprep.subr.mxu0 0.0
    %3004 = vmatpush1.msra.mxu0 0.0
    %3005 = vmatprep.mubr.f32.mxu0 0.0
    %3006 = vmatmul.mubr.f32.gmra.mrb[0].mxu0 %v2939
    %v3007 = vpop.f32.mrb[0].mxu0
    %v3008 = vadd.f32 0.0, %v3007
    %v3009 = vpop.f32.mrb[0].mxu0
    %3010 = vdwg.mxu0
    %v3011 = vadd.f32 %v3008, %v289
    %v3012 = vxor.u32 %v3011, 2147483648
    %v3013 = vmul.f32 %v3012, 1.442695
    %v3014 = vpow.pop %v3013
    %v3015 = vadd.f32 %v3014, 1.0
    %v3016 = vrcp.pop %v3015
    %v3017 = vmul.f32 1.0, %v3016
    %v3018 = vadd.f32 %v2914, %v3017
    %vm3019 = vcmp.ge.f32.partialorder %v3018, 0.99
    %v3020 = vsel %vm3019, %v2929, %v3017
    %3022 = vset.pattern.permute.xlu0 32
    %3023 = vperm.xlu0 %3022, %v3020
    %v3024 = vpop.permute.xlu0 %3023
    %v3026 = vmul.f32 %v3024, %v3011
    %v3027 = vadd.f32 %v2923, %v3026
    %v3028 = vmul.f32 %v3024, %v3008
    %v3029 = vadd.f32 %v2925, %v3028
    %v3030 = vadd.f32 %v2927, 1.0
    %v3031 = vsel %vm3019, %v2927, %v3030
    %v3032 = vsub.f32 1.0, %v3018
    %v3033 = vsel %vm3019, 0.0, %v3032
    %v3034 = vsel %vm3019, %v2930, %v3032
    %v3035 = vsel %vm3019, %v2931, 4.0
    %v3037 = vrot.slane %v3008, 6
    %v3039 = vadd.f32 %v127, %v3037
    %v3040 = vtanh.pop %v3039
    %v3042 = vrot.slane %v3040, 2
    %v3043 = vsel %vm131, %v3042, 0
    %3045 = vmatprep.subr.mxu0 0.0
    %3046 = vmatpush1.msra.mxu0 %v37
    %3047 = vmatprep.subr.mxu0 0.0
    %3048 = vmatpush1.msra.mxu0 %v38
    %3049 = vmatprep.subr.mxu0 0.0
    %3050 = vmatpush1.msra.mxu0 %v39
    %3051 = vmatprep.subr.mxu0 0.0
    %3052 = vmatpush1.msra.mxu0 %v40
    %3053 = vmatprep.subr.mxu0 0.0
    %3054 = vmatpush1.msra.mxu0 0.0
    %3055 = vmatprep.subr.mxu0 0.0
    %3056 = vmatpush1.msra.mxu0 0.0
    %3057 = vmatprep.subr.mxu0 0.0
    %3058 = vmatpush1.msra.mxu0 0.0
    %3059 = vmatprep.subr.mxu0 0.0
    %3060 = vmatpush1.msra.mxu0 0.0
    %3061 = vmatprep.subr.mxu0 0.0
    %3062 = vmatpush1.msra.mxu0 0.0
    %3063 = vmatprep.subr.mxu0 0.0
    %3064 = vmatpush1.msra.mxu0 0.0
    %3065 = vmatprep.subr.mxu0 0.0
    %3066 = vmatpush1.msra.mxu0 0.0
    %3067 = vmatprep.subr.mxu0 0.0
    %3068 = vmatpush1.msra.mxu0 0.0
    %3069 = vmatprep.subr.mxu0 0.0
    %3070 = vmatpush1.msra.mxu0 0.0
    %3071 = vmatprep.subr.mxu0 0.0
    %3072 = vmatpush1.msra.mxu0 0.0
    %3073 = vmatprep.subr.mxu0 0.0
    %3074 = vmatpush1.msra.mxu0 0.0
    %3075 = vmatprep.subr.mxu0 0.0
    %3076 = vmatpush1.msra.mxu0 0.0
    %3077 = vmatprep.subr.mxu0 0.0
    %3078 = vmatpush1.msra.mxu0 0.0
    %3079 = vmatprep.subr.mxu0 0.0
    %3080 = vmatpush1.msra.mxu0 0.0
    %3081 = vmatprep.subr.mxu0 0.0
    %3082 = vmatpush1.msra.mxu0 0.0
    %3083 = vmatprep.subr.mxu0 0.0
    %3084 = vmatpush1.msra.mxu0 0.0
    %3085 = vmatprep.subr.mxu0 0.0
    %3086 = vmatpush1.msra.mxu0 0.0
    %3087 = vmatprep.subr.mxu0 0.0
    %3088 = vmatpush1.msra.mxu0 0.0
    %3089 = vmatprep.subr.mxu0 0.0
    %3090 = vmatpush1.msra.mxu0 0.0
    %3091 = vmatprep.subr.mxu0 0.0
    %3092 = vmatpush1.msra.mxu0 0.0
    %3093 = vmatprep.subr.mxu0 0.0
    %3094 = vmatpush1.msra.mxu0 0.0
    %3095 = vmatprep.subr.mxu0 0.0
    %3096 = vmatpush1.msra.mxu0 0.0
    %3097 = vmatprep.subr.mxu0 0.0
    %3098 = vmatpush1.msra.mxu0 0.0
    %3099 = vmatprep.subr.mxu0 0.0
    %3100 = vmatpush1.msra.mxu0 0.0
    %3101 = vmatprep.subr.mxu0 0.0
    %3102 = vmatpush1.msra.mxu0 0.0
    %3103 = vmatprep.subr.mxu0 0.0
    %3104 = vmatpush1.msra.mxu0 0.0
    %3105 = vmatprep.subr.mxu0 0.0
    %3106 = vmatpush1.msra.mxu0 0.0
    %3107 = vmatprep.subr.mxu0 0.0
    %3108 = vmatpush1.msra.mxu0 0.0
    %3109 = vmatprep.mubr.f32.mxu0 0.0
    %3110 = vmatmul.mubr.f32.gmra.mrb[0].mxu0 %v3043
    %v3111 = vpop.f32.mrb[0].mxu0
    %v3112 = vadd.f32 0.0, %v3111
    %v3113 = vpop.f32.mrb[0].mxu0
    %3114 = vdwg.mxu0
    %v3115 = vadd.f32 %v3112, %v289
    %v3116 = vxor.u32 %v3115, 2147483648
    %v3117 = vmul.f32 %v3116, 1.442695
    %v3118 = vpow.pop %v3117
    %v3119 = vadd.f32 %v3118, 1.0
    %v3120 = vrcp.pop %v3119
    %v3121 = vmul.f32 1.0, %v3120
    %v3122 = vadd.f32 %v3018, %v3121
    %vm3123 = vcmp.ge.f32.partialorder %v3122, 0.99
    %v3124 = vsel %vm3123, %v3033, %v3121
    %3126 = vset.pattern.permute.xlu0 32
    %3127 = vperm.xlu0 %3126, %v3124
    %v3128 = vpop.permute.xlu0 %3127
    %v3130 = vmul.f32 %v3128, %v3115
    %v3131 = vadd.f32 %v3027, %v3130
    %v3132 = vmul.f32 %v3128, %v3112
    %v3133 = vadd.f32 %v3029, %v3132
    %v3134 = vadd.f32 %v3031, 1.0
    %v3135 = vsel %vm3123, %v3031, %v3134
    %v3136 = vsub.f32 1.0, %v3122
    %v3137 = vsel %vm3123, 0.0, %v3136
    %v3138 = vsel %vm3123, %v3034, %v3136
    %v3139 = vsel %vm3123, %v3035, 5.0
    %v3141 = vrot.slane %v3112, 6
    %v3143 = vadd.f32 %v127, %v3141
    %v3144 = vtanh.pop %v3143
    %v3146 = vrot.slane %v3144, 2
    %v3147 = vsel %vm131, %v3146, 0
    %3149 = vmatprep.subr.mxu0 0.0
    %3150 = vmatpush1.msra.mxu0 %v37
    %3151 = vmatprep.subr.mxu0 0.0
    %3152 = vmatpush1.msra.mxu0 %v38
    %3153 = vmatprep.subr.mxu0 0.0
    %3154 = vmatpush1.msra.mxu0 %v39
    %3155 = vmatprep.subr.mxu0 0.0
    %3156 = vmatpush1.msra.mxu0 %v40
    %3157 = vmatprep.subr.mxu0 0.0
    %3158 = vmatpush1.msra.mxu0 0.0
    %3159 = vmatprep.subr.mxu0 0.0
    %3160 = vmatpush1.msra.mxu0 0.0
    %3161 = vmatprep.subr.mxu0 0.0
    %3162 = vmatpush1.msra.mxu0 0.0
    %3163 = vmatprep.subr.mxu0 0.0
    %3164 = vmatpush1.msra.mxu0 0.0
    %3165 = vmatprep.subr.mxu0 0.0
    %3166 = vmatpush1.msra.mxu0 0.0
    %3167 = vmatprep.subr.mxu0 0.0
    %3168 = vmatpush1.msra.mxu0 0.0
    %3169 = vmatprep.subr.mxu0 0.0
    %3170 = vmatpush1.msra.mxu0 0.0
    %3171 = vmatprep.subr.mxu0 0.0
    %3172 = vmatpush1.msra.mxu0 0.0
    %3173 = vmatprep.subr.mxu0 0.0
    %3174 = vmatpush1.msra.mxu0 0.0
    %3175 = vmatprep.subr.mxu0 0.0
    %3176 = vmatpush1.msra.mxu0 0.0
    %3177 = vmatprep.subr.mxu0 0.0
    %3178 = vmatpush1.msra.mxu0 0.0
    %3179 = vmatprep.subr.mxu0 0.0
    %3180 = vmatpush1.msra.mxu0 0.0
    %3181 = vmatprep.subr.mxu0 0.0
    %3182 = vmatpush1.msra.mxu0 0.0
    %3183 = vmatprep.subr.mxu0 0.0
    %3184 = vmatpush1.msra.mxu0 0.0
    %3185 = vmatprep.subr.mxu0 0.0
    %3186 = vmatpush1.msra.mxu0 0.0
    %3187 = vmatprep.subr.mxu0 0.0
    %3188 = vmatpush1.msra.mxu0 0.0
    %3189 = vmatprep.subr.mxu0 0.0
    %3190 = vmatpush1.msra.mxu0 0.0
    %3191 = vmatprep.subr.mxu0 0.0
    %3192 = vmatpush1.msra.mxu0 0.0
    %3193 = vmatprep.subr.mxu0 0.0
    %3194 = vmatpush1.msra.mxu0 0.0
    %3195 = vmatprep.subr.mxu0 0.0
    %3196 = vmatpush1.msra.mxu0 0.0
    %3197 = vmatprep.subr.mxu0 0.0
    %3198 = vmatpush1.msra.mxu0 0.0
    %3199 = vmatprep.subr.mxu0 0.0
    %3200 = vmatpush1.msra.mxu0 0.0
    %3201 = vmatprep.subr.mxu0 0.0
    %3202 = vmatpush1.msra.mxu0 0.0
    %3203 = vmatprep.subr.mxu0 0.0
    %3204 = vmatpush1.msra.mxu0 0.0
    %3205 = vmatprep.subr.mxu0 0.0
    %3206 = vmatpush1.msra.mxu0 0.0
    %3207 = vmatprep.subr.mxu0 0.0
    %3208 = vmatpush1.msra.mxu0 0.0
    %3209 = vmatprep.subr.mxu0 0.0
    %3210 = vmatpush1.msra.mxu0 0.0
    %3211 = vmatprep.subr.mxu0 0.0
    %3212 = vmatpush1.msra.mxu0 0.0
    %3213 = vmatprep.mubr.f32.mxu0 0.0
    %3214 = vmatmul.mubr.f32.gmra.mrb[0].mxu0 %v3147
    %v3215 = vpop.f32.mrb[0].mxu0
    %v3216 = vadd.f32 0.0, %v3215
    %v3217 = vpop.f32.mrb[0].mxu0
    %3218 = vdwg.mxu0
    %v3219 = vadd.f32 %v3216, %v289
    %3221 = vset.pattern.permute.xlu0 32
    %3222 = vperm.xlu0 %3221, %v3137
    %v3223 = vpop.permute.xlu0 %3222
    %v3225 = vmul.f32 %v3223, %v3219
    %v3226 = vadd.f32 %v3131, %v3225
    %v3227 = vmul.f32 %v3223, %v3216
    %v3228 = vadd.f32 %v3133, %v3227
    %v3229 = vadd.f32 %v2722, %v3138
    %v3230 = vadd.f32 %v3229, %v3139
    %v3231 = vadd.f32 %v3135, 1.0
    %v3233 = vrot.slane %v3228, 4
    %v3235 = vadd.f32 %v2234, %v3233
    %v3236 = vtanh.pop %v3235
    %v3238 = vrot.slane %v3236, 4
    %v3239 = vsel %vm131, %v3238, 0
    %3241 = vmatprep.subr.mxu0 0.0
    %3242 = vmatpush1.msra.mxu0 %v37
    %3243 = vmatprep.subr.mxu0 0.0
    %3244 = vmatpush1.msra.mxu0 %v38
    %3245 = vmatprep.subr.mxu0 0.0
    %3246 = vmatpush1.msra.mxu0 %v39
    %3247 = vmatprep.subr.mxu0 0.0
    %3248 = vmatpush1.msra.mxu0 %v40
    %3249 = vmatprep.subr.mxu0 0.0
    %3250 = vmatpush1.msra.mxu0 0.0
    %3251 = vmatprep.subr.mxu0 0.0
    %3252 = vmatpush1.msra.mxu0 0.0
    %3253 = vmatprep.subr.mxu0 0.0
    %3254 = vmatpush1.msra.mxu0 0.0
    %3255 = vmatprep.subr.mxu0 0.0
    %3256 = vmatpush1.msra.mxu0 0.0
    %3257 = vmatprep.subr.mxu0 0.0
    %3258 = vmatpush1.msra.mxu0 0.0
    %3259 = vmatprep.subr.mxu0 0.0
    %3260 = vmatpush1.msra.mxu0 0.0
    %3261 = vmatprep.subr.mxu0 0.0
    %3262 = vmatpush1.msra.mxu0 0.0
    %3263 = vmatprep.subr.mxu0 0.0
    %3264 = vmatpush1.msra.mxu0 0.0
    %3265 = vmatprep.subr.mxu0 0.0
    %3266 = vmatpush1.msra.mxu0 0.0
    %3267 = vmatprep.subr.mxu0 0.0
    %3268 = vmatpush1.msra.mxu0 0.0
    %3269 = vmatprep.subr.mxu0 0.0
    %3270 = vmatpush1.msra.mxu0 0.0
    %3271 = vmatprep.subr.mxu0 0.0
    %3272 = vmatpush1.msra.mxu0 0.0
    %3273 = vmatprep.subr.mxu0 0.0
    %3274 = vmatpush1.msra.mxu0 0.0
    %3275 = vmatprep.subr.mxu0 0.0
    %3276 = vmatpush1.msra.mxu0 0.0
    %3277 = vmatprep.subr.mxu0 0.0
    %3278 = vmatpush1.msra.mxu0 0.0
    %3279 = vmatprep.subr.mxu0 0.0
    %3280 = vmatpush1.msra.mxu0 0.0
    %3281 = vmatprep.subr.mxu0 0.0
    %3282 = vmatpush1.msra.mxu0 0.0
    %3283 = vmatprep.subr.mxu0 0.0
    %3284 = vmatpush1.msra.mxu0 0.0
    %3285 = vmatprep.subr.mxu0 0.0
    %3286 = vmatpush1.msra.mxu0 0.0
    %3287 = vmatprep.subr.mxu0 0.0
    %3288 = vmatpush1.msra.mxu0 0.0
    %3289 = vmatprep.subr.mxu0 0.0
    %3290 = vmatpush1.msra.mxu0 0.0
    %3291 = vmatprep.subr.mxu0 0.0
    %3292 = vmatpush1.msra.mxu0 0.0
    %3293 = vmatprep.subr.mxu0 0.0
    %3294 = vmatpush1.msra.mxu0 0.0
    %3295 = vmatprep.subr.mxu0 0.0
    %3296 = vmatpush1.msra.mxu0 0.0
    %3297 = vmatprep.subr.mxu0 0.0
    %3298 = vmatpush1.msra.mxu0 0.0
    %3299 = vmatprep.subr.mxu0 0.0
    %3300 = vmatpush1.msra.mxu0 0.0
    %3301 = vmatprep.subr.mxu0 0.0
    %3302 = vmatpush1.msra.mxu0 0.0
    %3303 = vmatprep.subr.mxu0 0.0
    %3304 = vmatpush1.msra.mxu0 0.0
    %3305 = vmatprep.mubr.f32.mxu0 0.0
    %3306 = vmatmul.mubr.f32.gmra.mrb[0].mxu0 %v3239
    %v3307 = vpop.f32.mrb[0].mxu0
    %v3308 = vadd.f32 0.0, %v3307
    %v3309 = vpop.f32.mrb[0].mxu0
    %3310 = vdwg.mxu0
    %v3311 = vadd.f32 %v3308, %v289
    %v3312 = vxor.u32 %v3311, 2147483648
    %v3313 = vmul.f32 %v3312, 1.442695
    %v3314 = vpow.pop %v3313
    %v3315 = vadd.f32 %v3314, 1.0
    %v3316 = vrcp.pop %v3315
    %v3317 = vmul.f32 1.0, %v3316
    %v3318 = vadd.f32 %v3317, 0.0
    %vm3319 = vcmp.ge.f32.partialorder %v3318, 0.99
    %v3320 = vsel %vm3319, 1.0, %v3317
    %3322 = vset.pattern.permute.xlu0 32
    %3323 = vperm.xlu0 %3322, %v3320
    %v3324 = vpop.permute.xlu0 %3323
    %v3326 = vmul.f32 %v3324, %v3311
    %v3327 = vadd.f32 %v3326, 0.0
    %v3328 = vmul.f32 %v3324, %v3308
    %v3329 = vadd.f32 %v3328, 0.0
    %v3330 = vadd.f32 %v3231, 1.0
    %v3331 = vsel %vm3319, %v3231, %v3330
    %v3332 = vsub.f32 1.0, %v3318
    %v3333 = vsel %vm3319, 0.0, %v3332
    %v3334 = vsel %vm3319, 1.0, %v3332
    %v3335 = vsel %vm3319, 0.0, 2.0
    %v3337 = vrot.slane %v3308, 4
    %v3339 = vadd.f32 %v127, %v3337
    %v3340 = vtanh.pop %v3339
    %v3342 = vrot.slane %v3340, 4
    %v3343 = vsel %vm131, %v3342, 0
    %3345 = vmatprep.subr.mxu0 0.0
    %3346 = vmatpush1.msra.mxu0 %v37
    %3347 = vmatprep.subr.mxu0 0.0
    %3348 = vmatpush1.msra.mxu0 %v38
    %3349 = vmatprep.subr.mxu0 0.0
    %3350 = vmatpush1.msra.mxu0 %v39
    %3351 = vmatprep.subr.mxu0 0.0
    %3352 = vmatpush1.msra.mxu0 %v40
    %3353 = vmatprep.subr.mxu0 0.0
    %3354 = vmatpush1.msra.mxu0 0.0
    %3355 = vmatprep.subr.mxu0 0.0
    %3356 = vmatpush1.msra.mxu0 0.0
    %3357 = vmatprep.subr.mxu0 0.0
    %3358 = vmatpush1.msra.mxu0 0.0
    %3359 = vmatprep.subr.mxu0 0.0
    %3360 = vmatpush1.msra.mxu0 0.0
    %3361 = vmatprep.subr.mxu0 0.0
    %3362 = vmatpush1.msra.mxu0 0.0
    %3363 = vmatprep.subr.mxu0 0.0
    %3364 = vmatpush1.msra.mxu0 0.0
    %3365 = vmatprep.subr.mxu0 0.0
    %3366 = vmatpush1.msra.mxu0 0.0
    %3367 = vmatprep.subr.mxu0 0.0
    %3368 = vmatpush1.msra.mxu0 0.0
    %3369 = vmatprep.subr.mxu0 0.0
    %3370 = vmatpush1.msra.mxu0 0.0
    %3371 = vmatprep.subr.mxu0 0.0
    %3372 = vmatpush1.msra.mxu0 0.0
    %3373 = vmatprep.subr.mxu0 0.0
    %3374 = vmatpush1.msra.mxu0 0.0
    %3375 = vmatprep.subr.mxu0 0.0
    %3376 = vmatpush1.msra.mxu0 0.0
    %3377 = vmatprep.subr.mxu0 0.0
    %3378 = vmatpush1.msra.mxu0 0.0
    %3379 = vmatprep.subr.mxu0 0.0
    %3380 = vmatpush1.msra.mxu0 0.0
    %3381 = vmatprep.subr.mxu0 0.0
    %3382 = vmatpush1.msra.mxu0 0.0
    %3383 = vmatprep.subr.mxu0 0.0
    %3384 = vmatpush1.msra.mxu0 0.0
    %3385 = vmatprep.subr.mxu0 0.0
    %3386 = vmatpush1.msra.mxu0 0.0
    %3387 = vmatprep.subr.mxu0 0.0
    %3388 = vmatpush1.msra.mxu0 0.0
    %3389 = vmatprep.subr.mxu0 0.0
    %3390 = vmatpush1.msra.mxu0 0.0
    %3391 = vmatprep.subr.mxu0 0.0
    %3392 = vmatpush1.msra.mxu0 0.0
    %3393 = vmatprep.subr.mxu0 0.0
    %3394 = vmatpush1.msra.mxu0 0.0
    %3395 = vmatprep.subr.mxu0 0.0
    %3396 = vmatpush1.msra.mxu0 0.0
    %3397 = vmatprep.subr.mxu0 0.0
    %3398 = vmatpush1.msra.mxu0 0.0
    %3399 = vmatprep.subr.mxu0 0.0
    %3400 = vmatpush1.msra.mxu0 0.0
    %3401 = vmatprep.subr.mxu0 0.0
    %3402 = vmatpush1.msra.mxu0 0.0
    %3403 = vmatprep.subr.mxu0 0.0
    %3404 = vmatpush1.msra.mxu0 0.0
    %3405 = vmatprep.subr.mxu0 0.0
    %3406 = vmatpush1.msra.mxu0 0.0
    %3407 = vmatprep.subr.mxu0 0.0
    %3408 = vmatpush1.msra.mxu0 0.0
    %3409 = vmatprep.mubr.f32.mxu0 0.0
    %3410 = vmatmul.mubr.f32.gmra.mrb[0].mxu0 %v3343
    %v3411 = vpop.f32.mrb[0].mxu0
    %v3412 = vadd.f32 0.0, %v3411
    %v3413 = vpop.f32.mrb[0].mxu0
    %3414 = vdwg.mxu0
    %v3415 = vadd.f32 %v3412, %v289
    %v3416 = vxor.u32 %v3415, 2147483648
    %v3417 = vmul.f32 %v3416, 1.442695
    %v3418 = vpow.pop %v3417
    %v3419 = vadd.f32 %v3418, 1.0
    %v3420 = vrcp.pop %v3419
    %v3421 = vmul.f32 1.0, %v3420
    %v3422 = vadd.f32 %v3318, %v3421
    %vm3423 = vcmp.ge.f32.partialorder %v3422, 0.99
    %v3424 = vsel %vm3423, %v3333, %v3421
    %3426 = vset.pattern.permute.xlu0 32
    %3427 = vperm.xlu0 %3426, %v3424
    %v3428 = vpop.permute.xlu0 %3427
    %v3430 = vmul.f32 %v3428, %v3415
    %v3431 = vadd.f32 %v3327, %v3430
    %v3432 = vmul.f32 %v3428, %v3412
    %v3433 = vadd.f32 %v3329, %v3432
    %v3434 = vadd.f32 %v3331, 1.0
    %v3435 = vsel %vm3423, %v3331, %v3434
    %v3436 = vsub.f32 1.0, %v3422
    %v3437 = vsel %vm3423, 0.0, %v3436
    %v3438 = vsel %vm3423, %v3334, %v3436
    %v3439 = vsel %vm3423, %v3335, 3.0
    %v3441 = vrot.slane %v3412, 4
    %v3443 = vadd.f32 %v127, %v3441
    %v3444 = vtanh.pop %v3443
    %v3446 = vrot.slane %v3444, 4
    %v3447 = vsel %vm131, %v3446, 0
    %3449 = vmatprep.subr.mxu0 0.0
    %3450 = vmatpush1.msra.mxu0 %v37
    %3451 = vmatprep.subr.mxu0 0.0
    %3452 = vmatpush1.msra.mxu0 %v38
    %3453 = vmatprep.subr.mxu0 0.0
    %3454 = vmatpush1.msra.mxu0 %v39
    %3455 = vmatprep.subr.mxu0 0.0
    %3456 = vmatpush1.msra.mxu0 %v40
    %3457 = vmatprep.subr.mxu0 0.0
    %3458 = vmatpush1.msra.mxu0 0.0
    %3459 = vmatprep.subr.mxu0 0.0
    %3460 = vmatpush1.msra.mxu0 0.0
    %3461 = vmatprep.subr.mxu0 0.0
    %3462 = vmatpush1.msra.mxu0 0.0
    %3463 = vmatprep.subr.mxu0 0.0
    %3464 = vmatpush1.msra.mxu0 0.0
    %3465 = vmatprep.subr.mxu0 0.0
    %3466 = vmatpush1.msra.mxu0 0.0
    %3467 = vmatprep.subr.mxu0 0.0
    %3468 = vmatpush1.msra.mxu0 0.0
    %3469 = vmatprep.subr.mxu0 0.0
    %3470 = vmatpush1.msra.mxu0 0.0
    %3471 = vmatprep.subr.mxu0 0.0
    %3472 = vmatpush1.msra.mxu0 0.0
    %3473 = vmatprep.subr.mxu0 0.0
    %3474 = vmatpush1.msra.mxu0 0.0
    %3475 = vmatprep.subr.mxu0 0.0
    %3476 = vmatpush1.msra.mxu0 0.0
    %3477 = vmatprep.subr.mxu0 0.0
    %3478 = vmatpush1.msra.mxu0 0.0
    %3479 = vmatprep.subr.mxu0 0.0
    %3480 = vmatpush1.msra.mxu0 0.0
    %3481 = vmatprep.subr.mxu0 0.0
    %3482 = vmatpush1.msra.mxu0 0.0
    %3483 = vmatprep.subr.mxu0 0.0
    %3484 = vmatpush1.msra.mxu0 0.0
    %3485 = vmatprep.subr.mxu0 0.0
    %3486 = vmatpush1.msra.mxu0 0.0
    %3487 = vmatprep.subr.mxu0 0.0
    %3488 = vmatpush1.msra.mxu0 0.0
    %3489 = vmatprep.subr.mxu0 0.0
    %3490 = vmatpush1.msra.mxu0 0.0
    %3491 = vmatprep.subr.mxu0 0.0
    %3492 = vmatpush1.msra.mxu0 0.0
    %3493 = vmatprep.subr.mxu0 0.0
    %3494 = vmatpush1.msra.mxu0 0.0
    %3495 = vmatprep.subr.mxu0 0.0
    %3496 = vmatpush1.msra.mxu0 0.0
    %3497 = vmatprep.subr.mxu0 0.0
    %3498 = vmatpush1.msra.mxu0 0.0
    %3499 = vmatprep.subr.mxu0 0.0
    %3500 = vmatpush1.msra.mxu0 0.0
    %3501 = vmatprep.subr.mxu0 0.0
    %3502 = vmatpush1.msra.mxu0 0.0
    %3503 = vmatprep.subr.mxu0 0.0
    %3504 = vmatpush1.msra.mxu0 0.0
    %3505 = vmatprep.subr.mxu0 0.0
    %3506 = vmatpush1.msra.mxu0 0.0
    %3507 = vmatprep.subr.mxu0 0.0
    %3508 = vmatpush1.msra.mxu0 0.0
    %3509 = vmatprep.subr.mxu0 0.0
    %3510 = vmatpush1.msra.mxu0 0.0
    %3511 = vmatprep.subr.mxu0 0.0
    %3512 = vmatpush1.msra.mxu0 0.0
    %3513 = vmatprep.mubr.f32.mxu0 0.0
    %3514 = vmatmul.mubr.f32.gmra.mrb[0].mxu0 %v3447
    %v3515 = vpop.f32.mrb[0].mxu0
    %v3516 = vadd.f32 0.0, %v3515
    %v3517 = vpop.f32.mrb[0].mxu0
    %3518 = vdwg.mxu0
    %v3519 = vadd.f32 %v3516, %v289
    %v3520 = vxor.u32 %v3519, 2147483648
    %v3521 = vmul.f32 %v3520, 1.442695
    %v3522 = vpow.pop %v3521
    %v3523 = vadd.f32 %v3522, 1.0
    %v3524 = vrcp.pop %v3523
    %v3525 = vmul.f32 1.0, %v3524
    %v3526 = vadd.f32 %v3422, %v3525
    %vm3527 = vcmp.ge.f32.partialorder %v3526, 0.99
    %v3528 = vsel %vm3527, %v3437, %v3525
    %3530 = vset.pattern.permute.xlu0 32
    %3531 = vperm.xlu0 %3530, %v3528
    %v3532 = vpop.permute.xlu0 %3531
    %v3534 = vmul.f32 %v3532, %v3519
    %v3535 = vadd.f32 %v3431, %v3534
    %v3536 = vmul.f32 %v3532, %v3516
    %v3537 = vadd.f32 %v3433, %v3536
    %v3538 = vadd.f32 %v3435, 1.0
    %v3539 = vsel %vm3527, %v3435, %v3538
    %v3540 = vsub.f32 1.0, %v3526
    %v3541 = vsel %vm3527, 0.0, %v3540
    %v3542 = vsel %vm3527, %v3438, %v3540
    %v3543 = vsel %vm3527, %v3439, 4.0
    %v3545 = vrot.slane %v3516, 4
    %v3547 = vadd.f32 %v127, %v3545
    %v3548 = vtanh.pop %v3547
    %v3550 = vrot.slane %v3548, 4
    %v3551 = vsel %vm131, %v3550, 0
    %3553 = vmatprep.subr.mxu0 0.0
    %3554 = vmatpush1.msra.mxu0 %v37
    %3555 = vmatprep.subr.mxu0 0.0
    %3556 = vmatpush1.msra.mxu0 %v38
    %3557 = vmatprep.subr.mxu0 0.0
    %3558 = vmatpush1.msra.mxu0 %v39
    %3559 = vmatprep.subr.mxu0 0.0
    %3560 = vmatpush1.msra.mxu0 %v40
    %3561 = vmatprep.subr.mxu0 0.0
    %3562 = vmatpush1.msra.mxu0 0.0
    %3563 = vmatprep.subr.mxu0 0.0
    %3564 = vmatpush1.msra.mxu0 0.0
    %3565 = vmatprep.subr.mxu0 0.0
    %3566 = vmatpush1.msra.mxu0 0.0
    %3567 = vmatprep.subr.mxu0 0.0
    %3568 = vmatpush1.msra.mxu0 0.0
    %3569 = vmatprep.subr.mxu0 0.0
    %3570 = vmatpush1.msra.mxu0 0.0
    %3571 = vmatprep.subr.mxu0 0.0
    %3572 = vmatpush1.msra.mxu0 0.0
    %3573 = vmatprep.subr.mxu0 0.0
    %3574 = vmatpush1.msra.mxu0 0.0
    %3575 = vmatprep.subr.mxu0 0.0
    %3576 = vmatpush1.msra.mxu0 0.0
    %3577 = vmatprep.subr.mxu0 0.0
    %3578 = vmatpush1.msra.mxu0 0.0
    %3579 = vmatprep.subr.mxu0 0.0
    %3580 = vmatpush1.msra.mxu0 0.0
    %3581 = vmatprep.subr.mxu0 0.0
    %3582 = vmatpush1.msra.mxu0 0.0
    %3583 = vmatprep.subr.mxu0 0.0
    %3584 = vmatpush1.msra.mxu0 0.0
    %3585 = vmatprep.subr.mxu0 0.0
    %3586 = vmatpush1.msra.mxu0 0.0
    %3587 = vmatprep.subr.mxu0 0.0
    %3588 = vmatpush1.msra.mxu0 0.0
    %3589 = vmatprep.subr.mxu0 0.0
    %3590 = vmatpush1.msra.mxu0 0.0
    %3591 = vmatprep.subr.mxu0 0.0
    %3592 = vmatpush1.msra.mxu0 0.0
    %3593 = vmatprep.subr.mxu0 0.0
    %3594 = vmatpush1.msra.mxu0 0.0
    %3595 = vmatprep.subr.mxu0 0.0
    %3596 = vmatpush1.msra.mxu0 0.0
    %3597 = vmatprep.subr.mxu0 0.0
    %3598 = vmatpush1.msra.mxu0 0.0
    %3599 = vmatprep.subr.mxu0 0.0
    %3600 = vmatpush1.msra.mxu0 0.0
    %3601 = vmatprep.subr.mxu0 0.0
    %3602 = vmatpush1.msra.mxu0 0.0
    %3603 = vmatprep.subr.mxu0 0.0
    %3604 = vmatpush1.msra.mxu0 0.0
    %3605 = vmatprep.subr.mxu0 0.0
    %3606 = vmatpush1.msra.mxu0 0.0
    %3607 = vmatprep.subr.mxu0 0.0
    %3608 = vmatpush1.msra.mxu0 0.0
    %3609 = vmatprep.subr.mxu0 0.0
    %3610 = vmatpush1.msra.mxu0 0.0
    %3611 = vmatprep.subr.mxu0 0.0
    %3612 = vmatpush1.msra.mxu0 0.0
    %3613 = vmatprep.subr.mxu0 0.0
    %3614 = vmatpush1.msra.mxu0 0.0
    %3615 = vmatprep.subr.mxu0 0.0
    %3616 = vmatpush1.msra.mxu0 0.0
    %3617 = vmatprep.mubr.f32.mxu0 0.0
    %3618 = vmatmul.mubr.f32.gmra.mrb[0].mxu0 %v3551
    %v3619 = vpop.f32.mrb[0].mxu0
    %v3620 = vadd.f32 0.0, %v3619
    %v3621 = vpop.f32.mrb[0].mxu0
    %3622 = vdwg.mxu0
    %v3623 = vadd.f32 %v3620, %v289
    %v3624 = vxor.u32 %v3623, 2147483648
    %v3625 = vmul.f32 %v3624, 1.442695
    %v3626 = vpow.pop %v3625
    %v3627 = vadd.f32 %v3626, 1.0
    %v3628 = vrcp.pop %v3627
    %v3629 = vmul.f32 1.0, %v3628
    %v3630 = vadd.f32 %v3526, %v3629
    %vm3631 = vcmp.ge.f32.partialorder %v3630, 0.99
    %v3632 = vsel %vm3631, %v3541, %v3629
    %3634 = vset.pattern.permute.xlu0 32
    %3635 = vperm.xlu0 %3634, %v3632
    %v3636 = vpop.permute.xlu0 %3635
    %v3638 = vmul.f32 %v3636, %v3623
    %v3639 = vadd.f32 %v3535, %v3638
    %v3640 = vmul.f32 %v3636, %v3620
    %v3641 = vadd.f32 %v3537, %v3640
    %v3642 = vadd.f32 %v3539, 1.0
    %v3643 = vsel %vm3631, %v3539, %v3642
    %v3644 = vsub.f32 1.0, %v3630
    %v3645 = vsel %vm3631, 0.0, %v3644
    %v3646 = vsel %vm3631, %v3542, %v3644
    %v3647 = vsel %vm3631, %v3543, 5.0
    %v3649 = vrot.slane %v3620, 4
    %v3651 = vadd.f32 %v127, %v3649
    %v3652 = vtanh.pop %v3651
    %v3654 = vrot.slane %v3652, 4
    %v3655 = vsel %vm131, %v3654, 0
    %3657 = vmatprep.subr.mxu0 0.0
    %3658 = vmatpush1.msra.mxu0 %v37
    %3659 = vmatprep.subr.mxu0 0.0
    %3660 = vmatpush1.msra.mxu0 %v38
    %3661 = vmatprep.subr.mxu0 0.0
    %3662 = vmatpush1.msra.mxu0 %v39
    %3663 = vmatprep.subr.mxu0 0.0
    %3664 = vmatpush1.msra.mxu0 %v40
    %3665 = vmatprep.subr.mxu0 0.0
    %3666 = vmatpush1.msra.mxu0 0.0
    %3667 = vmatprep.subr.mxu0 0.0
    %3668 = vmatpush1.msra.mxu0 0.0
    %3669 = vmatprep.subr.mxu0 0.0
    %3670 = vmatpush1.msra.mxu0 0.0
    %3671 = vmatprep.subr.mxu0 0.0
    %3672 = vmatpush1.msra.mxu0 0.0
    %3673 = vmatprep.subr.mxu0 0.0
    %3674 = vmatpush1.msra.mxu0 0.0
    %3675 = vmatprep.subr.mxu0 0.0
    %3676 = vmatpush1.msra.mxu0 0.0
    %3677 = vmatprep.subr.mxu0 0.0
    %3678 = vmatpush1.msra.mxu0 0.0
    %3679 = vmatprep.subr.mxu0 0.0
    %3680 = vmatpush1.msra.mxu0 0.0
    %3681 = vmatprep.subr.mxu0 0.0
    %3682 = vmatpush1.msra.mxu0 0.0
    %3683 = vmatprep.subr.mxu0 0.0
    %3684 = vmatpush1.msra.mxu0 0.0
    %3685 = vmatprep.subr.mxu0 0.0
    %3686 = vmatpush1.msra.mxu0 0.0
    %3687 = vmatprep.subr.mxu0 0.0
    %3688 = vmatpush1.msra.mxu0 0.0
    %3689 = vmatprep.subr.mxu0 0.0
    %3690 = vmatpush1.msra.mxu0 0.0
    %3691 = vmatprep.subr.mxu0 0.0
    %3692 = vmatpush1.msra.mxu0 0.0
    %3693 = vmatprep.subr.mxu0 0.0
    %3694 = vmatpush1.msra.mxu0 0.0
    %3695 = vmatprep.subr.mxu0 0.0
    %3696 = vmatpush1.msra.mxu0 0.0
    %3697 = vmatprep.subr.mxu0 0.0
    %3698 = vmatpush1.msra.mxu0 0.0
    %3699 = vmatprep.subr.mxu0 0.0
    %3700 = vmatpush1.msra.mxu0 0.0
    %3701 = vmatprep.subr.mxu0 0.0
    %3702 = vmatpush1.msra.mxu0 0.0
    %3703 = vmatprep.subr.mxu0 0.0
    %3704 = vmatpush1.msra.mxu0 0.0
    %3705 = vmatprep.subr.mxu0 0.0
    %3706 = vmatpush1.msra.mxu0 0.0
    %3707 = vmatprep.subr.mxu0 0.0
    %3708 = vmatpush1.msra.mxu0 0.0
    %3709 = vmatprep.subr.mxu0 0.0
    %3710 = vmatpush1.msra.mxu0 0.0
    %3711 = vmatprep.subr.mxu0 0.0
    %3712 = vmatpush1.msra.mxu0 0.0
    %3713 = vmatprep.subr.mxu0 0.0
    %3714 = vmatpush1.msra.mxu0 0.0
    %3715 = vmatprep.subr.mxu0 0.0
    %3716 = vmatpush1.msra.mxu0 0.0
    %3717 = vmatprep.subr.mxu0 0.0
    %3718 = vmatpush1.msra.mxu0 0.0
    %3719 = vmatprep.subr.mxu0 0.0
    %3720 = vmatpush1.msra.mxu0 0.0
    %3721 = vmatprep.mubr.f32.mxu0 0.0
    %3722 = vmatmul.mubr.f32.gmra.mrb[0].mxu0 %v3655
    %v3723 = vpop.f32.mrb[0].mxu0
    %v3724 = vadd.f32 0.0, %v3723
    %v3725 = vpop.f32.mrb[0].mxu0
    %3726 = vdwg.mxu0
    %v3727 = vadd.f32 %v3724, %v289
    %3729 = vset.pattern.permute.xlu0 32
    %3730 = vperm.xlu0 %3729, %v3645
    %v3731 = vpop.permute.xlu0 %3730
    %v3733 = vmul.f32 %v3731, %v3727
    %v3734 = vadd.f32 %v3639, %v3733
    %v3735 = vmul.f32 %v3731, %v3724
    %v3736 = vadd.f32 %v3641, %v3735
    %v3737 = vadd.f32 %v3230, %v3646
    %v3738 = vadd.f32 %v3737, %v3647
    %v3739 = vadd.f32 %v3643, 1.0
    %v3741 = vrot.slane %v3736, 2
    %v3743 = vadd.f32 %v2234, %v3741
    %v3744 = vtanh.pop %v3743
    %v3746 = vrot.slane %v3744, 6
    %v3747 = vsel %vm131, %v3746, 0
    %3749 = vmatprep.subr.mxu0 0.0
    %3750 = vmatpush1.msra.mxu0 %v37
    %3751 = vmatprep.subr.mxu0 0.0
    %3752 = vmatpush1.msra.mxu0 %v38
    %3753 = vmatprep.subr.mxu0 0.0
    %3754 = vmatpush1.msra.mxu0 %v39
    %3755 = vmatprep.subr.mxu0 0.0
    %3756 = vmatpush1.msra.mxu0 %v40
    %3757 = vmatprep.subr.mxu0 0.0
    %3758 = vmatpush1.msra.mxu0 0.0
    %3759 = vmatprep.subr.mxu0 0.0
    %3760 = vmatpush1.msra.mxu0 0.0
    %3761 = vmatprep.subr.mxu0 0.0
    %3762 = vmatpush1.msra.mxu0 0.0
    %3763 = vmatprep.subr.mxu0 0.0
    %3764 = vmatpush1.msra.mxu0 0.0
    %3765 = vmatprep.subr.mxu0 0.0
    %3766 = vmatpush1.msra.mxu0 0.0
    %3767 = vmatprep.subr.mxu0 0.0
    %3768 = vmatpush1.msra.mxu0 0.0
    %3769 = vmatprep.subr.mxu0 0.0
    %3770 = vmatpush1.msra.mxu0 0.0
    %3771 = vmatprep.subr.mxu0 0.0
    %3772 = vmatpush1.msra.mxu0 0.0
    %3773 = vmatprep.subr.mxu0 0.0
    %3774 = vmatpush1.msra.mxu0 0.0
    %3775 = vmatprep.subr.mxu0 0.0
    %3776 = vmatpush1.msra.mxu0 0.0
    %3777 = vmatprep.subr.mxu0 0.0
    %3778 = vmatpush1.msra.mxu0 0.0
    %3779 = vmatprep.subr.mxu0 0.0
    %3780 = vmatpush1.msra.mxu0 0.0
    %3781 = vmatprep.subr.mxu0 0.0
    %3782 = vmatpush1.msra.mxu0 0.0
    %3783 = vmatprep.subr.mxu0 0.0
    %3784 = vmatpush1.msra.mxu0 0.0
    %3785 = vmatprep.subr.mxu0 0.0
    %3786 = vmatpush1.msra.mxu0 0.0
    %3787 = vmatprep.subr.mxu0 0.0
    %3788 = vmatpush1.msra.mxu0 0.0
    %3789 = vmatprep.subr.mxu0 0.0
    %3790 = vmatpush1.msra.mxu0 0.0
    %3791 = vmatprep.subr.mxu0 0.0
    %3792 = vmatpush1.msra.mxu0 0.0
    %3793 = vmatprep.subr.mxu0 0.0
    %3794 = vmatpush1.msra.mxu0 0.0
    %3795 = vmatprep.subr.mxu0 0.0
    %3796 = vmatpush1.msra.mxu0 0.0
    %3797 = vmatprep.subr.mxu0 0.0
    %3798 = vmatpush1.msra.mxu0 0.0
    %3799 = vmatprep.subr.mxu0 0.0
    %3800 = vmatpush1.msra.mxu0 0.0
    %3801 = vmatprep.subr.mxu0 0.0
    %3802 = vmatpush1.msra.mxu0 0.0
    %3803 = vmatprep.subr.mxu0 0.0
    %3804 = vmatpush1.msra.mxu0 0.0
    %3805 = vmatprep.subr.mxu0 0.0
    %3806 = vmatpush1.msra.mxu0 0.0
    %3807 = vmatprep.subr.mxu0 0.0
    %3808 = vmatpush1.msra.mxu0 0.0
    %3809 = vmatprep.subr.mxu0 0.0
    %3810 = vmatpush1.msra.mxu0 0.0
    %3811 = vmatprep.subr.mxu0 0.0
    %3812 = vmatpush1.msra.mxu0 0.0
    %3813 = vmatprep.mubr.f32.mxu0 0.0
    %3814 = vmatmul.mubr.f32.gmra.mrb[0].mxu0 %v3747
    %v3815 = vpop.f32.mrb[0].mxu0
    %v3816 = vadd.f32 0.0, %v3815
    %v3817 = vpop.f32.mrb[0].mxu0
    %3818 = vdwg.mxu0
    %v3819 = vadd.f32 %v3816, %v289
    %v3820 = vxor.u32 %v3819, 2147483648
    %v3821 = vmul.f32 %v3820, 1.442695
    %v3822 = vpow.pop %v3821
    %v3823 = vadd.f32 %v3822, 1.0
    %v3824 = vrcp.pop %v3823
    %v3825 = vmul.f32 1.0, %v3824
    %v3826 = vadd.f32 %v3825, 0.0
    %vm3827 = vcmp.ge.f32.partialorder %v3826, 0.99
    %v3828 = vsel %vm3827, 1.0, %v3825
    %3830 = vset.pattern.permute.xlu0 32
    %3831 = vperm.xlu0 %3830, %v3828
    %v3832 = vpop.permute.xlu0 %3831
    %v3834 = vmul.f32 %v3832, %v3819
    %v3835 = vadd.f32 %v3834, 0.0
    %v3837 = vmul.f32 %v3832, %v3746
    %v3838 = vadd.f32 %v3837, 0.0
    %v3839 = vadd.f32 %v3739, 1.0
    %v3840 = vsel %vm3827, %v3739, %v3839
    %v3841 = vsub.f32 1.0, %v3826
    %v3842 = vsel %vm3827, 0.0, %v3841
    %v3843 = vsel %vm3827, 1.0, %v3841
    %v3844 = vsel %vm3827, 0.0, 2.0
    %v3846 = vrot.slane %v3816, 2
    %v3848 = vadd.f32 %v127, %v3846
    %v3849 = vtanh.pop %v3848
    %v3851 = vrot.slane %v3849, 6
    %v3852 = vsel %vm131, %v3851, 0
    %3854 = vmatprep.subr.mxu0 0.0
    %3855 = vmatpush1.msra.mxu0 %v37
    %3856 = vmatprep.subr.mxu0 0.0
    %3857 = vmatpush1.msra.mxu0 %v38
    %3858 = vmatprep.subr.mxu0 0.0
    %3859 = vmatpush1.msra.mxu0 %v39
    %3860 = vmatprep.subr.mxu0 0.0
    %3861 = vmatpush1.msra.mxu0 %v40
    %3862 = vmatprep.subr.mxu0 0.0
    %3863 = vmatpush1.msra.mxu0 0.0
    %3864 = vmatprep.subr.mxu0 0.0
    %3865 = vmatpush1.msra.mxu0 0.0
    %3866 = vmatprep.subr.mxu0 0.0
    %3867 = vmatpush1.msra.mxu0 0.0
    %3868 = vmatprep.subr.mxu0 0.0
    %3869 = vmatpush1.msra.mxu0 0.0
    %3870 = vmatprep.subr.mxu0 0.0
    %3871 = vmatpush1.msra.mxu0 0.0
    %3872 = vmatprep.subr.mxu0 0.0
    %3873 = vmatpush1.msra.mxu0 0.0
    %3874 = vmatprep.subr.mxu0 0.0
    %3875 = vmatpush1.msra.mxu0 0.0
    %3876 = vmatprep.subr.mxu0 0.0
    %3877 = vmatpush1.msra.mxu0 0.0
    %3878 = vmatprep.subr.mxu0 0.0
    %3879 = vmatpush1.msra.mxu0 0.0
    %3880 = vmatprep.subr.mxu0 0.0
    %3881 = vmatpush1.msra.mxu0 0.0
    %3882 = vmatprep.subr.mxu0 0.0
    %3883 = vmatpush1.msra.mxu0 0.0
    %3884 = vmatprep.subr.mxu0 0.0
    %3885 = vmatpush1.msra.mxu0 0.0
    %3886 = vmatprep.subr.mxu0 0.0
    %3887 = vmatpush1.msra.mxu0 0.0
    %3888 = vmatprep.subr.mxu0 0.0
    %3889 = vmatpush1.msra.mxu0 0.0
    %3890 = vmatprep.subr.mxu0 0.0
    %3891 = vmatpush1.msra.mxu0 0.0
    %3892 = vmatprep.subr.mxu0 0.0
    %3893 = vmatpush1.msra.mxu0 0.0
    %3894 = vmatprep.subr.mxu0 0.0
    %3895 = vmatpush1.msra.mxu0 0.0
    %3896 = vmatprep.subr.mxu0 0.0
    %3897 = vmatpush1.msra.mxu0 0.0
    %3898 = vmatprep.subr.mxu0 0.0
    %3899 = vmatpush1.msra.mxu0 0.0
    %3900 = vmatprep.subr.mxu0 0.0
    %3901 = vmatpush1.msra.mxu0 0.0
    %3902 = vmatprep.subr.mxu0 0.0
    %3903 = vmatpush1.msra.mxu0 0.0
    %3904 = vmatprep.subr.mxu0 0.0
    %3905 = vmatpush1.msra.mxu0 0.0
    %3906 = vmatprep.subr.mxu0 0.0
    %3907 = vmatpush1.msra.mxu0 0.0
    %3908 = vmatprep.subr.mxu0 0.0
    %3909 = vmatpush1.msra.mxu0 0.0
    %3910 = vmatprep.subr.mxu0 0.0
    %3911 = vmatpush1.msra.mxu0 0.0
    %3912 = vmatprep.subr.mxu0 0.0
    %3913 = vmatpush1.msra.mxu0 0.0
    %3914 = vmatprep.subr.mxu0 0.0
    %3915 = vmatpush1.msra.mxu0 0.0
    %3916 = vmatprep.subr.mxu0 0.0
    %3917 = vmatpush1.msra.mxu0 0.0
    %3918 = vmatprep.mubr.f32.mxu0 0.0
    %3919 = vmatmul.mubr.f32.gmra.mrb[0].mxu0 %v3852
    %v3920 = vpop.f32.mrb[0].mxu0
    %v3921 = vadd.f32 0.0, %v3920
    %v3922 = vpop.f32.mrb[0].mxu0
    %3923 = vdwg.mxu0
    %v3924 = vadd.f32 %v3921, %v289
    %v3925 = vxor.u32 %v3924, 2147483648
    %v3926 = vmul.f32 %v3925, 1.442695
    %v3927 = vpow.pop %v3926
    %v3928 = vadd.f32 %v3927, 1.0
    %v3929 = vrcp.pop %v3928
    %v3930 = vmul.f32 1.0, %v3929
    %v3931 = vadd.f32 %v3826, %v3930
    %vm3932 = vcmp.ge.f32.partialorder %v3931, 0.99
    %v3933 = vsel %vm3932, %v3842, %v3930
    %3935 = vset.pattern.permute.xlu0 32
    %3936 = vperm.xlu0 %3935, %v3933
    %v3937 = vpop.permute.xlu0 %3936
    %v3939 = vmul.f32 %v3937, %v3924
    %v3940 = vadd.f32 %v3835, %v3939
    %v3942 = vmul.f32 %v3937, %v3851
    %v3943 = vadd.f32 %v3838, %v3942
    %v3944 = vadd.f32 %v3840, 1.0
    %v3945 = vsel %vm3932, %v3840, %v3944
    %v3946 = vsub.f32 1.0, %v3931
    %v3947 = vsel %vm3932, 0.0, %v3946
    %v3948 = vsel %vm3932, %v3843, %v3946
    %v3949 = vsel %vm3932, %v3844, 3.0
    %v3951 = vrot.slane %v3921, 2
    %v3953 = vadd.f32 %v127, %v3951
    %v3954 = vtanh.pop %v3953
    %v3956 = vrot.slane %v3954, 6
    %v3957 = vsel %vm131, %v3956, 0
    %3959 = vmatprep.subr.mxu0 0.0
    %3960 = vmatpush1.msra.mxu0 %v37
    %3961 = vmatprep.subr.mxu0 0.0
    %3962 = vmatpush1.msra.mxu0 %v38
    %3963 = vmatprep.subr.mxu0 0.0
    %3964 = vmatpush1.msra.mxu0 %v39
    %3965 = vmatprep.subr.mxu0 0.0
    %3966 = vmatpush1.msra.mxu0 %v40
    %3967 = vmatprep.subr.mxu0 0.0
    %3968 = vmatpush1.msra.mxu0 0.0
    %3969 = vmatprep.subr.mxu0 0.0
    %3970 = vmatpush1.msra.mxu0 0.0
    %3971 = vmatprep.subr.mxu0 0.0
    %3972 = vmatpush1.msra.mxu0 0.0
    %3973 = vmatprep.subr.mxu0 0.0
    %3974 = vmatpush1.msra.mxu0 0.0
    %3975 = vmatprep.subr.mxu0 0.0
    %3976 = vmatpush1.msra.mxu0 0.0
    %3977 = vmatprep.subr.mxu0 0.0
    %3978 = vmatpush1.msra.mxu0 0.0
    %3979 = vmatprep.subr.mxu0 0.0
    %3980 = vmatpush1.msra.mxu0 0.0
    %3981 = vmatprep.subr.mxu0 0.0
    %3982 = vmatpush1.msra.mxu0 0.0
    %3983 = vmatprep.subr.mxu0 0.0
    %3984 = vmatpush1.msra.mxu0 0.0
    %3985 = vmatprep.subr.mxu0 0.0
    %3986 = vmatpush1.msra.mxu0 0.0
    %3987 = vmatprep.subr.mxu0 0.0
    %3988 = vmatpush1.msra.mxu0 0.0
    %3989 = vmatprep.subr.mxu0 0.0
    %3990 = vmatpush1.msra.mxu0 0.0
    %3991 = vmatprep.subr.mxu0 0.0
    %3992 = vmatpush1.msra.mxu0 0.0
    %3993 = vmatprep.subr.mxu0 0.0
    %3994 = vmatpush1.msra.mxu0 0.0
    %3995 = vmatprep.subr.mxu0 0.0
    %3996 = vmatpush1.msra.mxu0 0.0
    %3997 = vmatprep.subr.mxu0 0.0
    %3998 = vmatpush1.msra.mxu0 0.0
    %3999 = vmatprep.subr.mxu0 0.0
    %4000 = vmatpush1.msra.mxu0 0.0
    %4001 = vmatprep.subr.mxu0 0.0
    %4002 = vmatpush1.msra.mxu0 0.0
    %4003 = vmatprep.subr.mxu0 0.0
    %4004 = vmatpush1.msra.mxu0 0.0
    %4005 = vmatprep.subr.mxu0 0.0
    %4006 = vmatpush1.msra.mxu0 0.0
    %4007 = vmatprep.subr.mxu0 0.0
    %4008 = vmatpush1.msra.mxu0 0.0
    %4009 = vmatprep.subr.mxu0 0.0
    %4010 = vmatpush1.msra.mxu0 0.0
    %4011 = vmatprep.subr.mxu0 0.0
    %4012 = vmatpush1.msra.mxu0 0.0
    %4013 = vmatprep.subr.mxu0 0.0
    %4014 = vmatpush1.msra.mxu0 0.0
    %4015 = vmatprep.subr.mxu0 0.0
    %4016 = vmatpush1.msra.mxu0 0.0
    %4017 = vmatprep.subr.mxu0 0.0
    %4018 = vmatpush1.msra.mxu0 0.0
    %4019 = vmatprep.subr.mxu0 0.0
    %4020 = vmatpush1.msra.mxu0 0.0
    %4021 = vmatprep.subr.mxu0 0.0
    %4022 = vmatpush1.msra.mxu0 0.0
    %4023 = vmatprep.mubr.f32.mxu0 0.0
    %4024 = vmatmul.mubr.f32.gmra.mrb[0].mxu0 %v3957
    %v4025 = vpop.f32.mrb[0].mxu0
    %v4026 = vadd.f32 0.0, %v4025
    %v4027 = vpop.f32.mrb[0].mxu0
    %4028 = vdwg.mxu0
    %v4029 = vadd.f32 %v4026, %v289
    %v4030 = vxor.u32 %v4029, 2147483648
    %v4031 = vmul.f32 %v4030, 1.442695
    %v4032 = vpow.pop %v4031
    %v4033 = vadd.f32 %v4032, 1.0
    %v4034 = vrcp.pop %v4033
    %v4035 = vmul.f32 1.0, %v4034
    %v4036 = vadd.f32 %v3931, %v4035
    %vm4037 = vcmp.ge.f32.partialorder %v4036, 0.99
    %v4038 = vsel %vm4037, %v3947, %v4035
    %4040 = vset.pattern.permute.xlu0 32
    %4041 = vperm.xlu0 %4040, %v4038
    %v4042 = vpop.permute.xlu0 %4041
    %v4044 = vmul.f32 %v4042, %v4029
    %v4045 = vadd.f32 %v3940, %v4044
    %v4047 = vmul.f32 %v4042, %v3956
    %v4048 = vadd.f32 %v3943, %v4047
    %v4049 = vadd.f32 %v3945, 1.0
    %v4050 = vsel %vm4037, %v3945, %v4049
    %v4051 = vsub.f32 1.0, %v4036
    %v4052 = vsel %vm4037, 0.0, %v4051
    %v4053 = vsel %vm4037, %v3948, %v4051
    %v4054 = vsel %vm4037, %v3949, 4.0
    %v4056 = vrot.slane %v4026, 2
    %v4058 = vadd.f32 %v127, %v4056
    %v4059 = vtanh.pop %v4058
    %v4061 = vrot.slane %v4059, 6
    %v4062 = vsel %vm131, %v4061, 0
    %4064 = vmatprep.subr.mxu0 0.0
    %4065 = vmatpush1.msra.mxu0 %v37
    %4066 = vmatprep.subr.mxu0 0.0
    %4067 = vmatpush1.msra.mxu0 %v38
    %4068 = vmatprep.subr.mxu0 0.0
    %4069 = vmatpush1.msra.mxu0 %v39
    %4070 = vmatprep.subr.mxu0 0.0
    %4071 = vmatpush1.msra.mxu0 %v40
    %4072 = vmatprep.subr.mxu0 0.0
    %4073 = vmatpush1.msra.mxu0 0.0
    %4074 = vmatprep.subr.mxu0 0.0
    %4075 = vmatpush1.msra.mxu0 0.0
    %4076 = vmatprep.subr.mxu0 0.0
    %4077 = vmatpush1.msra.mxu0 0.0
    %4078 = vmatprep.subr.mxu0 0.0
    %4079 = vmatpush1.msra.mxu0 0.0
    %4080 = vmatprep.subr.mxu0 0.0
    %4081 = vmatpush1.msra.mxu0 0.0
    %4082 = vmatprep.subr.mxu0 0.0
    %4083 = vmatpush1.msra.mxu0 0.0
    %4084 = vmatprep.subr.mxu0 0.0
    %4085 = vmatpush1.msra.mxu0 0.0
    %4086 = vmatprep.subr.mxu0 0.0
    %4087 = vmatpush1.msra.mxu0 0.0
    %4088 = vmatprep.subr.mxu0 0.0
    %4089 = vmatpush1.msra.mxu0 0.0
    %4090 = vmatprep.subr.mxu0 0.0
    %4091 = vmatpush1.msra.mxu0 0.0
    %4092 = vmatprep.subr.mxu0 0.0
    %4093 = vmatpush1.msra.mxu0 0.0
    %4094 = vmatprep.subr.mxu0 0.0
    %4095 = vmatpush1.msra.mxu0 0.0
    %4096 = vmatprep.subr.mxu0 0.0
    %4097 = vmatpush1.msra.mxu0 0.0
    %4098 = vmatprep.subr.mxu0 0.0
    %4099 = vmatpush1.msra.mxu0 0.0
    %4100 = vmatprep.subr.mxu0 0.0
    %4101 = vmatpush1.msra.mxu0 0.0
    %4102 = vmatprep.subr.mxu0 0.0
    %4103 = vmatpush1.msra.mxu0 0.0
    %4104 = vmatprep.subr.mxu0 0.0
    %4105 = vmatpush1.msra.mxu0 0.0
    %4106 = vmatprep.subr.mxu0 0.0
    %4107 = vmatpush1.msra.mxu0 0.0
    %4108 = vmatprep.subr.mxu0 0.0
    %4109 = vmatpush1.msra.mxu0 0.0
    %4110 = vmatprep.subr.mxu0 0.0
    %4111 = vmatpush1.msra.mxu0 0.0
    %4112 = vmatprep.subr.mxu0 0.0
    %4113 = vmatpush1.msra.mxu0 0.0
    %4114 = vmatprep.subr.mxu0 0.0
    %4115 = vmatpush1.msra.mxu0 0.0
    %4116 = vmatprep.subr.mxu0 0.0
    %4117 = vmatpush1.msra.mxu0 0.0
    %4118 = vmatprep.subr.mxu0 0.0
    %4119 = vmatpush1.msra.mxu0 0.0
    %4120 = vmatprep.subr.mxu0 0.0
    %4121 = vmatpush1.msra.mxu0 0.0
    %4122 = vmatprep.subr.mxu0 0.0
    %4123 = vmatpush1.msra.mxu0 0.0
    %4124 = vmatprep.subr.mxu0 0.0
    %4125 = vmatpush1.msra.mxu0 0.0
    %4126 = vmatprep.subr.mxu0 0.0
    %4127 = vmatpush1.msra.mxu0 0.0
    %4128 = vmatprep.mubr.f32.mxu0 0.0
    %4129 = vmatmul.mubr.f32.gmra.mrb[0].mxu0 %v4062
    %v4130 = vpop.f32.mrb[0].mxu0
    %v4131 = vadd.f32 0.0, %v4130
    %v4132 = vpop.f32.mrb[0].mxu0
    %4133 = vdwg.mxu0
    %v4134 = vadd.f32 %v4131, %v289
    %v4135 = vxor.u32 %v4134, 2147483648
    %v4136 = vmul.f32 %v4135, 1.442695
    %v4137 = vpow.pop %v4136
    %v4138 = vadd.f32 %v4137, 1.0
    %v4139 = vrcp.pop %v4138
    %v4140 = vmul.f32 1.0, %v4139
    %v4141 = vadd.f32 %v4036, %v4140
    %vm4142 = vcmp.ge.f32.partialorder %v4141, 0.99
    %v4143 = vsel %vm4142, %v4052, %v4140
    %4145 = vset.pattern.permute.xlu0 32
    %4146 = vperm.xlu0 %4145, %v4143
    %v4147 = vpop.permute.xlu0 %4146
    %v4149 = vmul.f32 %v4147, %v4134
    %v4150 = vadd.f32 %v4045, %v4149
    %v4152 = vmul.f32 %v4147, %v4061
    %v4153 = vadd.f32 %v4048, %v4152
    %v4154 = vadd.f32 %v4050, 1.0
    %v4155 = vsel %vm4142, %v4050, %v4154
    %v4156 = vsub.f32 1.0, %v4141
    %v4157 = vsel %vm4142, 0.0, %v4156
    %v4158 = vsel %vm4142, %v4053, %v4156
    %v4159 = vsel %vm4142, %v4054, 5.0
    %v4161 = vrot.slane %v4131, 2
    %v4163 = vadd.f32 %v127, %v4161
    %v4164 = vtanh.pop %v4163
    %v4166 = vrot.slane %v4164, 6
    %v4167 = vsel %vm131, %v4166, 0
    %4169 = vmatprep.subr.mxu0 0.0
    %4170 = vmatpush1.msra.mxu0 %v37
    %4171 = vmatprep.subr.mxu0 0.0
    %4172 = vmatpush1.msra.mxu0 %v38
    %4173 = vmatprep.subr.mxu0 0.0
    %4174 = vmatpush1.msra.mxu0 %v39
    %4175 = vmatprep.subr.mxu0 0.0
    %4176 = vmatpush1.msra.mxu0 %v40
    %4177 = vmatprep.subr.mxu0 0.0
    %4178 = vmatpush1.msra.mxu0 0.0
    %4179 = vmatprep.subr.mxu0 0.0
    %4180 = vmatpush1.msra.mxu0 0.0
    %4181 = vmatprep.subr.mxu0 0.0
    %4182 = vmatpush1.msra.mxu0 0.0
    %4183 = vmatprep.subr.mxu0 0.0
    %4184 = vmatpush1.msra.mxu0 0.0
    %4185 = vmatprep.subr.mxu0 0.0
    %4186 = vmatpush1.msra.mxu0 0.0
    %4187 = vmatprep.subr.mxu0 0.0
    %4188 = vmatpush1.msra.mxu0 0.0
    %4189 = vmatprep.subr.mxu0 0.0
    %4190 = vmatpush1.msra.mxu0 0.0
    %4191 = vmatprep.subr.mxu0 0.0
    %4192 = vmatpush1.msra.mxu0 0.0
    %4193 = vmatprep.subr.mxu0 0.0
    %4194 = vmatpush1.msra.mxu0 0.0
    %4195 = vmatprep.subr.mxu0 0.0
    %4196 = vmatpush1.msra.mxu0 0.0
    %4197 = vmatprep.subr.mxu0 0.0
    %4198 = vmatpush1.msra.mxu0 0.0
    %4199 = vmatprep.subr.mxu0 0.0
    %4200 = vmatpush1.msra.mxu0 0.0
    %4201 = vmatprep.subr.mxu0 0.0
    %4202 = vmatpush1.msra.mxu0 0.0
    %4203 = vmatprep.subr.mxu0 0.0
    %4204 = vmatpush1.msra.mxu0 0.0
    %4205 = vmatprep.subr.mxu0 0.0
    %4206 = vmatpush1.msra.mxu0 0.0
    %4207 = vmatprep.subr.mxu0 0.0
    %4208 = vmatpush1.msra.mxu0 0.0
    %4209 = vmatprep.subr.mxu0 0.0
    %4210 = vmatpush1.msra.mxu0 0.0
    %4211 = vmatprep.subr.mxu0 0.0
    %4212 = vmatpush1.msra.mxu0 0.0
    %4213 = vmatprep.subr.mxu0 0.0
    %4214 = vmatpush1.msra.mxu0 0.0
    %4215 = vmatprep.subr.mxu0 0.0
    %4216 = vmatpush1.msra.mxu0 0.0
    %4217 = vmatprep.subr.mxu0 0.0
    %4218 = vmatpush1.msra.mxu0 0.0
    %4219 = vmatprep.subr.mxu0 0.0
    %4220 = vmatpush1.msra.mxu0 0.0
    %4221 = vmatprep.subr.mxu0 0.0
    %4222 = vmatpush1.msra.mxu0 0.0
    %4223 = vmatprep.subr.mxu0 0.0
    %4224 = vmatpush1.msra.mxu0 0.0
    %4225 = vmatprep.subr.mxu0 0.0
    %4226 = vmatpush1.msra.mxu0 0.0
    %4227 = vmatprep.subr.mxu0 0.0
    %4228 = vmatpush1.msra.mxu0 0.0
    %4229 = vmatprep.subr.mxu0 0.0
    %4230 = vmatpush1.msra.mxu0 0.0
    %4231 = vmatprep.subr.mxu0 0.0
    %4232 = vmatpush1.msra.mxu0 0.0
    %4233 = vmatprep.mubr.f32.mxu0 0.0
    %4234 = vmatmul.mubr.f32.gmra.mrb[0].mxu0 %v4167
    %v4235 = vpop.f32.mrb[0].mxu0
    %v4236 = vadd.f32 0.0, %v4235
    %v4237 = vpop.f32.mrb[0].mxu0
    %4238 = vdwg.mxu0
    %v4239 = vadd.f32 %v4236, %v289
    %4241 = vset.pattern.permute.xlu0 32
    %4242 = vperm.xlu0 %4241, %v4157
    %v4243 = vpop.permute.xlu0 %4242
    %v4245 = vmul.f32 %v4243, %v4239
    %v4246 = vadd.f32 %v4150, %v4245
    %v4248 = vmul.f32 %v4243, %v4166
    %v4249 = vadd.f32 %v4153, %v4248
    %v4250 = vadd.f32 %v3738, %v4158
    %v4251 = vadd.f32 %v4250, %v4159
    %4260 = vrot.lane.b32.xlu0 %v705, 95
    %v4261 = vpop.permute.xlu0 %4260
    %4262 = vrot.lane.b32.xlu0 %v1213, 95
    %v4263 = vpop.permute.xlu0 %4262
    %4264 = vrot.lane.b32.xlu0 %v1721, 95
    %v4265 = vpop.permute.xlu0 %4264
    %4266 = vrot.lane.b32.xlu0 %v2229, 95
    %v4267 = vpop.permute.xlu0 %4266
    %4268 = vrot.lane.b32.xlu0 %v2718, 95
    %v4269 = vpop.permute.xlu0 %4268
    %4270 = vrot.lane.b32.xlu0 %v3226, 95
    %v4271 = vpop.permute.xlu0 %4270
    %4272 = vrot.lane.b32.xlu0 %v3734, 95
    %v4273 = vpop.permute.xlu0 %4272
    %4274 = vrot.lane.b32.xlu0 %v4246, 95
    %v4275 = vpop.permute.xlu0 %4274
    %vm4284 = vcmask 58368
    %4285 = vst.msk [vmem:[#allocation5] sm:$0x3] %vm4284, %v4261
    %4286 = vst.msk [vmem:[#allocation5 + $0x2] sm:$0x3] %vm4284, %v4263
    %4287 = vst.msk [vmem:[#allocation5 + $0x4] sm:$0x3] %vm4284, %v4265
    %4288 = vst.msk [vmem:[#allocation5 + $0x6] sm:$0x3] %vm4284, %v4267
    %4289 = vst.msk [vmem:[#allocation5 + $0x8] sm:$0x3] %vm4284, %v4269
    %4290 = vst.msk [vmem:[#allocation5 + $0xa] sm:$0x3] %vm4284, %v4271
    %4291 = vst.msk [vmem:[#allocation5 + $0xc] sm:$0x3] %vm4284, %v4273
    %4292 = vst.msk [vmem:[#allocation5 + $0xe] sm:$0x3] %vm4284, %v4275
    %vm4293 = vcmask 254976
    %4294 = vst.msk [vmem:[#allocation6] sm:$0x3] %vm4293, %v4249
    %vm4295 = vcmask 263424
    %4296 = vst.msk [vmem:[#allocation6] sm:$0x3] %vm4295, %v4251
    %4298 = vrot.lane.b32.xlu0 %v4155, 1
    %v4299 = vpop.permute.xlu0 %4298
    %vm4301 = vcmask 271624
    %4302 = vst.msk [vmem:[#allocation6] sm:$0x3] %vm4301, %v4299
    // Predicated region
    $region22: #{tpu_custom_call.1} parent=1 // pred_check
      _
    $region23: #{tpu_custom_call.1} parent=1 // pred_check_branch
      %4304 = sbr.rel (0) target = $region25
    $region24: #{tpu_custom_call.1} parent=1 // pred_region
      %s4306 = ssub.s32 256, 256
      %4307 = vsyncadd [#allocation4], %s4306
      %s4308 = sshll.u32 [#allocation5], 4
      %s4309 = int_to_ptr.vmem [resolvable:$true] %s4308
      %4314 = dma.vmem_to_hbm [thread:$0]  %s4309, 256, %s4, [#allocation4], 32, 32, 2
    $region25: #{tpu_custom_call.1} parent=1 // pred_fallthru
      _
    // Predicated region
    $region26: #{tpu_custom_call.1} parent=1 // pred_check
      _
    $region27: #{tpu_custom_call.1} parent=1 // pred_check_branch
      %4316 = sbr.rel (0) target = $region29
    $region28: #{tpu_custom_call.1} parent=1 // pred_region
      %s4318 = ssub.s32 32, 32
      %4319 = vsyncadd [#allocation7], %s4318
      %s4321 = sshll.u32 [#allocation6], 4
      %s4322 = int_to_ptr.vmem [resolvable:$true] %s4321
      %4324 = dma.vmem_to_hbm [thread:$0]  %s4322, 32, %s5, [#allocation7]
    $region29: #{tpu_custom_call.1} parent=1 // pred_fallthru
      _
    // Predicated region
    $region30: #{tpu_custom_call.1} parent=1 // pred_check
      _
    $region31: #{tpu_custom_call.1} parent=1 // pred_check_branch
      %4326 = sbr.rel (0) target = $region33
    $region32: #{tpu_custom_call.1} parent=1 // pred_region
      %4327 = dma.done [#allocation4], 256
    $region33: #{tpu_custom_call.1} parent=1 // pred_fallthru
      _
    // Predicated region
    $region34: #{tpu_custom_call.1} parent=1 // pred_check
      _
    $region35: #{tpu_custom_call.1} parent=1 // pred_check_branch
      %4329 = sbr.rel (0) target = $region37
    $region36: #{tpu_custom_call.1} parent=1 // pred_region
      %4330 = dma.done [#allocation7], 32
    $region37: #{tpu_custom_call.1} parent=1 // pred_fallthru
      _
    %4331 = vsyncpa [#allocation3], 1
    %4332 = vsyncpa [#allocation4], 1
    %4333 = vsyncpa [#allocation7], 1

</llo_original>
